<compile_context>
chip_gen: v6e
topology: v6e:2x2x1
jax: 0.10.0
libtpu: 0.0.40
codegen_flags: <defaults>
</compile_context>

<pallas_src>
import jax
import jax.numpy as jnp
from jax import lax
from jax.experimental import pallas as pl
from jax.experimental.pallas import tpu as pltpu

HIDDEN = 64            # LSTM hidden size
GATES = 4 * HIDDEN     # 256, PyTorch gate order [i, f, g, o]


# ----------------------------------------------------------------------------
# Conv1d(kernel=3, padding=1) + ReLU as three accumulated matmuls (one per tap).
# ----------------------------------------------------------------------------
def _conv_relu(x2d, bb, w_ref, b_ref, out_dtype):
    """x2d: (L*bb, Cin), rows length-major (row = t*bb + b) so shifting one
    timestep == shifting bb rows.  w_ref: (3, Cin, Cout); b_ref: (1, Cout)."""
    n, cin = x2d.shape
    zrow = jnp.zeros((bb, cin), x2d.dtype)
    x_m1 = jnp.concatenate([zrow, x2d[:n - bb, :]], axis=0)   # x[t-1] (zero-padded)
    x_p1 = jnp.concatenate([x2d[bb:, :], zrow], axis=0)       # x[t+1] (zero-padded)
    y = (jnp.dot(x_m1, w_ref[0], preferred_element_type=jnp.float32)
         + jnp.dot(x2d, w_ref[1], preferred_element_type=jnp.float32)
         + jnp.dot(x_p1, w_ref[2], preferred_element_type=jnp.float32)
         + b_ref[...])
    return jnp.maximum(y, 0.0).astype(out_dtype)


# ----------------------------------------------------------------------------
# Fused forward kernel: convs -> LSTM(2 layers) -> MLP head.
# ----------------------------------------------------------------------------
def hybrid_kernel(x_ref,
                  c1w, c1b, c2w, c2b, c3w, c3b,
                  wih0, b0, wcomb, b1g,
                  f1w, f1b, f2w, f2b, f3w, f3b,
                  out_ref, gin_ref):
    H = HIDDEN
    L, bb, _ = gin_ref.shape

    # -------------------- Conv stack (all VMEM-resident) --------------------
    x2d = x_ref[0]                                            # (L*bb, 2) f32
    a = _conv_relu(x2d, bb, c1w, c1b, jnp.bfloat16)           # f32 matmul, bf16 act
    a = _conv_relu(a, bb, c2w, c2b, jnp.bfloat16)             # (n, 64)
    a = _conv_relu(a, bb, c3w, c3b, jnp.bfloat16)             # (n, 128)

    # ----------- LSTM layer-0 input projection, hoisted out of loop ---------
    gin = jnp.dot(a, wih0[...], preferred_element_type=jnp.float32) + b0[...]
    # Single contiguous store, time-major bf16 scratch (recurrence reads gin_ref[t]).
    gin_ref[...] = gin.reshape(L, bb, GATES).astype(jnp.bfloat16)

    # ------------------- Loop-invariant values (hoisted) --------------------
    wcomb_v = wcomb[...]                                      # (2H, 8H) bf16
    b1_b = jnp.broadcast_to(b1g[...], (bb, GATES))            # (bb, 4H) f32
    lane = lax.broadcasted_iota(jnp.int32, (bb, 2 * H), 1)
    low = lane < H                                            # lanes [0:H)
    half_hi = jnp.where(low, 1.0, 0.5).astype(jnp.float32)    # [1   | 0.5]
    bias_hi = jnp.where(low, 0.0, 0.5).astype(jnp.float32)    # [0   | 0.5]

    # ----------------------- 2-layer LSTM recurrence ------------------------
    # State layout (128-lane vectors; no unaligned 64-lane extractions):
    #   h: value in lanes [H:2H); lanes [0:H) hold bounded junk, annihilated by
    #      zero weight rows / lane selects.   c: value duplicated in both halves.
    def cell(z, c_dup):
        # z: (bb, 4H) pre-activations, gate order [i, f, g, o].
        s_if = jax.nn.sigmoid(z[:, :2 * H])                   # [sig i | sig f]
        # one tanh pass: low lanes tanh(g), high lanes sigmoid(o)=0.5*tanh(o/2)+0.5
        t_go = jnp.tanh(z[:, 2 * H:] * half_hi)
        a_go = t_go * half_hi + bias_hi                       # [tanh g | sig o]
        mix = jnp.where(low, a_go, c_dup)                     # [tanh g | c]
        prod = s_if * mix                                     # [i*g    | f*c]
        c_new = prod + pltpu.roll(prod, H, 1)                 # c' duplicated
        h_new = a_go * jnp.tanh(c_new)                        # h' in high half
        return h_new, c_new

    def step(t, carry):
        r0, c0, h1, c1 = carry                                # r0 = h0(t-1) @ Whh0
        z0 = gin_ref[t].astype(jnp.float32) + r0
        h0, c0 = cell(z0, c0)
        in1 = jnp.where(low, pltpu.roll(h0, H, 1), h1)        # [h0(t) | h1(t-1)]
        # ONE fused matmul per step: layer-1 gates + recurrent half of z0(t+1).
        zz = jnp.dot(in1.astype(jnp.bfloat16), wcomb_v,
                     preferred_element_type=jnp.float32)      # (bb, 8H)
        z1 = zz[:, :GATES] + b1_b
        h1, c1 = cell(z1, c1)
        return zz[:, GATES:], c0, h1, c1

    z2 = jnp.zeros((bb, 2 * H), jnp.float32)
    zg = jnp.zeros((bb, GATES), jnp.float32)
    unroll = True if L <= 32 else 2
    _, _, h1, _ = lax.fori_loop(0, L, step, (zg, z2, z2, z2), unroll=unroll)

    # --------------------------- MLP head epilogue --------------------------
    # fc1 weight rows [0:H) are zero, so h1 (junk in its low half) is fed as-is.
    m = jnp.maximum(jnp.dot(h1.astype(jnp.bfloat16), f1w[...],
                            preferred_element_type=jnp.float32) + f1b[...], 0.0)
    m = jnp.maximum(jnp.dot(m.astype(jnp.bfloat16), f2w[...],
                            preferred_element_type=jnp.float32) + f2b[...], 0.0)
    out_ref[...] = (jnp.dot(m.astype(jnp.bfloat16), f3w[...],
                            preferred_element_type=jnp.float32) + f3b[...])


# ----------------------------------------------------------------------------
# Wrapper: one fused pallas_call, batch-block grid marked "parallel".
# ----------------------------------------------------------------------------
@jax.jit
def hybrid_forward(x_ncl, kp):
    """x_ncl: (B, 2, L) float32 in PyTorch NCL Conv1d layout."""
    B, Cin, L = x_ncl.shape
    # Batch tile as large as reasonable (every matmul's M = bb; the serial L-step
    # recurrence is paid once per block).  Pad B up to a tile multiple.
    # NOTE: on v7x with 16 <= B <= 128 one may halve bb to engage both TensorCores.
    bb = min(B, 128)
    nb = pl.cdiv(B, bb)
    Bp = nb * bb
    x_p = x_ncl if Bp == B else jnp.pad(x_ncl, ((0, Bp - B), (0, 0), (0, 0)))

    # NCL -> length-major, batch-block-major: (nb, L*bb, Cin), where row
    # (l*bb + b) of block i holds x[i*bb + b, :, l].
    x_lbc = jnp.transpose(x_p, (2, 0, 1)).astype(jnp.float32)       # (L, Bp, Cin)
    x_arr = (x_lbc.reshape(L, nb, bb, Cin)
             .transpose(1, 0, 2, 3)
             .reshape(nb, L * bb, Cin))

    def full(a):
        nd = a.ndim
        return pl.BlockSpec(a.shape, lambda i: (0,) * nd)

    worder = ["c1w", "c1b", "c2w", "c2b", "c3w", "c3b",
              "wih0", "b0", "wcomb", "b1",
              "f1w", "f1b", "f2w", "f2b", "f3w", "f3b"]
    in_specs = [pl.BlockSpec((1, L * bb, Cin), lambda i: (i, 0, 0))]
    in_specs += [full(kp[k]) for k in worder]

    out = pl.pallas_call(
        hybrid_kernel,
        out_shape=jax.ShapeDtypeStruct((Bp, 2), jnp.float32),
        grid_spec=pltpu.PrefetchScalarGridSpec(
            num_scalar_prefetch=0,
            grid=(nb,),
            in_specs=in_specs,
            out_specs=pl.BlockSpec((bb, 2), lambda i: (i, 0)),
            # bf16 gin scratch: L*bb*256*2 B  (stays well under v7x's 64 MiB VMEM).
            scratch_shapes=[pltpu.VMEM((L, bb, GATES), jnp.bfloat16)],
        ),
        compiler_params=pltpu.CompilerParams(
            dimension_semantics=("parallel",),
            vmem_limit_bytes=64 * 1024 * 1024),
    )(x_arr, *[kp[k] for k in worder])
    return out[:B]


# ----------------------------------------------------------------------------
# Parameter init (PyTorch-layout, f32) and kernel-ready repacking.
# ----------------------------------------------------------------------------
def init_params(key):
    def dense(k, fan_in, shape):
        return (jax.random.normal(k, shape, jnp.float32)
                / jnp.sqrt(jnp.float32(fan_in)))

    keys = jax.random.split(key, 16)
    H = HIDDEN
    return {
        # Conv weights (K, Cin, Cout); biases (1, Cout).
        "c1_w": dense(keys[0], 2 * 3, (3, 2, 32)),
        "c1_b": dense(keys[1], 2 * 3, (1, 32)),
        "c2_w": dense(keys[2], 32 * 3, (3, 32, 64)),
        "c2_b": dense(keys[3], 32 * 3, (1, 64)),
        "c3_w": dense(keys[4], 64 * 3, (3, 64, 128)),
        "c3_b": dense(keys[5], 64 * 3, (1, 128)),
        "lstm": {
            # (in, 4H) pre-transposed; b = b_ih + b_hh fused; gate order i,f,g,o.
            "wih0": dense(keys[6], 128, (128, 4 * H)),
            "whh0": dense(keys[7], H, (H, 4 * H)),
            "b0": dense(keys[8], H, (1, 4 * H)),
            "wih1": dense(keys[9], H, (H, 4 * H)),
            "whh1": dense(keys[10], H, (H, 4 * H)),
            "b1": dense(keys[11], H, (1, 4 * H)),
        },
        "mlp": {
            "w1": dense(keys[12], 64, (64, 128)),
            "b1": jnp.zeros((1, 128), jnp.float32),
            "w2": dense(keys[13], 128, (128, 64)),
            "b2": jnp.zeros((1, 64), jnp.float32),
            "w3": dense(keys[14], 64, (64, 2)),
            "b3": jnp.zeros((1, 2), jnp.float32),
        },
    }


def pack_params(p):
    """Repack raw f32 params into kernel-ready arrays (bf16 matmul weights)."""
    H = HIDDEN
    bf = jnp.bfloat16
    lp, mp = p["lstm"], p["mlp"]

    zeros_g = jnp.zeros((H, GATES), jnp.float32)
    # Fused layer-1 weight, columns [0:4H) -> z1(t) = [h0|h1_prev] @ [wih1;whh1],
    # columns [4H:8H) -> h0(t)@whh0 (recurrent half of z0(t+1));  rows [H:2H) of
    # that block are zero so h1 does not contribute.
    w1cat = jnp.concatenate([lp["wih1"], lp["whh1"]], axis=0)      # (2H, 4H)
    w0pad = jnp.concatenate([lp["whh0"], zeros_g], axis=0)         # (2H, 4H)
    wcomb = jnp.concatenate([w1cat, w0pad], axis=1).astype(bf)     # (2H, 8H)

    return {
        "c1w": p["c1_w"], "c1b": p["c1_b"],            # conv1 stays f32 (Cin=2)
        "c2w": p["c2_w"].astype(bf), "c2b": p["c2_b"],
        "c3w": p["c3_w"].astype(bf), "c3b": p["c3_b"],
        "wih0": lp["wih0"].astype(bf), "b0": lp["b0"],
        "wcomb": wcomb, "b1": lp["b1"],
        # fc1 zero-padded in rows [0:H) so the 128-lane h1 state feeds it directly.
        "f1w": jnp.concatenate([jnp.zeros((H, 128), jnp.float32),
                                mp["w1"]], axis=0).astype(bf),
        "f1b": mp["b1"],
        "f2w": mp["w2"].astype(bf), "f2b": mp["b2"],
        "f3w": mp["w3"].astype(bf), "f3b": mp["b3"],
    }


# ----------------------------------------------------------------------------
# Pure-JAX f32 reference (mirrors the PyTorch module) for a sanity check.
# ----------------------------------------------------------------------------
def reference_forward(x_ncl, params):
    x = jnp.transpose(x_ncl, (0, 2, 1))

    def conv(x, w, b):
        L = x.shape[1]
        xp = jnp.pad(x, ((0, 0), (1, 1), (0, 0)))
        acc = sum(jnp.einsum("blc,cd->bld", xp[:, k:k + L, :], w[k])
                  for k in range(3))
        return jnp.maximum(acc + b, 0.0)

    x = conv(x, params["c1_w"], params["c1_b"])
    x = conv(x, params["c2_w"], params["c2_b"])
    x = conv(x, params["c3_w"], params["c3_b"])

    p = params["lstm"]
    B = x.shape[0]
    H = HIDDEN

    def gates(z):
        return (jax.nn.sigmoid(z[:, :H]), jax.nn.sigmoid(z[:, H:2 * H]),
                jnp.tanh(z[:, 2 * H:3 * H]), jax.nn.sigmoid(z[:, 3 * H:]))

    def step(carry, x_t):
        h0, c0, h1, c1 = carry
        i0, f0, g0, o0 = gates(x_t @ p["wih0"] + h0 @ p["whh0"] + p["b0"][0])
        c0 = f0 * c0 + i0 * g0
        h0 = o0 * jnp.tanh(c0)
        i1, f1, g1, o1 = gates(h0 @ p["wih1"] + h1 @ p["whh1"] + p["b1"][0])
        c1 = f1 * c1 + i1 * g1
        h1 = o1 * jnp.tanh(c1)
        return (h0, c0, h1, c1), None

    z = jnp.zeros((B, H), jnp.float32)
    (h0, c0, h1, c1), _ = lax.scan(step, (z, z, z, z),
                                   jnp.transpose(x, (1, 0, 2)))
    m = params["mlp"]
    h = jnp.maximum(h1 @ m["w1"] + m["b1"], 0.0)
    h = jnp.maximum(h @ m["w2"] + m["b2"], 0.0)
    return h @ m["w3"] + m["b3"]


if __name__ == "__main__":
    key = jax.random.PRNGKey(0)
    pkey, xkey = jax.random.split(key)
    params = init_params(pkey)
    packed = pack_params(params)

    B, C_IN, L = 2, 2, 8
    x = jax.random.normal(xkey, (B, C_IN, L), jnp.float32)  # PyTorch NCL input

    out = hybrid_forward(x, packed)
    out = jax.block_until_ready(out)
    assert out.shape == (B, 2), out.shape

    ref = reference_forward(x, params)
    # bf16 matmul weights / activations (f32 accumulation) -> loose but
    # bug-catching tolerance.
    assert jnp.allclose(out, ref, rtol=5e-2, atol=3e-2), (out, ref)

    print("KERNEL_OK")
</pallas_src>

<mosaic_0001>
module attributes {stable_mosaic.version = 11 : i64} {
  func.func @hybrid_kernel(%arg0: i32, %arg1: memref<1x16x2xf32, #tpu.memory_space<vmem>>, %arg2: memref<3x2x32xf32, #tpu.memory_space<vmem>>, %arg3: memref<1x32xf32, #tpu.memory_space<vmem>>, %arg4: memref<3x32x64xbf16, #tpu.memory_space<vmem>>, %arg5: memref<1x64xf32, #tpu.memory_space<vmem>>, %arg6: memref<3x64x128xbf16, #tpu.memory_space<vmem>>, %arg7: memref<1x128xf32, #tpu.memory_space<vmem>>, %arg8: memref<128x256xbf16, #tpu.memory_space<vmem>>, %arg9: memref<1x256xf32, #tpu.memory_space<vmem>>, %arg10: memref<128x512xbf16, #tpu.memory_space<vmem>>, %arg11: memref<1x256xf32, #tpu.memory_space<vmem>>, %arg12: memref<128x128xbf16, #tpu.memory_space<vmem>>, %arg13: memref<1x128xf32, #tpu.memory_space<vmem>>, %arg14: memref<128x64xbf16, #tpu.memory_space<vmem>>, %arg15: memref<1x64xf32, #tpu.memory_space<vmem>>, %arg16: memref<64x2xbf16, #tpu.memory_space<vmem>>, %arg17: memref<1x2xf32, #tpu.memory_space<vmem>>, %arg18: memref<2x2xf32, #tpu.memory_space<vmem>>, %arg19: memref<8x2x256xbf16, #tpu.memory_space<vmem>>) attributes {dimension_semantics = [#tpu.dimension_semantics<parallel>], iteration_bounds = array<i64: 1>, scalar_prefetch = 0 : i64, scratch_operands = 1 : i64, tpu.core_type = #tpu.core_type<tc>, window_params = [{transform_indices = @transform_0, window_bounds = array<i64: 1, 16, 2>}, {pipeline_mode = #tpu.pipeline_mode<synchronous>, transform_indices = @transform_1, window_bounds = array<i64: 3, 2, 32>}, {pipeline_mode = #tpu.pipeline_mode<synchronous>, transform_indices = @transform_2, window_bounds = array<i64: 1, 32>}, {pipeline_mode = #tpu.pipeline_mode<synchronous>, transform_indices = @transform_3, window_bounds = array<i64: 3, 32, 64>}, {pipeline_mode = #tpu.pipeline_mode<synchronous>, transform_indices = @transform_4, window_bounds = array<i64: 1, 64>}, {pipeline_mode = #tpu.pipeline_mode<synchronous>, transform_indices = @transform_5, window_bounds = array<i64: 3, 64, 128>}, {pipeline_mode = #tpu.pipeline_mode<synchronous>, transform_indices = @transform_6, window_bounds = array<i64: 1, 128>}, {pipeline_mode = #tpu.pipeline_mode<synchronous>, transform_indices = @transform_7, window_bounds = array<i64: 128, 256>}, {pipeline_mode = #tpu.pipeline_mode<synchronous>, transform_indices = @transform_8, window_bounds = array<i64: 1, 256>}, {pipeline_mode = #tpu.pipeline_mode<synchronous>, transform_indices = @transform_9, window_bounds = array<i64: 128, 512>}, {pipeline_mode = #tpu.pipeline_mode<synchronous>, transform_indices = @transform_10, window_bounds = array<i64: 1, 256>}, {pipeline_mode = #tpu.pipeline_mode<synchronous>, transform_indices = @transform_11, window_bounds = array<i64: 128, 128>}, {pipeline_mode = #tpu.pipeline_mode<synchronous>, transform_indices = @transform_12, window_bounds = array<i64: 1, 128>}, {pipeline_mode = #tpu.pipeline_mode<synchronous>, transform_indices = @transform_13, window_bounds = array<i64: 128, 64>}, {pipeline_mode = #tpu.pipeline_mode<synchronous>, transform_indices = @transform_14, window_bounds = array<i64: 1, 64>}, {pipeline_mode = #tpu.pipeline_mode<synchronous>, transform_indices = @transform_15, window_bounds = array<i64: 64, 2>}, {pipeline_mode = #tpu.pipeline_mode<synchronous>, transform_indices = @transform_16, window_bounds = array<i64: 1, 2>}, {transform_indices = @transform_17, window_bounds = array<i64: 2, 2>}]} {
    %c0 = arith.constant 0 : index
    %c0_0 = arith.constant 0 : index
    %c0_1 = arith.constant 0 : index
    %0 = vector.load %arg1[%c0, %c0_0, %c0_1] : memref<1x16x2xf32, #tpu.memory_space<vmem>>, vector<1x16x2xf32>
    %1 = vector.shape_cast %0 : vector<1x16x2xf32> to vector<16x2xf32>
    %cst = arith.constant 0.000000e+00 : f32
    %2 = vector.broadcast %cst : f32 to vector<2x2xf32>
    %3 = vector.extract_strided_slice %1 {offsets = [0, 0], sizes = [14, 2], strides = [1, 1]} : vector<16x2xf32> to vector<14x2xf32>
    %4 = tpu.concatenate %2, %3 in 0 : vector<2x2xf32>, vector<14x2xf32> -> vector<16x2xf32>
    %5 = vector.extract_strided_slice %1 {offsets = [2, 0], sizes = [14, 2], strides = [1, 1]} : vector<16x2xf32> to vector<14x2xf32>
    %6 = tpu.concatenate %5, %2 in 0 : vector<14x2xf32>, vector<2x2xf32> -> vector<16x2xf32>
    %c0_2 = arith.constant 0 : index
    %c0_3 = arith.constant 0 : index
    %c0_4 = arith.constant 0 : index
    %7 = vector.load %arg2[%c0_2, %c0_3, %c0_4] : memref<3x2x32xf32, #tpu.memory_space<vmem>>, vector<1x2x32xf32>
    %8 = vector.shape_cast %7 : vector<1x2x32xf32> to vector<2x32xf32>
    %cst_5 = arith.constant dense<0.000000e+00> : vector<16x32xf32>
    %9 = tpu.matmul %4, %8, %cst_5 {dimension_numbers = #tpu.dot_dimension_numbers<[1], [0], [0], [1], [0, 0, 1, 1], [], []>} : vector<16x2xf32>, vector<2x32xf32>, vector<16x32xf32> -> vector<16x32xf32>
    %c1 = arith.constant 1 : index
    %c0_6 = arith.constant 0 : index
    %c0_7 = arith.constant 0 : index
    %10 = vector.load %arg2[%c1, %c0_6, %c0_7] : memref<3x2x32xf32, #tpu.memory_space<vmem>>, vector<1x2x32xf32>
    %11 = vector.shape_cast %10 : vector<1x2x32xf32> to vector<2x32xf32>
    %cst_8 = arith.constant dense<0.000000e+00> : vector<16x32xf32>
    %12 = tpu.matmul %1, %11, %cst_8 {dimension_numbers = #tpu.dot_dimension_numbers<[1], [0], [0], [1], [0, 0, 1, 1], [], []>} : vector<16x2xf32>, vector<2x32xf32>, vector<16x32xf32> -> vector<16x32xf32>
    %13 = arith.addf %9, %12 : vector<16x32xf32>
    %c2 = arith.constant 2 : index
    %c0_9 = arith.constant 0 : index
    %c0_10 = arith.constant 0 : index
    %14 = vector.load %arg2[%c2, %c0_9, %c0_10] : memref<3x2x32xf32, #tpu.memory_space<vmem>>, vector<1x2x32xf32>
    %15 = vector.shape_cast %14 : vector<1x2x32xf32> to vector<2x32xf32>
    %cst_11 = arith.constant dense<0.000000e+00> : vector<16x32xf32>
    %16 = tpu.matmul %6, %15, %cst_11 {dimension_numbers = #tpu.dot_dimension_numbers<[1], [0], [0], [1], [0, 0, 1, 1], [], []>} : vector<16x2xf32>, vector<2x32xf32>, vector<16x32xf32> -> vector<16x32xf32>
    %17 = arith.addf %13, %16 : vector<16x32xf32>
    %c0_12 = arith.constant 0 : index
    %c0_13 = arith.constant 0 : index
    %18 = vector.load %arg3[%c0_12, %c0_13] : memref<1x32xf32, #tpu.memory_space<vmem>>, vector<1x32xf32>
    %19 = vector.broadcast %18 : vector<1x32xf32> to vector<16x32xf32>
    %20 = arith.addf %17, %19 : vector<16x32xf32>
    %cst_14 = arith.constant 0.000000e+00 : f32
    %21 = vector.broadcast %cst_14 : f32 to vector<16x32xf32>
    %22 = arith.maximumf %20, %21 : vector<16x32xf32>
    %23 = arith.truncf %22 : vector<16x32xf32> to vector<16x32xbf16>
    %cst_15 = arith.constant 0.000000e+00 : bf16
    %24 = vector.broadcast %cst_15 : bf16 to vector<2x32xbf16>
    %25 = vector.extract_strided_slice %23 {offsets = [0, 0], sizes = [14, 32], strides = [1, 1]} : vector<16x32xbf16> to vector<14x32xbf16>
    %26 = tpu.concatenate %24, %25 in 0 : vector<2x32xbf16>, vector<14x32xbf16> -> vector<16x32xbf16>
    %27 = vector.extract_strided_slice %23 {offsets = [2, 0], sizes = [14, 32], strides = [1, 1]} : vector<16x32xbf16> to vector<14x32xbf16>
    %28 = tpu.concatenate %27, %24 in 0 : vector<14x32xbf16>, vector<2x32xbf16> -> vector<16x32xbf16>
    %c0_16 = arith.constant 0 : index
    %c0_17 = arith.constant 0 : index
    %c0_18 = arith.constant 0 : index
    %29 = vector.load %arg4[%c0_16, %c0_17, %c0_18] : memref<3x32x64xbf16, #tpu.memory_space<vmem>>, vector<1x32x64xbf16>
    %30 = vector.shape_cast %29 : vector<1x32x64xbf16> to vector<32x64xbf16>
    %cst_19 = arith.constant dense<0.000000e+00> : vector<16x64xf32>
    %31 = tpu.matmul %26, %30, %cst_19 {dimension_numbers = #tpu.dot_dimension_numbers<[1], [0], [0], [1], [0, 0, 1, 1], [], []>} : vector<16x32xbf16>, vector<32x64xbf16>, vector<16x64xf32> -> vector<16x64xf32>
    %c1_20 = arith.constant 1 : index
    %c0_21 = arith.constant 0 : index
    %c0_22 = arith.constant 0 : index
    %32 = vector.load %arg4[%c1_20, %c0_21, %c0_22] : memref<3x32x64xbf16, #tpu.memory_space<vmem>>, vector<1x32x64xbf16>
    %33 = vector.shape_cast %32 : vector<1x32x64xbf16> to vector<32x64xbf16>
    %cst_23 = arith.constant dense<0.000000e+00> : vector<16x64xf32>
    %34 = tpu.matmul %23, %33, %cst_23 {dimension_numbers = #tpu.dot_dimension_numbers<[1], [0], [0], [1], [0, 0, 1, 1], [], []>} : vector<16x32xbf16>, vector<32x64xbf16>, vector<16x64xf32> -> vector<16x64xf32>
    %35 = arith.addf %31, %34 : vector<16x64xf32>
    %c2_24 = arith.constant 2 : index
    %c0_25 = arith.constant 0 : index
    %c0_26 = arith.constant 0 : index
    %36 = vector.load %arg4[%c2_24, %c0_25, %c0_26] : memref<3x32x64xbf16, #tpu.memory_space<vmem>>, vector<1x32x64xbf16>
    %37 = vector.shape_cast %36 : vector<1x32x64xbf16> to vector<32x64xbf16>
    %cst_27 = arith.constant dense<0.000000e+00> : vector<16x64xf32>
    %38 = tpu.matmul %28, %37, %cst_27 {dimension_numbers = #tpu.dot_dimension_numbers<[1], [0], [0], [1], [0, 0, 1, 1], [], []>} : vector<16x32xbf16>, vector<32x64xbf16>, vector<16x64xf32> -> vector<16x64xf32>
    %39 = arith.addf %35, %38 : vector<16x64xf32>
    %c0_28 = arith.constant 0 : index
    %c0_29 = arith.constant 0 : index
    %40 = vector.load %arg5[%c0_28, %c0_29] : memref<1x64xf32, #tpu.memory_space<vmem>>, vector<1x64xf32>
    %41 = vector.broadcast %40 : vector<1x64xf32> to vector<16x64xf32>
    %42 = arith.addf %39, %41 : vector<16x64xf32>
    %cst_30 = arith.constant 0.000000e+00 : f32
    %43 = vector.broadcast %cst_30 : f32 to vector<16x64xf32>
    %44 = arith.maximumf %42, %43 : vector<16x64xf32>
    %45 = arith.truncf %44 : vector<16x64xf32> to vector<16x64xbf16>
    %cst_31 = arith.constant 0.000000e+00 : bf16
    %46 = vector.broadcast %cst_31 : bf16 to vector<2x64xbf16>
    %47 = vector.extract_strided_slice %45 {offsets = [0, 0], sizes = [14, 64], strides = [1, 1]} : vector<16x64xbf16> to vector<14x64xbf16>
    %48 = tpu.concatenate %46, %47 in 0 : vector<2x64xbf16>, vector<14x64xbf16> -> vector<16x64xbf16>
    %49 = vector.extract_strided_slice %45 {offsets = [2, 0], sizes = [14, 64], strides = [1, 1]} : vector<16x64xbf16> to vector<14x64xbf16>
    %50 = tpu.concatenate %49, %46 in 0 : vector<14x64xbf16>, vector<2x64xbf16> -> vector<16x64xbf16>
    %c0_32 = arith.constant 0 : index
    %c0_33 = arith.constant 0 : index
    %c0_34 = arith.constant 0 : index
    %51 = vector.load %arg6[%c0_32, %c0_33, %c0_34] : memref<3x64x128xbf16, #tpu.memory_space<vmem>>, vector<1x64x128xbf16>
    %52 = vector.shape_cast %51 : vector<1x64x128xbf16> to vector<64x128xbf16>
    %cst_35 = arith.constant dense<0.000000e+00> : vector<16x128xf32>
    %53 = tpu.matmul %48, %52, %cst_35 {dimension_numbers = #tpu.dot_dimension_numbers<[1], [0], [0], [1], [0, 0, 1, 1], [], []>} : vector<16x64xbf16>, vector<64x128xbf16>, vector<16x128xf32> -> vector<16x128xf32>
    %c1_36 = arith.constant 1 : index
    %c0_37 = arith.constant 0 : index
    %c0_38 = arith.constant 0 : index
    %54 = vector.load %arg6[%c1_36, %c0_37, %c0_38] : memref<3x64x128xbf16, #tpu.memory_space<vmem>>, vector<1x64x128xbf16>
    %55 = vector.shape_cast %54 : vector<1x64x128xbf16> to vector<64x128xbf16>
    %cst_39 = arith.constant dense<0.000000e+00> : vector<16x128xf32>
    %56 = tpu.matmul %45, %55, %cst_39 {dimension_numbers = #tpu.dot_dimension_numbers<[1], [0], [0], [1], [0, 0, 1, 1], [], []>} : vector<16x64xbf16>, vector<64x128xbf16>, vector<16x128xf32> -> vector<16x128xf32>
    %57 = arith.addf %53, %56 : vector<16x128xf32>
    %c2_40 = arith.constant 2 : index
    %c0_41 = arith.constant 0 : index
    %c0_42 = arith.constant 0 : index
    %58 = vector.load %arg6[%c2_40, %c0_41, %c0_42] : memref<3x64x128xbf16, #tpu.memory_space<vmem>>, vector<1x64x128xbf16>
    %59 = vector.shape_cast %58 : vector<1x64x128xbf16> to vector<64x128xbf16>
    %cst_43 = arith.constant dense<0.000000e+00> : vector<16x128xf32>
    %60 = tpu.matmul %50, %59, %cst_43 {dimension_numbers = #tpu.dot_dimension_numbers<[1], [0], [0], [1], [0, 0, 1, 1], [], []>} : vector<16x64xbf16>, vector<64x128xbf16>, vector<16x128xf32> -> vector<16x128xf32>
    %61 = arith.addf %57, %60 : vector<16x128xf32>
    %c0_44 = arith.constant 0 : index
    %c0_45 = arith.constant 0 : index
    %62 = vector.load %arg7[%c0_44, %c0_45] : memref<1x128xf32, #tpu.memory_space<vmem>>, vector<1x128xf32>
    %63 = vector.broadcast %62 : vector<1x128xf32> to vector<16x128xf32>
    %64 = arith.addf %61, %63 : vector<16x128xf32>
    %cst_46 = arith.constant 0.000000e+00 : f32
    %65 = vector.broadcast %cst_46 : f32 to vector<16x128xf32>
    %66 = arith.maximumf %64, %65 : vector<16x128xf32>
    %67 = arith.truncf %66 : vector<16x128xf32> to vector<16x128xbf16>
    %c0_47 = arith.constant 0 : index
    %c0_48 = arith.constant 0 : index
    %68 = vector.load %arg8[%c0_47, %c0_48] : memref<128x256xbf16, #tpu.memory_space<vmem>>, vector<128x256xbf16>
    %cst_49 = arith.constant dense<0.000000e+00> : vector<16x256xf32>
    %69 = tpu.matmul %67, %68, %cst_49 {dimension_numbers = #tpu.dot_dimension_numbers<[1], [0], [0], [1], [0, 0, 1, 1], [], []>} : vector<16x128xbf16>, vector<128x256xbf16>, vector<16x256xf32> -> vector<16x256xf32>
    %c0_50 = arith.constant 0 : index
    %c0_51 = arith.constant 0 : index
    %70 = vector.load %arg9[%c0_50, %c0_51] : memref<1x256xf32, #tpu.memory_space<vmem>>, vector<1x256xf32>
    %71 = vector.broadcast %70 : vector<1x256xf32> to vector<16x256xf32>
    %72 = arith.addf %69, %71 : vector<16x256xf32>
    %73 = vector.shape_cast %72 : vector<16x256xf32> to vector<8x2x256xf32>
    %74 = arith.truncf %73 : vector<8x2x256xf32> to vector<8x2x256xbf16>
    %c0_52 = arith.constant 0 : index
    %c0_53 = arith.constant 0 : index
    %c0_54 = arith.constant 0 : index
    %75 = vector.load %arg19[%c0_52, %c0_53, %c0_54] : memref<8x2x256xbf16, #tpu.memory_space<vmem>>, vector<8x2x256xbf16>
    tpu.vector_store %arg19[%c0_52, %c0_53, %c0_54], %74 {strides = array<i32>} : memref<8x2x256xbf16, #tpu.memory_space<vmem>>, vector<8x2x256xbf16>,
    %c0_55 = arith.constant 0 : index
    %c0_56 = arith.constant 0 : index
    %76 = vector.load %arg10[%c0_55, %c0_56] : memref<128x512xbf16, #tpu.memory_space<vmem>>, vector<128x512xbf16>
    %c0_57 = arith.constant 0 : index
    %c0_58 = arith.constant 0 : index
    %77 = vector.load %arg11[%c0_57, %c0_58] : memref<1x256xf32, #tpu.memory_space<vmem>>, vector<1x256xf32>
    %78 = vector.shape_cast %77 : vector<1x256xf32> to vector<1x256xf32>
    %79 = vector.broadcast %78 : vector<1x256xf32> to vector<2x256xf32>
    %80 = tpu.iota {dimensions = array<i32: 1>} : vector<2x128xi32>
    %c64_i32 = arith.constant 64 : i32
    %81 = vector.broadcast %c64_i32 : i32 to vector<2x128xi32>
    %82 = arith.cmpi slt, %80, %81 : vector<2x128xi32>
    %cst_59 = arith.constant 1.000000e+00 : f32
    %cst_60 = arith.constant 5.000000e-01 : f32
    %83 = vector.broadcast %cst_59 : f32 to vector<2x128xf32>
    %84 = vector.broadcast %cst_60 : f32 to vector<2x128xf32>
    %85 = arith.select %82, %83, %84 : vector<2x128xi1>, vector<2x128xf32>
    %cst_61 = arith.constant 0.000000e+00 : f32
    %cst_62 = arith.constant 5.000000e-01 : f32
    %86 = vector.broadcast %cst_61 : f32 to vector<2x128xf32>
    %87 = vector.broadcast %cst_62 : f32 to vector<2x128xf32>
    %88 = arith.select %82, %86, %87 : vector<2x128xi1>, vector<2x128xf32>
    %cst_63 = arith.constant 0.000000e+00 : f32
    %89 = vector.broadcast %cst_63 : f32 to vector<2x128xf32>
    %cst_64 = arith.constant 0.000000e+00 : f32
    %90 = vector.broadcast %cst_64 : f32 to vector<2x256xf32>
    %c0_i32 = arith.constant 0 : i32
    %91 = arith.index_cast %c0_i32 : i32 to index
    %c0_65 = arith.constant 0 : index
    %c0_66 = arith.constant 0 : index
    %92 = vector.load %arg19[%91, %c0_65, %c0_66] : memref<8x2x256xbf16, #tpu.memory_space<vmem>>, vector<1x2x256xbf16>
    %93 = vector.shape_cast %92 : vector<1x2x256xbf16> to vector<2x256xbf16>
    %94 = arith.extf %93 : vector<2x256xbf16> to vector<2x256xf32>
    %95 = arith.addf %94, %90 : vector<2x256xf32>
    %96 = vector.extract_strided_slice %95 {offsets = [0, 0], sizes = [2, 128], strides = [1, 1]} : vector<2x256xf32> to vector<2x128xf32>
    %97 = arith.negf %96 : vector<2x128xf32>
    %98 = math.exp %97 : vector<2x128xf32>
    %cst_67 = arith.constant 1.000000e+00 : f32
    %99 = vector.broadcast %cst_67 : f32 to vector<2x128xf32>
    %100 = arith.addf %99, %98 : vector<2x128xf32>
    %101 = arith.divf %99, %100 : vector<2x128xf32>
    %102 = vector.extract_strided_slice %95 {offsets = [0, 128], sizes = [2, 128], strides = [1, 1]} : vector<2x256xf32> to vector<2x128xf32>
    %103 = arith.mulf %102, %85 : vector<2x128xf32>
    %104 = math.tanh %103 : vector<2x128xf32>
    %105 = arith.mulf %104, %85 : vector<2x128xf32>
    %106 = arith.addf %105, %88 : vector<2x128xf32>
    %107 = arith.select %82, %106, %89 : vector<2x128xi1>, vector<2x128xf32>
    %108 = arith.mulf %101, %107 : vector<2x128xf32>
    %c64_i32_68 = arith.constant 64 : i32
    %109 = tpu.dynamic_rotate %108 by %c64_i32_68 dim 1 : vector<2x128xf32>, i32 -> vector<2x128xf32>
    %110 = arith.addf %108, %109 : vector<2x128xf32>
    %111 = math.tanh %110 : vector<2x128xf32>
    %112 = arith.mulf %106, %111 : vector<2x128xf32>
    %c64_i32_69 = arith.constant 64 : i32
    %113 = tpu.dynamic_rotate %112 by %c64_i32_69 dim 1 : vector<2x128xf32>, i32 -> vector<2x128xf32>
    %114 = arith.select %82, %113, %89 : vector<2x128xi1>, vector<2x128xf32>
    %115 = arith.truncf %114 : vector<2x128xf32> to vector<2x128xbf16>
    %cst_70 = arith.constant dense<0.000000e+00> : vector<2x512xf32>
    %116 = tpu.matmul %115, %76, %cst_70 {dimension_numbers = #tpu.dot_dimension_numbers<[1], [0], [0], [1], [0, 0, 1, 1], [], []>} : vector<2x128xbf16>, vector<128x512xbf16>, vector<2x512xf32> -> vector<2x512xf32>
    %117 = vector.extract_strided_slice %116 {offsets = [0, 0], sizes = [2, 256], strides = [1, 1]} : vector<2x512xf32> to vector<2x256xf32>
    %118 = arith.addf %117, %79 : vector<2x256xf32>
    %119 = vector.extract_strided_slice %118 {offsets = [0, 0], sizes = [2, 128], strides = [1, 1]} : vector<2x256xf32> to vector<2x128xf32>
    %120 = arith.negf %119 : vector<2x128xf32>
    %121 = math.exp %120 : vector<2x128xf32>
    %cst_71 = arith.constant 1.000000e+00 : f32
    %122 = vector.broadcast %cst_71 : f32 to vector<2x128xf32>
    %123 = arith.addf %122, %121 : vector<2x128xf32>
    %124 = arith.divf %122, %123 : vector<2x128xf32>
    %125 = vector.extract_strided_slice %118 {offsets = [0, 128], sizes = [2, 128], strides = [1, 1]} : vector<2x256xf32> to vector<2x128xf32>
    %126 = arith.mulf %125, %85 : vector<2x128xf32>
    %127 = math.tanh %126 : vector<2x128xf32>
    %128 = arith.mulf %127, %85 : vector<2x128xf32>
    %129 = arith.addf %128, %88 : vector<2x128xf32>
    %130 = arith.select %82, %129, %89 : vector<2x128xi1>, vector<2x128xf32>
    %131 = arith.mulf %124, %130 : vector<2x128xf32>
    %c64_i32_72 = arith.constant 64 : i32
    %132 = tpu.dynamic_rotate %131 by %c64_i32_72 dim 1 : vector<2x128xf32>, i32 -> vector<2x128xf32>
    %133 = arith.addf %131, %132 : vector<2x128xf32>
    %134 = math.tanh %133 : vector<2x128xf32>
    %135 = arith.mulf %129, %134 : vector<2x128xf32>
    %136 = vector.extract_strided_slice %116 {offsets = [0, 256], sizes = [2, 256], strides = [1, 1]} : vector<2x512xf32> to vector<2x256xf32>
    %c1_i32 = arith.constant 1 : i32
    %137 = arith.index_cast %c1_i32 : i32 to index
    %c0_73 = arith.constant 0 : index
    %c0_74 = arith.constant 0 : index
    %138 = vector.load %arg19[%137, %c0_73, %c0_74] : memref<8x2x256xbf16, #tpu.memory_space<vmem>>, vector<1x2x256xbf16>
    %139 = vector.shape_cast %138 : vector<1x2x256xbf16> to vector<2x256xbf16>
    %140 = arith.extf %139 : vector<2x256xbf16> to vector<2x256xf32>
    %141 = arith.addf %140, %136 : vector<2x256xf32>
    %142 = vector.extract_strided_slice %141 {offsets = [0, 0], sizes = [2, 128], strides = [1, 1]} : vector<2x256xf32> to vector<2x128xf32>
    %143 = arith.negf %142 : vector<2x128xf32>
    %144 = math.exp %143 : vector<2x128xf32>
    %cst_75 = arith.constant 1.000000e+00 : f32
    %145 = vector.broadcast %cst_75 : f32 to vector<2x128xf32>
    %146 = arith.addf %145, %144 : vector<2x128xf32>
    %147 = arith.divf %145, %146 : vector<2x128xf32>
    %148 = vector.extract_strided_slice %141 {offsets = [0, 128], sizes = [2, 128], strides = [1, 1]} : vector<2x256xf32> to vector<2x128xf32>
    %149 = arith.mulf %148, %85 : vector<2x128xf32>
    %150 = math.tanh %149 : vector<2x128xf32>
    %151 = arith.mulf %150, %85 : vector<2x128xf32>
    %152 = arith.addf %151, %88 : vector<2x128xf32>
    %153 = arith.select %82, %152, %110 : vector<2x128xi1>, vector<2x128xf32>
    %154 = arith.mulf %147, %153 : vector<2x128xf32>
    %c64_i32_76 = arith.constant 64 : i32
    %155 = tpu.dynamic_rotate %154 by %c64_i32_76 dim 1 : vector<2x128xf32>, i32 -> vector<2x128xf32>
    %156 = arith.addf %154, %155 : vector<2x128xf32>
    %157 = math.tanh %156 : vector<2x128xf32>
    %158 = arith.mulf %152, %157 : vector<2x128xf32>
    %c64_i32_77 = arith.constant 64 : i32
    %159 = tpu.dynamic_rotate %158 by %c64_i32_77 dim 1 : vector<2x128xf32>, i32 -> vector<2x128xf32>
    %160 = arith.select %82, %159, %135 : vector<2x128xi1>, vector<2x128xf32>
    %161 = arith.truncf %160 : vector<2x128xf32> to vector<2x128xbf16>
    %cst_78 = arith.constant dense<0.000000e+00> : vector<2x512xf32>
    %162 = tpu.matmul %161, %76, %cst_78 {dimension_numbers = #tpu.dot_dimension_numbers<[1], [0], [0], [1], [0, 0, 1, 1], [], []>} : vector<2x128xbf16>, vector<128x512xbf16>, vector<2x512xf32> -> vector<2x512xf32>
    %163 = vector.extract_strided_slice %162 {offsets = [0, 0], sizes = [2, 256], strides = [1, 1]} : vector<2x512xf32> to vector<2x256xf32>
    %164 = arith.addf %163, %79 : vector<2x256xf32>
    %165 = vector.extract_strided_slice %164 {offsets = [0, 0], sizes = [2, 128], strides = [1, 1]} : vector<2x256xf32> to vector<2x128xf32>
    %166 = arith.negf %165 : vector<2x128xf32>
    %167 = math.exp %166 : vector<2x128xf32>
    %cst_79 = arith.constant 1.000000e+00 : f32
    %168 = vector.broadcast %cst_79 : f32 to vector<2x128xf32>
    %169 = arith.addf %168, %167 : vector<2x128xf32>
    %170 = arith.divf %168, %169 : vector<2x128xf32>
    %171 = vector.extract_strided_slice %164 {offsets = [0, 128], sizes = [2, 128], strides = [1, 1]} : vector<2x256xf32> to vector<2x128xf32>
    %172 = arith.mulf %171, %85 : vector<2x128xf32>
    %173 = math.tanh %172 : vector<2x128xf32>
    %174 = arith.mulf %173, %85 : vector<2x128xf32>
    %175 = arith.addf %174, %88 : vector<2x128xf32>
    %176 = arith.select %82, %175, %133 : vector<2x128xi1>, vector<2x128xf32>
    %177 = arith.mulf %170, %176 : vector<2x128xf32>
    %c64_i32_80 = arith.constant 64 : i32
    %178 = tpu.dynamic_rotate %177 by %c64_i32_80 dim 1 : vector<2x128xf32>, i32 -> vector<2x128xf32>
    %179 = arith.addf %177, %178 : vector<2x128xf32>
    %180 = math.tanh %179 : vector<2x128xf32>
    %181 = arith.mulf %175, %180 : vector<2x128xf32>
    %182 = vector.extract_strided_slice %162 {offsets = [0, 256], sizes = [2, 256], strides = [1, 1]} : vector<2x512xf32> to vector<2x256xf32>
    %c2_i32 = arith.constant 2 : i32
    %183 = arith.index_cast %c2_i32 : i32 to index
    %c0_81 = arith.constant 0 : index
    %c0_82 = arith.constant 0 : index
    %184 = vector.load %arg19[%183, %c0_81, %c0_82] : memref<8x2x256xbf16, #tpu.memory_space<vmem>>, vector<1x2x256xbf16>
    %185 = vector.shape_cast %184 : vector<1x2x256xbf16> to vector<2x256xbf16>
    %186 = arith.extf %185 : vector<2x256xbf16> to vector<2x256xf32>
    %187 = arith.addf %186, %182 : vector<2x256xf32>
    %188 = vector.extract_strided_slice %187 {offsets = [0, 0], sizes = [2, 128], strides = [1, 1]} : vector<2x256xf32> to vector<2x128xf32>
    %189 = arith.negf %188 : vector<2x128xf32>
    %190 = math.exp %189 : vector<2x128xf32>
    %cst_83 = arith.constant 1.000000e+00 : f32
    %191 = vector.broadcast %cst_83 : f32 to vector<2x128xf32>
    %192 = arith.addf %191, %190 : vector<2x128xf32>
    %193 = arith.divf %191, %192 : vector<2x128xf32>
    %194 = vector.extract_strided_slice %187 {offsets = [0, 128], sizes = [2, 128], strides = [1, 1]} : vector<2x256xf32> to vector<2x128xf32>
    %195 = arith.mulf %194, %85 : vector<2x128xf32>
    %196 = math.tanh %195 : vector<2x128xf32>
    %197 = arith.mulf %196, %85 : vector<2x128xf32>
    %198 = arith.addf %197, %88 : vector<2x128xf32>
    %199 = arith.select %82, %198, %156 : vector<2x128xi1>, vector<2x128xf32>
    %200 = arith.mulf %193, %199 : vector<2x128xf32>
    %c64_i32_84 = arith.constant 64 : i32
    %201 = tpu.dynamic_rotate %200 by %c64_i32_84 dim 1 : vector<2x128xf32>, i32 -> vector<2x128xf32>
    %202 = arith.addf %200, %201 : vector<2x128xf32>
    %203 = math.tanh %202 : vector<2x128xf32>
    %204 = arith.mulf %198, %203 : vector<2x128xf32>
    %c64_i32_85 = arith.constant 64 : i32
    %205 = tpu.dynamic_rotate %204 by %c64_i32_85 dim 1 : vector<2x128xf32>, i32 -> vector<2x128xf32>
    %206 = arith.select %82, %205, %181 : vector<2x128xi1>, vector<2x128xf32>
    %207 = arith.truncf %206 : vector<2x128xf32> to vector<2x128xbf16>
    %cst_86 = arith.constant dense<0.000000e+00> : vector<2x512xf32>
    %208 = tpu.matmul %207, %76, %cst_86 {dimension_numbers = #tpu.dot_dimension_numbers<[1], [0], [0], [1], [0, 0, 1, 1], [], []>} : vector<2x128xbf16>, vector<128x512xbf16>, vector<2x512xf32> -> vector<2x512xf32>
    %209 = vector.extract_strided_slice %208 {offsets = [0, 0], sizes = [2, 256], strides = [1, 1]} : vector<2x512xf32> to vector<2x256xf32>
    %210 = arith.addf %209, %79 : vector<2x256xf32>
    %211 = vector.extract_strided_slice %210 {offsets = [0, 0], sizes = [2, 128], strides = [1, 1]} : vector<2x256xf32> to vector<2x128xf32>
    %212 = arith.negf %211 : vector<2x128xf32>
    %213 = math.exp %212 : vector<2x128xf32>
    %cst_87 = arith.constant 1.000000e+00 : f32
    %214 = vector.broadcast %cst_87 : f32 to vector<2x128xf32>
    %215 = arith.addf %214, %213 : vector<2x128xf32>
    %216 = arith.divf %214, %215 : vector<2x128xf32>
    %217 = vector.extract_strided_slice %210 {offsets = [0, 128], sizes = [2, 128], strides = [1, 1]} : vector<2x256xf32> to vector<2x128xf32>
    %218 = arith.mulf %217, %85 : vector<2x128xf32>
    %219 = math.tanh %218 : vector<2x128xf32>
    %220 = arith.mulf %219, %85 : vector<2x128xf32>
    %221 = arith.addf %220, %88 : vector<2x128xf32>
    %222 = arith.select %82, %221, %179 : vector<2x128xi1>, vector<2x128xf32>
    %223 = arith.mulf %216, %222 : vector<2x128xf32>
    %c64_i32_88 = arith.constant 64 : i32
    %224 = tpu.dynamic_rotate %223 by %c64_i32_88 dim 1 : vector<2x128xf32>, i32 -> vector<2x128xf32>
    %225 = arith.addf %223, %224 : vector<2x128xf32>
    %226 = math.tanh %225 : vector<2x128xf32>
    %227 = arith.mulf %221, %226 : vector<2x128xf32>
    %228 = vector.extract_strided_slice %208 {offsets = [0, 256], sizes = [2, 256], strides = [1, 1]} : vector<2x512xf32> to vector<2x256xf32>
    %c3_i32 = arith.constant 3 : i32
    %229 = arith.index_cast %c3_i32 : i32 to index
    %c0_89 = arith.constant 0 : index
    %c0_90 = arith.constant 0 : index
    %230 = vector.load %arg19[%229, %c0_89, %c0_90] : memref<8x2x256xbf16, #tpu.memory_space<vmem>>, vector<1x2x256xbf16>
    %231 = vector.shape_cast %230 : vector<1x2x256xbf16> to vector<2x256xbf16>
    %232 = arith.extf %231 : vector<2x256xbf16> to vector<2x256xf32>
    %233 = arith.addf %232, %228 : vector<2x256xf32>
    %234 = vector.extract_strided_slice %233 {offsets = [0, 0], sizes = [2, 128], strides = [1, 1]} : vector<2x256xf32> to vector<2x128xf32>
    %235 = arith.negf %234 : vector<2x128xf32>
    %236 = math.exp %235 : vector<2x128xf32>
    %cst_91 = arith.constant 1.000000e+00 : f32
    %237 = vector.broadcast %cst_91 : f32 to vector<2x128xf32>
    %238 = arith.addf %237, %236 : vector<2x128xf32>
    %239 = arith.divf %237, %238 : vector<2x128xf32>
    %240 = vector.extract_strided_slice %233 {offsets = [0, 128], sizes = [2, 128], strides = [1, 1]} : vector<2x256xf32> to vector<2x128xf32>
    %241 = arith.mulf %240, %85 : vector<2x128xf32>
    %242 = math.tanh %241 : vector<2x128xf32>
    %243 = arith.mulf %242, %85 : vector<2x128xf32>
    %244 = arith.addf %243, %88 : vector<2x128xf32>
    %245 = arith.select %82, %244, %202 : vector<2x128xi1>, vector<2x128xf32>
    %246 = arith.mulf %239, %245 : vector<2x128xf32>
    %c64_i32_92 = arith.constant 64 : i32
    %247 = tpu.dynamic_rotate %246 by %c64_i32_92 dim 1 : vector<2x128xf32>, i32 -> vector<2x128xf32>
    %248 = arith.addf %246, %247 : vector<2x128xf32>
    %249 = math.tanh %248 : vector<2x128xf32>
    %250 = arith.mulf %244, %249 : vector<2x128xf32>
    %c64_i32_93 = arith.constant 64 : i32
    %251 = tpu.dynamic_rotate %250 by %c64_i32_93 dim 1 : vector<2x128xf32>, i32 -> vector<2x128xf32>
    %252 = arith.select %82, %251, %227 : vector<2x128xi1>, vector<2x128xf32>
    %253 = arith.truncf %252 : vector<2x128xf32> to vector<2x128xbf16>
    %cst_94 = arith.constant dense<0.000000e+00> : vector<2x512xf32>
    %254 = tpu.matmul %253, %76, %cst_94 {dimension_numbers = #tpu.dot_dimension_numbers<[1], [0], [0], [1], [0, 0, 1, 1], [], []>} : vector<2x128xbf16>, vector<128x512xbf16>, vector<2x512xf32> -> vector<2x512xf32>
    %255 = vector.extract_strided_slice %254 {offsets = [0, 0], sizes = [2, 256], strides = [1, 1]} : vector<2x512xf32> to vector<2x256xf32>
    %256 = arith.addf %255, %79 : vector<2x256xf32>
    %257 = vector.extract_strided_slice %256 {offsets = [0, 0], sizes = [2, 128], strides = [1, 1]} : vector<2x256xf32> to vector<2x128xf32>
    %258 = arith.negf %257 : vector<2x128xf32>
    %259 = math.exp %258 : vector<2x128xf32>
    %cst_95 = arith.constant 1.000000e+00 : f32
    %260 = vector.broadcast %cst_95 : f32 to vector<2x128xf32>
    %261 = arith.addf %260, %259 : vector<2x128xf32>
    %262 = arith.divf %260, %261 : vector<2x128xf32>
    %263 = vector.extract_strided_slice %256 {offsets = [0, 128], sizes = [2, 128], strides = [1, 1]} : vector<2x256xf32> to vector<2x128xf32>
    %264 = arith.mulf %263, %85 : vector<2x128xf32>
    %265 = math.tanh %264 : vector<2x128xf32>
    %266 = arith.mulf %265, %85 : vector<2x128xf32>
    %267 = arith.addf %266, %88 : vector<2x128xf32>
    %268 = arith.select %82, %267, %225 : vector<2x128xi1>, vector<2x128xf32>
    %269 = arith.mulf %262, %268 : vector<2x128xf32>
    %c64_i32_96 = arith.constant 64 : i32
    %270 = tpu.dynamic_rotate %269 by %c64_i32_96 dim 1 : vector<2x128xf32>, i32 -> vector<2x128xf32>
    %271 = arith.addf %269, %270 : vector<2x128xf32>
    %272 = math.tanh %271 : vector<2x128xf32>
    %273 = arith.mulf %267, %272 : vector<2x128xf32>
    %274 = vector.extract_strided_slice %254 {offsets = [0, 256], sizes = [2, 256], strides = [1, 1]} : vector<2x512xf32> to vector<2x256xf32>
    %c4_i32 = arith.constant 4 : i32
    %275 = arith.index_cast %c4_i32 : i32 to index
    %c0_97 = arith.constant 0 : index
    %c0_98 = arith.constant 0 : index
    %276 = vector.load %arg19[%275, %c0_97, %c0_98] : memref<8x2x256xbf16, #tpu.memory_space<vmem>>, vector<1x2x256xbf16>
    %277 = vector.shape_cast %276 : vector<1x2x256xbf16> to vector<2x256xbf16>
    %278 = arith.extf %277 : vector<2x256xbf16> to vector<2x256xf32>
    %279 = arith.addf %278, %274 : vector<2x256xf32>
    %280 = vector.extract_strided_slice %279 {offsets = [0, 0], sizes = [2, 128], strides = [1, 1]} : vector<2x256xf32> to vector<2x128xf32>
    %281 = arith.negf %280 : vector<2x128xf32>
    %282 = math.exp %281 : vector<2x128xf32>
    %cst_99 = arith.constant 1.000000e+00 : f32
    %283 = vector.broadcast %cst_99 : f32 to vector<2x128xf32>
    %284 = arith.addf %283, %282 : vector<2x128xf32>
    %285 = arith.divf %283, %284 : vector<2x128xf32>
    %286 = vector.extract_strided_slice %279 {offsets = [0, 128], sizes = [2, 128], strides = [1, 1]} : vector<2x256xf32> to vector<2x128xf32>
    %287 = arith.mulf %286, %85 : vector<2x128xf32>
    %288 = math.tanh %287 : vector<2x128xf32>
    %289 = arith.mulf %288, %85 : vector<2x128xf32>
    %290 = arith.addf %289, %88 : vector<2x128xf32>
    %291 = arith.select %82, %290, %248 : vector<2x128xi1>, vector<2x128xf32>
    %292 = arith.mulf %285, %291 : vector<2x128xf32>
    %c64_i32_100 = arith.constant 64 : i32
    %293 = tpu.dynamic_rotate %292 by %c64_i32_100 dim 1 : vector<2x128xf32>, i32 -> vector<2x128xf32>
    %294 = arith.addf %292, %293 : vector<2x128xf32>
    %295 = math.tanh %294 : vector<2x128xf32>
    %296 = arith.mulf %290, %295 : vector<2x128xf32>
    %c64_i32_101 = arith.constant 64 : i32
    %297 = tpu.dynamic_rotate %296 by %c64_i32_101 dim 1 : vector<2x128xf32>, i32 -> vector<2x128xf32>
    %298 = arith.select %82, %297, %273 : vector<2x128xi1>, vector<2x128xf32>
    %299 = arith.truncf %298 : vector<2x128xf32> to vector<2x128xbf16>
    %cst_102 = arith.constant dense<0.000000e+00> : vector<2x512xf32>
    %300 = tpu.matmul %299, %76, %cst_102 {dimension_numbers = #tpu.dot_dimension_numbers<[1], [0], [0], [1], [0, 0, 1, 1], [], []>} : vector<2x128xbf16>, vector<128x512xbf16>, vector<2x512xf32> -> vector<2x512xf32>
    %301 = vector.extract_strided_slice %300 {offsets = [0, 0], sizes = [2, 256], strides = [1, 1]} : vector<2x512xf32> to vector<2x256xf32>
    %302 = arith.addf %301, %79 : vector<2x256xf32>
    %303 = vector.extract_strided_slice %302 {offsets = [0, 0], sizes = [2, 128], strides = [1, 1]} : vector<2x256xf32> to vector<2x128xf32>
    %304 = arith.negf %303 : vector<2x128xf32>
    %305 = math.exp %304 : vector<2x128xf32>
    %cst_103 = arith.constant 1.000000e+00 : f32
    %306 = vector.broadcast %cst_103 : f32 to vector<2x128xf32>
    %307 = arith.addf %306, %305 : vector<2x128xf32>
    %308 = arith.divf %306, %307 : vector<2x128xf32>
    %309 = vector.extract_strided_slice %302 {offsets = [0, 128], sizes = [2, 128], strides = [1, 1]} : vector<2x256xf32> to vector<2x128xf32>
    %310 = arith.mulf %309, %85 : vector<2x128xf32>
    %311 = math.tanh %310 : vector<2x128xf32>
    %312 = arith.mulf %311, %85 : vector<2x128xf32>
    %313 = arith.addf %312, %88 : vector<2x128xf32>
    %314 = arith.select %82, %313, %271 : vector<2x128xi1>, vector<2x128xf32>
    %315 = arith.mulf %308, %314 : vector<2x128xf32>
    %c64_i32_104 = arith.constant 64 : i32
    %316 = tpu.dynamic_rotate %315 by %c64_i32_104 dim 1 : vector<2x128xf32>, i32 -> vector<2x128xf32>
    %317 = arith.addf %315, %316 : vector<2x128xf32>
    %318 = math.tanh %317 : vector<2x128xf32>
    %319 = arith.mulf %313, %318 : vector<2x128xf32>
    %320 = vector.extract_strided_slice %300 {offsets = [0, 256], sizes = [2, 256], strides = [1, 1]} : vector<2x512xf32> to vector<2x256xf32>
    %c5_i32 = arith.constant 5 : i32
    %321 = arith.index_cast %c5_i32 : i32 to index
    %c0_105 = arith.constant 0 : index
    %c0_106 = arith.constant 0 : index
    %322 = vector.load %arg19[%321, %c0_105, %c0_106] : memref<8x2x256xbf16, #tpu.memory_space<vmem>>, vector<1x2x256xbf16>
    %323 = vector.shape_cast %322 : vector<1x2x256xbf16> to vector<2x256xbf16>
    %324 = arith.extf %323 : vector<2x256xbf16> to vector<2x256xf32>
    %325 = arith.addf %324, %320 : vector<2x256xf32>
    %326 = vector.extract_strided_slice %325 {offsets = [0, 0], sizes = [2, 128], strides = [1, 1]} : vector<2x256xf32> to vector<2x128xf32>
    %327 = arith.negf %326 : vector<2x128xf32>
    %328 = math.exp %327 : vector<2x128xf32>
    %cst_107 = arith.constant 1.000000e+00 : f32
    %329 = vector.broadcast %cst_107 : f32 to vector<2x128xf32>
    %330 = arith.addf %329, %328 : vector<2x128xf32>
    %331 = arith.divf %329, %330 : vector<2x128xf32>
    %332 = vector.extract_strided_slice %325 {offsets = [0, 128], sizes = [2, 128], strides = [1, 1]} : vector<2x256xf32> to vector<2x128xf32>
    %333 = arith.mulf %332, %85 : vector<2x128xf32>
    %334 = math.tanh %333 : vector<2x128xf32>
    %335 = arith.mulf %334, %85 : vector<2x128xf32>
    %336 = arith.addf %335, %88 : vector<2x128xf32>
    %337 = arith.select %82, %336, %294 : vector<2x128xi1>, vector<2x128xf32>
    %338 = arith.mulf %331, %337 : vector<2x128xf32>
    %c64_i32_108 = arith.constant 64 : i32
    %339 = tpu.dynamic_rotate %338 by %c64_i32_108 dim 1 : vector<2x128xf32>, i32 -> vector<2x128xf32>
    %340 = arith.addf %338, %339 : vector<2x128xf32>
    %341 = math.tanh %340 : vector<2x128xf32>
    %342 = arith.mulf %336, %341 : vector<2x128xf32>
    %c64_i32_109 = arith.constant 64 : i32
    %343 = tpu.dynamic_rotate %342 by %c64_i32_109 dim 1 : vector<2x128xf32>, i32 -> vector<2x128xf32>
    %344 = arith.select %82, %343, %319 : vector<2x128xi1>, vector<2x128xf32>
    %345 = arith.truncf %344 : vector<2x128xf32> to vector<2x128xbf16>
    %cst_110 = arith.constant dense<0.000000e+00> : vector<2x512xf32>
    %346 = tpu.matmul %345, %76, %cst_110 {dimension_numbers = #tpu.dot_dimension_numbers<[1], [0], [0], [1], [0, 0, 1, 1], [], []>} : vector<2x128xbf16>, vector<128x512xbf16>, vector<2x512xf32> -> vector<2x512xf32>
    %347 = vector.extract_strided_slice %346 {offsets = [0, 0], sizes = [2, 256], strides = [1, 1]} : vector<2x512xf32> to vector<2x256xf32>
    %348 = arith.addf %347, %79 : vector<2x256xf32>
    %349 = vector.extract_strided_slice %348 {offsets = [0, 0], sizes = [2, 128], strides = [1, 1]} : vector<2x256xf32> to vector<2x128xf32>
    %350 = arith.negf %349 : vector<2x128xf32>
    %351 = math.exp %350 : vector<2x128xf32>
    %cst_111 = arith.constant 1.000000e+00 : f32
    %352 = vector.broadcast %cst_111 : f32 to vector<2x128xf32>
    %353 = arith.addf %352, %351 : vector<2x128xf32>
    %354 = arith.divf %352, %353 : vector<2x128xf32>
    %355 = vector.extract_strided_slice %348 {offsets = [0, 128], sizes = [2, 128], strides = [1, 1]} : vector<2x256xf32> to vector<2x128xf32>
    %356 = arith.mulf %355, %85 : vector<2x128xf32>
    %357 = math.tanh %356 : vector<2x128xf32>
    %358 = arith.mulf %357, %85 : vector<2x128xf32>
    %359 = arith.addf %358, %88 : vector<2x128xf32>
    %360 = arith.select %82, %359, %317 : vector<2x128xi1>, vector<2x128xf32>
    %361 = arith.mulf %354, %360 : vector<2x128xf32>
    %c64_i32_112 = arith.constant 64 : i32
    %362 = tpu.dynamic_rotate %361 by %c64_i32_112 dim 1 : vector<2x128xf32>, i32 -> vector<2x128xf32>
    %363 = arith.addf %361, %362 : vector<2x128xf32>
    %364 = math.tanh %363 : vector<2x128xf32>
    %365 = arith.mulf %359, %364 : vector<2x128xf32>
    %366 = vector.extract_strided_slice %346 {offsets = [0, 256], sizes = [2, 256], strides = [1, 1]} : vector<2x512xf32> to vector<2x256xf32>
    %c6_i32 = arith.constant 6 : i32
    %367 = arith.index_cast %c6_i32 : i32 to index
    %c0_113 = arith.constant 0 : index
    %c0_114 = arith.constant 0 : index
    %368 = vector.load %arg19[%367, %c0_113, %c0_114] : memref<8x2x256xbf16, #tpu.memory_space<vmem>>, vector<1x2x256xbf16>
    %369 = vector.shape_cast %368 : vector<1x2x256xbf16> to vector<2x256xbf16>
    %370 = arith.extf %369 : vector<2x256xbf16> to vector<2x256xf32>
    %371 = arith.addf %370, %366 : vector<2x256xf32>
    %372 = vector.extract_strided_slice %371 {offsets = [0, 0], sizes = [2, 128], strides = [1, 1]} : vector<2x256xf32> to vector<2x128xf32>
    %373 = arith.negf %372 : vector<2x128xf32>
    %374 = math.exp %373 : vector<2x128xf32>
    %cst_115 = arith.constant 1.000000e+00 : f32
    %375 = vector.broadcast %cst_115 : f32 to vector<2x128xf32>
    %376 = arith.addf %375, %374 : vector<2x128xf32>
    %377 = arith.divf %375, %376 : vector<2x128xf32>
    %378 = vector.extract_strided_slice %371 {offsets = [0, 128], sizes = [2, 128], strides = [1, 1]} : vector<2x256xf32> to vector<2x128xf32>
    %379 = arith.mulf %378, %85 : vector<2x128xf32>
    %380 = math.tanh %379 : vector<2x128xf32>
    %381 = arith.mulf %380, %85 : vector<2x128xf32>
    %382 = arith.addf %381, %88 : vector<2x128xf32>
    %383 = arith.select %82, %382, %340 : vector<2x128xi1>, vector<2x128xf32>
    %384 = arith.mulf %377, %383 : vector<2x128xf32>
    %c64_i32_116 = arith.constant 64 : i32
    %385 = tpu.dynamic_rotate %384 by %c64_i32_116 dim 1 : vector<2x128xf32>, i32 -> vector<2x128xf32>
    %386 = arith.addf %384, %385 : vector<2x128xf32>
    %387 = math.tanh %386 : vector<2x128xf32>
    %388 = arith.mulf %382, %387 : vector<2x128xf32>
    %c64_i32_117 = arith.constant 64 : i32
    %389 = tpu.dynamic_rotate %388 by %c64_i32_117 dim 1 : vector<2x128xf32>, i32 -> vector<2x128xf32>
    %390 = arith.select %82, %389, %365 : vector<2x128xi1>, vector<2x128xf32>
    %391 = arith.truncf %390 : vector<2x128xf32> to vector<2x128xbf16>
    %cst_118 = arith.constant dense<0.000000e+00> : vector<2x512xf32>
    %392 = tpu.matmul %391, %76, %cst_118 {dimension_numbers = #tpu.dot_dimension_numbers<[1], [0], [0], [1], [0, 0, 1, 1], [], []>} : vector<2x128xbf16>, vector<128x512xbf16>, vector<2x512xf32> -> vector<2x512xf32>
    %393 = vector.extract_strided_slice %392 {offsets = [0, 0], sizes = [2, 256], strides = [1, 1]} : vector<2x512xf32> to vector<2x256xf32>
    %394 = arith.addf %393, %79 : vector<2x256xf32>
    %395 = vector.extract_strided_slice %394 {offsets = [0, 0], sizes = [2, 128], strides = [1, 1]} : vector<2x256xf32> to vector<2x128xf32>
    %396 = arith.negf %395 : vector<2x128xf32>
    %397 = math.exp %396 : vector<2x128xf32>
    %cst_119 = arith.constant 1.000000e+00 : f32
    %398 = vector.broadcast %cst_119 : f32 to vector<2x128xf32>
    %399 = arith.addf %398, %397 : vector<2x128xf32>
    %400 = arith.divf %398, %399 : vector<2x128xf32>
    %401 = vector.extract_strided_slice %394 {offsets = [0, 128], sizes = [2, 128], strides = [1, 1]} : vector<2x256xf32> to vector<2x128xf32>
    %402 = arith.mulf %401, %85 : vector<2x128xf32>
    %403 = math.tanh %402 : vector<2x128xf32>
    %404 = arith.mulf %403, %85 : vector<2x128xf32>
    %405 = arith.addf %404, %88 : vector<2x128xf32>
    %406 = arith.select %82, %405, %363 : vector<2x128xi1>, vector<2x128xf32>
    %407 = arith.mulf %400, %406 : vector<2x128xf32>
    %c64_i32_120 = arith.constant 64 : i32
    %408 = tpu.dynamic_rotate %407 by %c64_i32_120 dim 1 : vector<2x128xf32>, i32 -> vector<2x128xf32>
    %409 = arith.addf %407, %408 : vector<2x128xf32>
    %410 = math.tanh %409 : vector<2x128xf32>
    %411 = arith.mulf %405, %410 : vector<2x128xf32>
    %412 = vector.extract_strided_slice %392 {offsets = [0, 256], sizes = [2, 256], strides = [1, 1]} : vector<2x512xf32> to vector<2x256xf32>
    %c7_i32 = arith.constant 7 : i32
    %413 = arith.index_cast %c7_i32 : i32 to index
    %c0_121 = arith.constant 0 : index
    %c0_122 = arith.constant 0 : index
    %414 = vector.load %arg19[%413, %c0_121, %c0_122] : memref<8x2x256xbf16, #tpu.memory_space<vmem>>, vector<1x2x256xbf16>
    %415 = vector.shape_cast %414 : vector<1x2x256xbf16> to vector<2x256xbf16>
    %416 = arith.extf %415 : vector<2x256xbf16> to vector<2x256xf32>
    %417 = arith.addf %416, %412 : vector<2x256xf32>
    %418 = vector.extract_strided_slice %417 {offsets = [0, 0], sizes = [2, 128], strides = [1, 1]} : vector<2x256xf32> to vector<2x128xf32>
    %419 = arith.negf %418 : vector<2x128xf32>
    %420 = math.exp %419 : vector<2x128xf32>
    %cst_123 = arith.constant 1.000000e+00 : f32
    %421 = vector.broadcast %cst_123 : f32 to vector<2x128xf32>
    %422 = arith.addf %421, %420 : vector<2x128xf32>
    %423 = arith.divf %421, %422 : vector<2x128xf32>
    %424 = vector.extract_strided_slice %417 {offsets = [0, 128], sizes = [2, 128], strides = [1, 1]} : vector<2x256xf32> to vector<2x128xf32>
    %425 = arith.mulf %424, %85 : vector<2x128xf32>
    %426 = math.tanh %425 : vector<2x128xf32>
    %427 = arith.mulf %426, %85 : vector<2x128xf32>
    %428 = arith.addf %427, %88 : vector<2x128xf32>
    %429 = arith.select %82, %428, %386 : vector<2x128xi1>, vector<2x128xf32>
    %430 = arith.mulf %423, %429 : vector<2x128xf32>
    %c64_i32_124 = arith.constant 64 : i32
    %431 = tpu.dynamic_rotate %430 by %c64_i32_124 dim 1 : vector<2x128xf32>, i32 -> vector<2x128xf32>
    %432 = arith.addf %430, %431 : vector<2x128xf32>
    %433 = math.tanh %432 : vector<2x128xf32>
    %434 = arith.mulf %428, %433 : vector<2x128xf32>
    %c64_i32_125 = arith.constant 64 : i32
    %435 = tpu.dynamic_rotate %434 by %c64_i32_125 dim 1 : vector<2x128xf32>, i32 -> vector<2x128xf32>
    %436 = arith.select %82, %435, %411 : vector<2x128xi1>, vector<2x128xf32>
    %437 = arith.truncf %436 : vector<2x128xf32> to vector<2x128xbf16>
    %cst_126 = arith.constant dense<0.000000e+00> : vector<2x512xf32>
    %438 = tpu.matmul %437, %76, %cst_126 {dimension_numbers = #tpu.dot_dimension_numbers<[1], [0], [0], [1], [0, 0, 1, 1], [], []>} : vector<2x128xbf16>, vector<128x512xbf16>, vector<2x512xf32> -> vector<2x512xf32>
    %439 = vector.extract_strided_slice %438 {offsets = [0, 0], sizes = [2, 256], strides = [1, 1]} : vector<2x512xf32> to vector<2x256xf32>
    %440 = arith.addf %439, %79 : vector<2x256xf32>
    %441 = vector.extract_strided_slice %440 {offsets = [0, 0], sizes = [2, 128], strides = [1, 1]} : vector<2x256xf32> to vector<2x128xf32>
    %442 = arith.negf %441 : vector<2x128xf32>
    %443 = math.exp %442 : vector<2x128xf32>
    %cst_127 = arith.constant 1.000000e+00 : f32
    %444 = vector.broadcast %cst_127 : f32 to vector<2x128xf32>
    %445 = arith.addf %444, %443 : vector<2x128xf32>
    %446 = arith.divf %444, %445 : vector<2x128xf32>
    %447 = vector.extract_strided_slice %440 {offsets = [0, 128], sizes = [2, 128], strides = [1, 1]} : vector<2x256xf32> to vector<2x128xf32>
    %448 = arith.mulf %447, %85 : vector<2x128xf32>
    %449 = math.tanh %448 : vector<2x128xf32>
    %450 = arith.mulf %449, %85 : vector<2x128xf32>
    %451 = arith.addf %450, %88 : vector<2x128xf32>
    %452 = arith.select %82, %451, %409 : vector<2x128xi1>, vector<2x128xf32>
    %453 = arith.mulf %446, %452 : vector<2x128xf32>
    %c64_i32_128 = arith.constant 64 : i32
    %454 = tpu.dynamic_rotate %453 by %c64_i32_128 dim 1 : vector<2x128xf32>, i32 -> vector<2x128xf32>
    %455 = arith.addf %453, %454 : vector<2x128xf32>
    %456 = math.tanh %455 : vector<2x128xf32>
    %457 = arith.mulf %451, %456 : vector<2x128xf32>
    %458 = vector.extract_strided_slice %438 {offsets = [0, 256], sizes = [2, 256], strides = [1, 1]} : vector<2x512xf32> to vector<2x256xf32>
    %c8_i32 = arith.constant 8 : i32
    %459 = arith.truncf %457 : vector<2x128xf32> to vector<2x128xbf16>
    %c0_129 = arith.constant 0 : index
    %c0_130 = arith.constant 0 : index
    %460 = vector.load %arg12[%c0_129, %c0_130] : memref<128x128xbf16, #tpu.memory_space<vmem>>, vector<128x128xbf16>
    %cst_131 = arith.constant dense<0.000000e+00> : vector<2x128xf32>
    %461 = tpu.matmul %459, %460, %cst_131 {dimension_numbers = #tpu.dot_dimension_numbers<[1], [0], [0], [1], [0, 0, 1, 1], [], []>} : vector<2x128xbf16>, vector<128x128xbf16>, vector<2x128xf32> -> vector<2x128xf32>
    %c0_132 = arith.constant 0 : index
    %c0_133 = arith.constant 0 : index
    %462 = vector.load %arg13[%c0_132, %c0_133] : memref<1x128xf32, #tpu.memory_space<vmem>>, vector<1x128xf32>
    %463 = vector.broadcast %462 : vector<1x128xf32> to vector<2x128xf32>
    %464 = arith.addf %461, %463 : vector<2x128xf32>
    %cst_134 = arith.constant 0.000000e+00 : f32
    %465 = vector.broadcast %cst_134 : f32 to vector<2x128xf32>
    %466 = arith.maximumf %464, %465 : vector<2x128xf32>
    %467 = arith.truncf %466 : vector<2x128xf32> to vector<2x128xbf16>
    %c0_135 = arith.constant 0 : index
    %c0_136 = arith.constant 0 : index
    %468 = vector.load %arg14[%c0_135, %c0_136] : memref<128x64xbf16, #tpu.memory_space<vmem>>, vector<128x64xbf16>
    %cst_137 = arith.constant dense<0.000000e+00> : vector<2x64xf32>
    %469 = tpu.matmul %467, %468, %cst_137 {dimension_numbers = #tpu.dot_dimension_numbers<[1], [0], [0], [1], [0, 0, 1, 1], [], []>} : vector<2x128xbf16>, vector<128x64xbf16>, vector<2x64xf32> -> vector<2x64xf32>
    %c0_138 = arith.constant 0 : index
    %c0_139 = arith.constant 0 : index
    %470 = vector.load %arg15[%c0_138, %c0_139] : memref<1x64xf32, #tpu.memory_space<vmem>>, vector<1x64xf32>
    %471 = vector.broadcast %470 : vector<1x64xf32> to vector<2x64xf32>
    %472 = arith.addf %469, %471 : vector<2x64xf32>
    %cst_140 = arith.constant 0.000000e+00 : f32
    %473 = vector.broadcast %cst_140 : f32 to vector<2x64xf32>
    %474 = arith.maximumf %472, %473 : vector<2x64xf32>
    %475 = arith.truncf %474 : vector<2x64xf32> to vector<2x64xbf16>
    %c0_141 = arith.constant 0 : index
    %c0_142 = arith.constant 0 : index
    %476 = vector.load %arg16[%c0_141, %c0_142] : memref<64x2xbf16, #tpu.memory_space<vmem>>, vector<64x2xbf16>
    %cst_143 = arith.constant dense<0.000000e+00> : vector<2x2xf32>
    %477 = tpu.matmul %475, %476, %cst_143 {dimension_numbers = #tpu.dot_dimension_numbers<[1], [0], [0], [1], [0, 0, 1, 1], [], []>} : vector<2x64xbf16>, vector<64x2xbf16>, vector<2x2xf32> -> vector<2x2xf32>
    %c0_144 = arith.constant 0 : index
    %c0_145 = arith.constant 0 : index
    %478 = vector.load %arg17[%c0_144, %c0_145] : memref<1x2xf32, #tpu.memory_space<vmem>>, vector<1x2xf32>
    %479 = vector.broadcast %478 : vector<1x2xf32> to vector<2x2xf32>
    %480 = arith.addf %477, %479 : vector<2x2xf32>
    %c0_146 = arith.constant 0 : index
    %c0_147 = arith.constant 0 : index
    %481 = vector.load %arg18[%c0_146, %c0_147] : memref<2x2xf32, #tpu.memory_space<vmem>>, vector<2x2xf32>
    tpu.vector_store %arg18[%c0_146, %c0_147], %480 {strides = array<i32>} : memref<2x2xf32, #tpu.memory_space<vmem>>, vector<2x2xf32>,
    return
  }
  func.func @transform_0(%arg0: i32) -> (i32, i32, i32) {
    %c0_i32 = arith.constant 0 : i32
    %c0_i32_0 = arith.constant 0 : i32
    %c0_i32_1 = arith.constant 0 : i32
    return %arg0, %c0_i32, %c0_i32_0 : i32, i32, i32
  }
  func.func @transform_1(%arg0: i32) -> (i32, i32, i32) {
    %c0_i32 = arith.constant 0 : i32
    %c0_i32_0 = arith.constant 0 : i32
    %c0_i32_1 = arith.constant 0 : i32
    %c0_i32_2 = arith.constant 0 : i32
    return %c0_i32, %c0_i32_0, %c0_i32_1 : i32, i32, i32
  }
  func.func @transform_2(%arg0: i32) -> (i32, i32) {
    %c0_i32 = arith.constant 0 : i32
    %c0_i32_0 = arith.constant 0 : i32
    %c0_i32_1 = arith.constant 0 : i32
    return %c0_i32, %c0_i32_0 : i32, i32
  }
  func.func @transform_3(%arg0: i32) -> (i32, i32, i32) {
    %c0_i32 = arith.constant 0 : i32
    %c0_i32_0 = arith.constant 0 : i32
    %c0_i32_1 = arith.constant 0 : i32
    %c0_i32_2 = arith.constant 0 : i32
    return %c0_i32, %c0_i32_0, %c0_i32_1 : i32, i32, i32
  }
  func.func @transform_4(%arg0: i32) -> (i32, i32) {
    %c0_i32 = arith.constant 0 : i32
    %c0_i32_0 = arith.constant 0 : i32
    %c0_i32_1 = arith.constant 0 : i32
    return %c0_i32, %c0_i32_0 : i32, i32
  }
  func.func @transform_5(%arg0: i32) -> (i32, i32, i32) {
    %c0_i32 = arith.constant 0 : i32
    %c0_i32_0 = arith.constant 0 : i32
    %c0_i32_1 = arith.constant 0 : i32
    %c0_i32_2 = arith.constant 0 : i32
    return %c0_i32, %c0_i32_0, %c0_i32_1 : i32, i32, i32
  }
  func.func @transform_6(%arg0: i32) -> (i32, i32) {
    %c0_i32 = arith.constant 0 : i32
    %c0_i32_0 = arith.constant 0 : i32
    %c0_i32_1 = arith.constant 0 : i32
    return %c0_i32, %c0_i32_0 : i32, i32
  }
  func.func @transform_7(%arg0: i32) -> (i32, i32) {
    %c0_i32 = arith.constant 0 : i32
    %c0_i32_0 = arith.constant 0 : i32
    %c0_i32_1 = arith.constant 0 : i32
    return %c0_i32, %c0_i32_0 : i32, i32
  }
  func.func @transform_8(%arg0: i32) -> (i32, i32) {
    %c0_i32 = arith.constant 0 : i32
    %c0_i32_0 = arith.constant 0 : i32
    %c0_i32_1 = arith.constant 0 : i32
    return %c0_i32, %c0_i32_0 : i32, i32
  }
  func.func @transform_9(%arg0: i32) -> (i32, i32) {
    %c0_i32 = arith.constant 0 : i32
    %c0_i32_0 = arith.constant 0 : i32
    %c0_i32_1 = arith.constant 0 : i32
    return %c0_i32, %c0_i32_0 : i32, i32
  }
  func.func @transform_10(%arg0: i32) -> (i32, i32) {
    %c0_i32 = arith.constant 0 : i32
    %c0_i32_0 = arith.constant 0 : i32
    %c0_i32_1 = arith.constant 0 : i32
    return %c0_i32, %c0_i32_0 : i32, i32
  }
  func.func @transform_11(%arg0: i32) -> (i32, i32) {
    %c0_i32 = arith.constant 0 : i32
    %c0_i32_0 = arith.constant 0 : i32
    %c0_i32_1 = arith.constant 0 : i32
    return %c0_i32, %c0_i32_0 : i32, i32
  }
  func.func @transform_12(%arg0: i32) -> (i32, i32) {
    %c0_i32 = arith.constant 0 : i32
    %c0_i32_0 = arith.constant 0 : i32
    %c0_i32_1 = arith.constant 0 : i32
    return %c0_i32, %c0_i32_0 : i32, i32
  }
  func.func @transform_13(%arg0: i32) -> (i32, i32) {
    %c0_i32 = arith.constant 0 : i32
    %c0_i32_0 = arith.constant 0 : i32
    %c0_i32_1 = arith.constant 0 : i32
    return %c0_i32, %c0_i32_0 : i32, i32
  }
  func.func @transform_14(%arg0: i32) -> (i32, i32) {
    %c0_i32 = arith.constant 0 : i32
    %c0_i32_0 = arith.constant 0 : i32
    %c0_i32_1 = arith.constant 0 : i32
    return %c0_i32, %c0_i32_0 : i32, i32
  }
  func.func @transform_15(%arg0: i32) -> (i32, i32) {
    %c0_i32 = arith.constant 0 : i32
    %c0_i32_0 = arith.constant 0 : i32
    %c0_i32_1 = arith.constant 0 : i32
    return %c0_i32, %c0_i32_0 : i32, i32
  }
  func.func @transform_16(%arg0: i32) -> (i32, i32) {
    %c0_i32 = arith.constant 0 : i32
    %c0_i32_0 = arith.constant 0 : i32
    %c0_i32_1 = arith.constant 0 : i32
    return %c0_i32, %c0_i32_0 : i32, i32
  }
  func.func @transform_17(%arg0: i32) -> (i32, i32) {
    %c0_i32 = arith.constant 0 : i32
    %c0_i32_0 = arith.constant 0 : i32
    return %arg0, %c0_i32 : i32, i32
  }
}

</mosaic_0001>

<llo_original>
// kernel: hybrid_forward.1
$region0: #{hybrid_forward.1}
  #allocation0 [shape = 'u32[]', space=smem, size = 0x4, offset = 0x4, fixed_abs, tag = 'smem constant byte address 0x4 - core index']
  #allocation1 [shape = 'u32[144,128]{1,0:T(1,128)}', space=vmem, size = 0x12000, scoped, tag = 'internal scratch']
  #allocation2 [shape = 'bf16[8,2,256]{2,1,0:T(2,128)(2,1)}', space=vmem, size = 0x2000, scoped, tag = 'scratch operand']
  %s0 = inlined_call_operand.vmem [shape: f32[1,16,2], index: 0, kind: input, shape index: {}]
  %s1 = inlined_call_operand.hbm [shape: f32[3,2,32], index: 1, kind: input, shape index: {}]
  %s2 = inlined_call_operand.vmem [shape: f32[1,32], index: 2, kind: input, shape index: {}]
  %s3 = inlined_call_operand.vmem [shape: bf16[3,32,64], index: 3, kind: input, shape index: {}]
  %s4 = inlined_call_operand.hbm [shape: f32[1,64], index: 4, kind: input, shape index: {}]
  %s5 = inlined_call_operand.hbm [shape: bf16[3,64,128], index: 5, kind: input, shape index: {}]
  %s6 = inlined_call_operand.hbm [shape: f32[1,128], index: 6, kind: input, shape index: {}]
  %s7 = inlined_call_operand.vmem [shape: bf16[128,256], index: 7, kind: input, shape index: {}]
  %s8 = inlined_call_operand.vmem [shape: f32[1,256], index: 8, kind: input, shape index: {}]
  %s9 = inlined_call_operand.hbm [shape: bf16[128,512], index: 9, kind: input, shape index: {}]
  %s10 = inlined_call_operand.vmem [shape: f32[1,256], index: 10, kind: input, shape index: {}]
  %s11 = inlined_call_operand.hbm [shape: bf16[128,128], index: 11, kind: input, shape index: {}]
  %s12 = inlined_call_operand.hbm [shape: f32[1,128], index: 12, kind: input, shape index: {}]
  %s13 = inlined_call_operand.vmem [shape: bf16[128,64], index: 13, kind: input, shape index: {}]
  %s14 = inlined_call_operand.hbm [shape: f32[1,64], index: 14, kind: input, shape index: {}]
  %s15 = inlined_call_operand.vmem [shape: bf16[64,2], index: 15, kind: input, shape index: {}]
  %s16 = inlined_call_operand.hbm [shape: f32[1,2], index: 16, kind: input, shape index: {}]
  %s17 = inlined_call_operand.hbm [shape: f32[2,2], index: 17, kind: output, shape index: {}]
  %s18 = sld [smem:[#allocation0]]
  $region114: #{hybrid_forward.1} parent=0
    _
  %s20 = ssub.s32 1, %s18
  %s21 = scalar_select 0, %s20, %s18
  $region1: #{hybrid_forward.1} parent=0
    #allocation3 [shape = 'u8[3072]{0}', space=vmem, size = 0xc00, scoped, tag = 'input window, operand 1, single buffered']
    #allocation4 [shape = 's32[1]{0}', space=sflag, size = 0x4, scoped, tag = 'scoped memory for hybrid_forward.1']
    #allocation5 [shape = 's32[1]{0}', space=sflag, size = 0x4, scoped, tag = 'scoped memory for hybrid_forward.1']
    #allocation6 [shape = 'u8[512]{0}', space=vmem, size = 0x400, scoped, tag = 'input window, operand 4, single buffered']
    #allocation7 [shape = 's32[1]{0}', space=sflag, size = 0x4, scoped, tag = 'scoped memory for hybrid_forward.1']
    #allocation8 [shape = 'u8[49152]{0}', space=vmem, size = 0xc000, scoped, tag = 'input window, operand 5, single buffered']
    #allocation9 [shape = 'u8[512]{0}', space=vmem, size = 0x400, scoped, tag = 'input window, operand 6, single buffered']
    #allocation10 [shape = 's32[1]{0}', space=sflag, size = 0x4, scoped, tag = 'scoped memory for hybrid_forward.1']
    #allocation11 [shape = 'u8[131072]{0}', space=vmem, size = 0x20000, scoped, tag = 'input window, operand 9, single buffered']
    #allocation12 [shape = 'u8[32768]{0}', space=vmem, size = 0x8000, scoped, tag = 'input window, operand 11, single buffered']
    #allocation13 [shape = 's32[1]{0}', space=sflag, size = 0x4, scoped, tag = 'scoped memory for hybrid_forward.1']
    #allocation14 [shape = 'u8[512]{0}', space=vmem, size = 0x400, scoped, tag = 'input window, operand 12, single buffered']
    #allocation15 [shape = 'u8[512]{0}', space=vmem, size = 0x400, scoped, tag = 'input window, operand 14, single buffered']
    #allocation16 [shape = 's32[1]{0}', space=sflag, size = 0x4, scoped, tag = 'scoped memory for hybrid_forward.1']
    #allocation17 [shape = 'u8[512]{0}', space=vmem, size = 0x400, scoped, tag = 'input window, operand 16, single buffered']
    #allocation18 [shape = 'u8[1024]{0}', space=vmem, size = 0x400, scoped, tag = 'output window, operand 0, single buffered']
    %22 = vsyncpa [#allocation4], 0
    %23 = vsyncpa [#allocation7], 0
    %24 = vsyncpa [#allocation10], 0
    %25 = vsyncpa [#allocation13], 0
    %26 = vsyncpa [#allocation16], 0
    %27 = vsyncpa [#allocation5], 0
    // Predicated region
    $region2: #{hybrid_forward.1} parent=1 // pred_check
      _
    $region3: #{hybrid_forward.1} parent=1 // pred_check_branch
      %29 = sbr.rel (0) target = $region5
    $region4: #{hybrid_forward.1} parent=1 // pred_region
      _
    $region5: #{hybrid_forward.1} parent=1 // pred_fallthru
      _
    // Predicated region
    $region6: #{hybrid_forward.1} parent=1 // pred_check
      _
    $region7: #{hybrid_forward.1} parent=1 // pred_check_branch
      %31 = sbr.rel (0) target = $region9
    $region8: #{hybrid_forward.1} parent=1 // pred_region
      %s33 = ssub.s32 96, 96
      %34 = vsyncadd [#allocation4], %s33
      %s35 = sshll.u32 [#allocation3], 4
      %s36 = int_to_ptr.vmem [resolvable:$true] %s35
      %41 = dma.hbm_to_vmem [thread:$0]  %s1, 96, %s36, [#allocation4], 32, 32, 2
    $region9: #{hybrid_forward.1} parent=1 // pred_fallthru
      _
    // Predicated region
    $region10: #{hybrid_forward.1} parent=1 // pred_check
      _
    $region11: #{hybrid_forward.1} parent=1 // pred_check_branch
      %43 = sbr.rel (0) target = $region13
    $region12: #{hybrid_forward.1} parent=1 // pred_region
      _
    $region13: #{hybrid_forward.1} parent=1 // pred_fallthru
      _
    // Predicated region
    $region14: #{hybrid_forward.1} parent=1 // pred_check
      _
    $region15: #{hybrid_forward.1} parent=1 // pred_check_branch
      %45 = sbr.rel (0) target = $region17
    $region16: #{hybrid_forward.1} parent=1 // pred_region
      _
    $region17: #{hybrid_forward.1} parent=1 // pred_fallthru
      _
    // Predicated region
    $region18: #{hybrid_forward.1} parent=1 // pred_check
      _
    $region19: #{hybrid_forward.1} parent=1 // pred_check_branch
      %47 = sbr.rel (0) target = $region21
    $region20: #{hybrid_forward.1} parent=1 // pred_region
      %s49 = ssub.s32 16, 16
      %50 = vsyncadd [#allocation7], %s49
      %s52 = sshll.u32 [#allocation6], 4
      %s53 = int_to_ptr.vmem [resolvable:$true] %s52
      %55 = dma.hbm_to_vmem [thread:$0]  %s4, 16, %s53, [#allocation7]
    $region21: #{hybrid_forward.1} parent=1 // pred_fallthru
      _
    // Predicated region
    $region22: #{hybrid_forward.1} parent=1 // pred_check
      _
    $region23: #{hybrid_forward.1} parent=1 // pred_check_branch
      %57 = sbr.rel (0) target = $region25
    $region24: #{hybrid_forward.1} parent=1 // pred_region
      %s59 = ssub.s32 1536, 1536
      %60 = vsyncadd [#allocation7], %s59
      %s61 = sshll.u32 [#allocation8], 4
      %s62 = int_to_ptr.vmem [resolvable:$true] %s61
      %67 = dma.hbm_to_vmem [thread:$0]  %s5, 1536, %s62, [#allocation7], 64, 64, 4
    $region25: #{hybrid_forward.1} parent=1 // pred_fallthru
      _
    // Predicated region
    $region26: #{hybrid_forward.1} parent=1 // pred_check
      _
    $region27: #{hybrid_forward.1} parent=1 // pred_check_branch
      %69 = sbr.rel (0) target = $region29
    $region28: #{hybrid_forward.1} parent=1 // pred_region
      %s71 = ssub.s32 16, 16
      %72 = vsyncadd [#allocation10], %s71
      %s74 = sshll.u32 [#allocation9], 4
      %s75 = int_to_ptr.vmem [resolvable:$true] %s74
      %77 = dma.hbm_to_vmem [thread:$0]  %s6, 16, %s75, [#allocation10]
    $region29: #{hybrid_forward.1} parent=1 // pred_fallthru
      _
    // Predicated region
    $region30: #{hybrid_forward.1} parent=1 // pred_check
      _
    $region31: #{hybrid_forward.1} parent=1 // pred_check_branch
      %79 = sbr.rel (0) target = $region33
    $region32: #{hybrid_forward.1} parent=1 // pred_region
      _
    $region33: #{hybrid_forward.1} parent=1 // pred_fallthru
      _
    // Predicated region
    $region34: #{hybrid_forward.1} parent=1 // pred_check
      _
    $region35: #{hybrid_forward.1} parent=1 // pred_check_branch
      %81 = sbr.rel (0) target = $region37
    $region36: #{hybrid_forward.1} parent=1 // pred_region
      _
    $region37: #{hybrid_forward.1} parent=1 // pred_fallthru
      _
    // Predicated region
    $region38: #{hybrid_forward.1} parent=1 // pred_check
      _
    $region39: #{hybrid_forward.1} parent=1 // pred_check_branch
      %83 = sbr.rel (0) target = $region41
    $region40: #{hybrid_forward.1} parent=1 // pred_region
      %s85 = ssub.s32 4096, 4096
      %86 = vsyncadd [#allocation10], %s85
      %s87 = sshll.u32 [#allocation11], 4
      %s88 = int_to_ptr.vmem [resolvable:$true] %s87
      %93 = dma.hbm_to_vmem [thread:$0]  %s9, 4096, %s88, [#allocation10], 256, 256, 16
    $region41: #{hybrid_forward.1} parent=1 // pred_fallthru
      _
    // Predicated region
    $region42: #{hybrid_forward.1} parent=1 // pred_check
      _
    $region43: #{hybrid_forward.1} parent=1 // pred_check_branch
      %95 = sbr.rel (0) target = $region45
    $region44: #{hybrid_forward.1} parent=1 // pred_region
      _
    $region45: #{hybrid_forward.1} parent=1 // pred_fallthru
      _
    // Predicated region
    $region46: #{hybrid_forward.1} parent=1 // pred_check
      _
    $region47: #{hybrid_forward.1} parent=1 // pred_check_branch
      %97 = sbr.rel (0) target = $region49
    $region48: #{hybrid_forward.1} parent=1 // pred_region
      %s99 = ssub.s32 1024, 1024
      %100 = vsyncadd [#allocation13], %s99
      %s101 = sshll.u32 [#allocation12], 4
      %s102 = int_to_ptr.vmem [resolvable:$true] %s101
      %107 = dma.hbm_to_vmem [thread:$0]  %s11, 1024, %s102, [#allocation13], 64, 64, 4
    $region49: #{hybrid_forward.1} parent=1 // pred_fallthru
      _
    // Predicated region
    $region50: #{hybrid_forward.1} parent=1 // pred_check
      _
    $region51: #{hybrid_forward.1} parent=1 // pred_check_branch
      %109 = sbr.rel (0) target = $region53
    $region52: #{hybrid_forward.1} parent=1 // pred_region
      %s111 = ssub.s32 16, 16
      %112 = vsyncadd [#allocation13], %s111
      %s114 = sshll.u32 [#allocation14], 4
      %s115 = int_to_ptr.vmem [resolvable:$true] %s114
      %117 = dma.hbm_to_vmem [thread:$0]  %s12, 16, %s115, [#allocation13]
    $region53: #{hybrid_forward.1} parent=1 // pred_fallthru
      _
    // Predicated region
    $region54: #{hybrid_forward.1} parent=1 // pred_check
      _
    $region55: #{hybrid_forward.1} parent=1 // pred_check_branch
      %119 = sbr.rel (0) target = $region57
    $region56: #{hybrid_forward.1} parent=1 // pred_region
      _
    $region57: #{hybrid_forward.1} parent=1 // pred_fallthru
      _
    // Predicated region
    $region58: #{hybrid_forward.1} parent=1 // pred_check
      _
    $region59: #{hybrid_forward.1} parent=1 // pred_check_branch
      %121 = sbr.rel (0) target = $region61
    $region60: #{hybrid_forward.1} parent=1 // pred_region
      %s123 = ssub.s32 16, 16
      %124 = vsyncadd [#allocation16], %s123
      %s126 = sshll.u32 [#allocation15], 4
      %s127 = int_to_ptr.vmem [resolvable:$true] %s126
      %129 = dma.hbm_to_vmem [thread:$0]  %s14, 16, %s127, [#allocation16]
    $region61: #{hybrid_forward.1} parent=1 // pred_fallthru
      _
    // Predicated region
    $region62: #{hybrid_forward.1} parent=1 // pred_check
      _
    $region63: #{hybrid_forward.1} parent=1 // pred_check_branch
      %131 = sbr.rel (0) target = $region65
    $region64: #{hybrid_forward.1} parent=1 // pred_region
      _
    $region65: #{hybrid_forward.1} parent=1 // pred_fallthru
      _
    // Predicated region
    $region66: #{hybrid_forward.1} parent=1 // pred_check
      _
    $region67: #{hybrid_forward.1} parent=1 // pred_check_branch
      %133 = sbr.rel (0) target = $region69
    $region68: #{hybrid_forward.1} parent=1 // pred_region
      %s135 = ssub.s32 16, 16
      %136 = vsyncadd [#allocation16], %s135
      %s138 = sshll.u32 [#allocation17], 4
      %s139 = int_to_ptr.vmem [resolvable:$true] %s138
      %141 = dma.hbm_to_vmem [thread:$0]  %s16, 16, %s139, [#allocation16]
    $region69: #{hybrid_forward.1} parent=1 // pred_fallthru
      _
    // Predicated region
    $region70: #{hybrid_forward.1} parent=1 // pred_check
      _
    $region71: #{hybrid_forward.1} parent=1 // pred_check_branch
      %143 = sbr.rel (0) target = $region73
    $region72: #{hybrid_forward.1} parent=1 // pred_region
      %144 = dma.done [#allocation4], 96
    $region73: #{hybrid_forward.1} parent=1 // pred_fallthru
      _
    // Predicated region
    $region74: #{hybrid_forward.1} parent=1 // pred_check
      _
    $region75: #{hybrid_forward.1} parent=1 // pred_check_branch
      %146 = sbr.rel (0) target = $region77
    $region76: #{hybrid_forward.1} parent=1 // pred_region
      %147 = dma.done [#allocation7], 16
    $region77: #{hybrid_forward.1} parent=1 // pred_fallthru
      _
    // Predicated region
    $region78: #{hybrid_forward.1} parent=1 // pred_check
      _
    $region79: #{hybrid_forward.1} parent=1 // pred_check_branch
      %149 = sbr.rel (0) target = $region81
    $region80: #{hybrid_forward.1} parent=1 // pred_region
      %150 = dma.done [#allocation7], 1536
    $region81: #{hybrid_forward.1} parent=1 // pred_fallthru
      _
    // Predicated region
    $region82: #{hybrid_forward.1} parent=1 // pred_check
      _
    $region83: #{hybrid_forward.1} parent=1 // pred_check_branch
      %152 = sbr.rel (0) target = $region85
    $region84: #{hybrid_forward.1} parent=1 // pred_region
      %153 = dma.done [#allocation10], 16
    $region85: #{hybrid_forward.1} parent=1 // pred_fallthru
      _
    // Predicated region
    $region86: #{hybrid_forward.1} parent=1 // pred_check
      _
    $region87: #{hybrid_forward.1} parent=1 // pred_check_branch
      %155 = sbr.rel (0) target = $region89
    $region88: #{hybrid_forward.1} parent=1 // pred_region
      %156 = dma.done [#allocation10], 4096
    $region89: #{hybrid_forward.1} parent=1 // pred_fallthru
      _
    // Predicated region
    $region90: #{hybrid_forward.1} parent=1 // pred_check
      _
    $region91: #{hybrid_forward.1} parent=1 // pred_check_branch
      %158 = sbr.rel (0) target = $region93
    $region92: #{hybrid_forward.1} parent=1 // pred_region
      %159 = dma.done [#allocation13], 1024
    $region93: #{hybrid_forward.1} parent=1 // pred_fallthru
      _
    // Predicated region
    $region94: #{hybrid_forward.1} parent=1 // pred_check
      _
    $region95: #{hybrid_forward.1} parent=1 // pred_check_branch
      %161 = sbr.rel (0) target = $region97
    $region96: #{hybrid_forward.1} parent=1 // pred_region
      %162 = dma.done [#allocation13], 16
    $region97: #{hybrid_forward.1} parent=1 // pred_fallthru
      _
    // Predicated region
    $region98: #{hybrid_forward.1} parent=1 // pred_check
      _
    $region99: #{hybrid_forward.1} parent=1 // pred_check_branch
      %164 = sbr.rel (0) target = $region101
    $region100: #{hybrid_forward.1} parent=1 // pred_region
      %165 = dma.done [#allocation16], 16
    $region101: #{hybrid_forward.1} parent=1 // pred_fallthru
      _
    // Predicated region
    $region102: #{hybrid_forward.1} parent=1 // pred_check
      _
    $region103: #{hybrid_forward.1} parent=1 // pred_check_branch
      %167 = sbr.rel (0) target = $region105
    $region104: #{hybrid_forward.1} parent=1 // pred_region
      %168 = dma.done [#allocation16], 16
    $region105: #{hybrid_forward.1} parent=1 // pred_fallthru
      _
    %v170 = vld [vmem:[%s0] sm:$0xff]
    %v171 = vld [vmem:[%s0 + $0x8] sm:$0xff]
    %vm174 = vcmask 1041408
    %v175 = vrot.slane %v170, 6
    %v176 = vrot.slane %v171, 6
    %v177 = vsel %vm174, %v175, %v176
    %v179 = vsel %vm174, 0.0, %v175
    %vm180 = vcmask 1045504
    %v181 = vrot.slane %v170, 2
    %v182 = vrot.slane %v171, 2
    %v183 = vsel %vm180, %v181, %v182
    %v185 = vsel %vm180, %v182, 0.0
    %v186 = vld [vmem:[#allocation3] sm:$0x3]
    %s187 = scalar_lea.vmem [#allocation3], 2
    %v188 = vld [vmem:[%s187] sm:$0x3]
    %vm189 = vcmask 15360
    %v190 = vsel %vm189, %v170, 0
    %v192 = vsel %vm189, %v171, 0
    %v195 = vsel %vm174, %v188, 0
    %197 = vmatprep.subr.mxu0 0.0
    %198 = vmatpush1.msra.mxu0 0.0
    %199 = vmatprep.subr.mxu0 0.0
    %200 = vmatpush1.msra.mxu0 0.0
    %201 = vmatprep.subr.mxu0 0.0
    %202 = vmatpush1.msra.mxu0 0.0
    %203 = vmatprep.subr.mxu0 0.0
    %204 = vmatpush1.msra.mxu0 0.0
    %205 = vmatprep.subr.mxu0 0.0
    %206 = vmatpush1.msra.mxu0 0.0
    %207 = vmatprep.subr.mxu0 0.0
    %208 = vmatpush1.msra.mxu0 0.0
    %209 = vmatprep.subr.mxu0 0.0
    %210 = vmatpush1.msra.mxu0 0.0
    %211 = vmatprep.subr.mxu0 0.0
    %212 = vmatpush1.msra.mxu0 0.0
    %213 = vmatprep.subr.mxu0 0.0
    %214 = vmatpush1.msra.mxu0 0.0
    %215 = vmatprep.subr.mxu0 0.0
    %216 = vmatpush1.msra.mxu0 0.0
    %217 = vmatprep.subr.mxu0 0.0
    %218 = vmatpush1.msra.mxu0 0.0
    %219 = vmatprep.subr.mxu0 0.0
    %220 = vmatpush1.msra.mxu0 0.0
    %221 = vmatprep.subr.mxu0 0.0
    %222 = vmatpush1.msra.mxu0 0.0
    %223 = vmatprep.subr.mxu0 0.0
    %224 = vmatpush1.msra.mxu0 0.0
    %225 = vmatprep.subr.mxu0 0.0
    %226 = vmatpush1.msra.mxu0 0.0
    %227 = vmatprep.subr.mxu0 0.0
    %228 = vmatpush1.msra.mxu0 %v195
    %229 = vmatprep.subr.mxu0 0.0
    %230 = vmatpush2.msra.mxu0 0.0
    %231 = vmatprep.subr.mxu0 0.0
    %232 = vmatpush2.msra.mxu0 0.0
    %233 = vmatprep.subr.mxu0 0.0
    %234 = vmatpush2.msra.mxu0 0.0
    %235 = vmatprep.subr.mxu0 0.0
    %236 = vmatpush2.msra.mxu0 0.0
    %237 = vmatprep.subr.mxu0 0.0
    %238 = vmatpush2.msra.mxu0 0.0
    %239 = vmatprep.subr.mxu0 0.0
    %240 = vmatpush2.msra.mxu0 0.0
    %241 = vmatprep.subr.mxu0 0.0
    %242 = vmatpush2.msra.mxu0 0.0
    %243 = vmatprep.subr.mxu0 0.0
    %244 = vmatpush2.msra.mxu0 0.0
    %245 = vmatprep.subr.mxu0 0.0
    %246 = vmatpush2.msra.mxu0 0.0
    %247 = vmatprep.subr.mxu0 0.0
    %248 = vmatpush2.msra.mxu0 0.0
    %249 = vmatprep.subr.mxu0 0.0
    %250 = vmatpush2.msra.mxu0 0.0
    %251 = vmatprep.subr.mxu0 0.0
    %252 = vmatpush2.msra.mxu0 0.0
    %253 = vmatprep.subr.mxu0 0.0
    %254 = vmatpush2.msra.mxu0 0.0
    %255 = vmatprep.subr.mxu0 0.0
    %256 = vmatpush2.msra.mxu0 0.0
    %257 = vmatprep.subr.mxu0 0.0
    %258 = vmatpush2.msra.mxu0 0.0
    %259 = vmatprep.subr.mxu0 0.0
    %260 = vmatpush2.msra.mxu0 0.0
    %261 = vmatprep.mubr.f32.mxu0 0.0
    %262 = vmatmul.mubr.f32.gmra.mxu0 %v190
    %v263 = vpop.f32.mrf.mxu0
    %v264 = vadd.f32 0.0, %v263
    %v265 = vpop.f32.mrf.mxu0
    %266 = vmatprep.mubr.f32.mxu0 0.0
    %267 = vmatmul.mubr.f32.gmra.mxu0 %v192
    %v268 = vpop.f32.mrf.mxu0
    %v269 = vadd.f32 0.0, %v268
    %v270 = vpop.f32.mrf.mxu0
    %271 = vdwg.mxu0
    %v273 = vsel %vm189, %v179, 0
    %v275 = vsel %vm189, %v177, 0
    %v278 = vsel %vm174, %v186, 0
    %280 = vmatprep.subr.mxu0 0.0
    %281 = vmatpush1.msra.mxu0 0.0
    %282 = vmatprep.subr.mxu0 0.0
    %283 = vmatpush1.msra.mxu0 0.0
    %284 = vmatprep.subr.mxu0 0.0
    %285 = vmatpush1.msra.mxu0 0.0
    %286 = vmatprep.subr.mxu0 0.0
    %287 = vmatpush1.msra.mxu0 0.0
    %288 = vmatprep.subr.mxu0 0.0
    %289 = vmatpush1.msra.mxu0 0.0
    %290 = vmatprep.subr.mxu0 0.0
    %291 = vmatpush1.msra.mxu0 0.0
    %292 = vmatprep.subr.mxu0 0.0
    %293 = vmatpush1.msra.mxu0 0.0
    %294 = vmatprep.subr.mxu0 0.0
    %295 = vmatpush1.msra.mxu0 0.0
    %296 = vmatprep.subr.mxu0 0.0
    %297 = vmatpush1.msra.mxu0 0.0
    %298 = vmatprep.subr.mxu0 0.0
    %299 = vmatpush1.msra.mxu0 0.0
    %300 = vmatprep.subr.mxu0 0.0
    %301 = vmatpush1.msra.mxu0 0.0
    %302 = vmatprep.subr.mxu0 0.0
    %303 = vmatpush1.msra.mxu0 0.0
    %304 = vmatprep.subr.mxu0 0.0
    %305 = vmatpush1.msra.mxu0 0.0
    %306 = vmatprep.subr.mxu0 0.0
    %307 = vmatpush1.msra.mxu0 0.0
    %308 = vmatprep.subr.mxu0 0.0
    %309 = vmatpush1.msra.mxu0 0.0
    %310 = vmatprep.subr.mxu0 0.0
    %311 = vmatpush1.msra.mxu0 %v278
    %312 = vmatprep.subr.mxu0 0.0
    %313 = vmatpush2.msra.mxu0 0.0
    %314 = vmatprep.subr.mxu0 0.0
    %315 = vmatpush2.msra.mxu0 0.0
    %316 = vmatprep.subr.mxu0 0.0
    %317 = vmatpush2.msra.mxu0 0.0
    %318 = vmatprep.subr.mxu0 0.0
    %319 = vmatpush2.msra.mxu0 0.0
    %320 = vmatprep.subr.mxu0 0.0
    %321 = vmatpush2.msra.mxu0 0.0
    %322 = vmatprep.subr.mxu0 0.0
    %323 = vmatpush2.msra.mxu0 0.0
    %324 = vmatprep.subr.mxu0 0.0
    %325 = vmatpush2.msra.mxu0 0.0
    %326 = vmatprep.subr.mxu0 0.0
    %327 = vmatpush2.msra.mxu0 0.0
    %328 = vmatprep.subr.mxu0 0.0
    %329 = vmatpush2.msra.mxu0 0.0
    %330 = vmatprep.subr.mxu0 0.0
    %331 = vmatpush2.msra.mxu0 0.0
    %332 = vmatprep.subr.mxu0 0.0
    %333 = vmatpush2.msra.mxu0 0.0
    %334 = vmatprep.subr.mxu0 0.0
    %335 = vmatpush2.msra.mxu0 0.0
    %336 = vmatprep.subr.mxu0 0.0
    %337 = vmatpush2.msra.mxu0 0.0
    %338 = vmatprep.subr.mxu0 0.0
    %339 = vmatpush2.msra.mxu0 0.0
    %340 = vmatprep.subr.mxu0 0.0
    %341 = vmatpush2.msra.mxu0 0.0
    %342 = vmatprep.subr.mxu0 0.0
    %343 = vmatpush2.msra.mxu0 0.0
    %344 = vmatprep.mubr.f32.mxu0 0.0
    %345 = vmatmul.mubr.f32.gmra.mxu0 %v273
    %v346 = vpop.f32.mrf.mxu0
    %v347 = vadd.f32 %v264, %v346
    %v348 = vpop.f32.mrf.mxu0
    %349 = vmatprep.mubr.f32.mxu0 0.0
    %350 = vmatmul.mubr.f32.gmra.mxu0 %v275
    %v351 = vpop.f32.mrf.mxu0
    %v352 = vadd.f32 %v269, %v351
    %v353 = vpop.f32.mrf.mxu0
    %354 = vdwg.mxu0
    %s355 = scalar_lea.vmem [#allocation3], 4
    %v356 = vld [vmem:[%s355] sm:$0x3]
    %v357 = vsel %vm189, %v183, 0
    %v360 = vsel %vm189, %v185, 0
    %v363 = vsel %vm174, %v356, 0
    %365 = vmatprep.subr.mxu0 0.0
    %366 = vmatpush1.msra.mxu0 0.0
    %367 = vmatprep.subr.mxu0 0.0
    %368 = vmatpush1.msra.mxu0 0.0
    %369 = vmatprep.subr.mxu0 0.0
    %370 = vmatpush1.msra.mxu0 0.0
    %371 = vmatprep.subr.mxu0 0.0
    %372 = vmatpush1.msra.mxu0 0.0
    %373 = vmatprep.subr.mxu0 0.0
    %374 = vmatpush1.msra.mxu0 0.0
    %375 = vmatprep.subr.mxu0 0.0
    %376 = vmatpush1.msra.mxu0 0.0
    %377 = vmatprep.subr.mxu0 0.0
    %378 = vmatpush1.msra.mxu0 0.0
    %379 = vmatprep.subr.mxu0 0.0
    %380 = vmatpush1.msra.mxu0 0.0
    %381 = vmatprep.subr.mxu0 0.0
    %382 = vmatpush1.msra.mxu0 0.0
    %383 = vmatprep.subr.mxu0 0.0
    %384 = vmatpush1.msra.mxu0 0.0
    %385 = vmatprep.subr.mxu0 0.0
    %386 = vmatpush1.msra.mxu0 0.0
    %387 = vmatprep.subr.mxu0 0.0
    %388 = vmatpush1.msra.mxu0 0.0
    %389 = vmatprep.subr.mxu0 0.0
    %390 = vmatpush1.msra.mxu0 0.0
    %391 = vmatprep.subr.mxu0 0.0
    %392 = vmatpush1.msra.mxu0 0.0
    %393 = vmatprep.subr.mxu0 0.0
    %394 = vmatpush1.msra.mxu0 0.0
    %395 = vmatprep.subr.mxu0 0.0
    %396 = vmatpush1.msra.mxu0 %v363
    %397 = vmatprep.subr.mxu0 0.0
    %398 = vmatpush2.msra.mxu0 0.0
    %399 = vmatprep.subr.mxu0 0.0
    %400 = vmatpush2.msra.mxu0 0.0
    %401 = vmatprep.subr.mxu0 0.0
    %402 = vmatpush2.msra.mxu0 0.0
    %403 = vmatprep.subr.mxu0 0.0
    %404 = vmatpush2.msra.mxu0 0.0
    %405 = vmatprep.subr.mxu0 0.0
    %406 = vmatpush2.msra.mxu0 0.0
    %407 = vmatprep.subr.mxu0 0.0
    %408 = vmatpush2.msra.mxu0 0.0
    %409 = vmatprep.subr.mxu0 0.0
    %410 = vmatpush2.msra.mxu0 0.0
    %411 = vmatprep.subr.mxu0 0.0
    %412 = vmatpush2.msra.mxu0 0.0
    %413 = vmatprep.subr.mxu0 0.0
    %414 = vmatpush2.msra.mxu0 0.0
    %415 = vmatprep.subr.mxu0 0.0
    %416 = vmatpush2.msra.mxu0 0.0
    %417 = vmatprep.subr.mxu0 0.0
    %418 = vmatpush2.msra.mxu0 0.0
    %419 = vmatprep.subr.mxu0 0.0
    %420 = vmatpush2.msra.mxu0 0.0
    %421 = vmatprep.subr.mxu0 0.0
    %422 = vmatpush2.msra.mxu0 0.0
    %423 = vmatprep.subr.mxu0 0.0
    %424 = vmatpush2.msra.mxu0 0.0
    %425 = vmatprep.subr.mxu0 0.0
    %426 = vmatpush2.msra.mxu0 0.0
    %427 = vmatprep.subr.mxu0 0.0
    %428 = vmatpush2.msra.mxu0 0.0
    %429 = vmatprep.mubr.f32.mxu0 0.0
    %430 = vmatmul.mubr.f32.gmra.mxu0 %v357
    %v431 = vpop.f32.mrf.mxu0
    %v432 = vadd.f32 0.0, %v431
    %v433 = vpop.f32.mrf.mxu0
    %434 = vmatprep.mubr.f32.mxu0 0.0
    %435 = vmatmul.mubr.f32.gmra.mxu0 %v360
    %v436 = vpop.f32.mrf.mxu0
    %v437 = vadd.f32 0.0, %v436
    %v438 = vpop.f32.mrf.mxu0
    %439 = vdwg.mxu0
    %v440 = vadd.f32 %v347, %v432
    %v441 = vadd.f32 %v352, %v437
    %v442 = vld [vmem:[%s2] sm:$0x1]
    %v444 = vlaneseq
    %v445 = vshrl.u32 %v444, 7
    %v446 = vsub.s32 0, %v445
    %v447 = vrot.slane %v442, %v446
    %v449 = vadd.f32 %v440, %v447
    %v450 = vadd.f32 %v441, %v447
    %v451 = vmax.f32 %v449, 0.0
    %v452 = vmax.f32 %v450, 0.0
    %v453 = vpack.c.bf16 %v452, %v451
    %v455 = vrot.slane %v453, 7
    %vm456 = vcmask 1040384
    %v459 = vsel %vm456, 0, %v455
    %v460 = vrot.slane %v453, 1
    %vm461 = vcmask 1046528
    %v463 = vsel %vm461, %v460, 0
    %v464 = vld [vmem:[%s3] sm:$0xf]
    %v465 = vld [vmem:[%s3 + $0x4] sm:$0xf]
    %v466 = vld [vmem:[%s3 + $0x8] sm:$0xf]
    %v467 = vld [vmem:[%s3 + $0xc] sm:$0xf]
    %s468 = scalar_lea.vmem %s3, 16
    %v469 = vld [vmem:[%s468] sm:$0xf]
    %v470 = vld [vmem:[%s468 + $0x4] sm:$0xf]
    %v471 = vld [vmem:[%s468 + $0x8] sm:$0xf]
    %v472 = vld [vmem:[%s468 + $0xc] sm:$0xf]
    %v477 = vunpack.c.l.b16 %v469
    %v478 = vunpack.c.l.b16 %v470
    %v479 = vunpack.c.l.b16 %v471
    %v480 = vunpack.c.l.b16 %v472
    %v481 = vpack.c.b16 %v478, %v477
    %v482 = vpack.c.b16 %v480, %v479
    %vm485 = vcmask 261120
    %v487 = vsel %vm485, %v453, 0
    %489 = vmatprep.subr.bf16.mxu0 0
    %490 = vmatpush1.bf16.msra.mxu0 0
    %491 = vmatprep.subr.bf16.mxu0 0
    %492 = vmatpush1.bf16.msra.mxu0 0
    %493 = vmatprep.subr.bf16.mxu0 0
    %494 = vmatpush1.bf16.msra.mxu0 0
    %495 = vmatprep.subr.bf16.mxu0 0
    %496 = vmatpush1.bf16.msra.mxu0 0
    %497 = vmatprep.subr.bf16.mxu0 0
    %498 = vmatpush1.bf16.msra.mxu0 0
    %499 = vmatprep.subr.bf16.mxu0 0
    %500 = vmatpush1.bf16.msra.mxu0 0
    %501 = vmatprep.subr.bf16.mxu0 0
    %502 = vmatpush1.bf16.msra.mxu0 %v482
    %503 = vmatprep.subr.bf16.mxu0 0
    %504 = vmatpush1.bf16.msra.mxu0 %v481
    %505 = vmatprep.subr.bf16.mxu0 0
    %506 = vmatpush2.bf16.msra.mxu0 0
    %507 = vmatprep.subr.bf16.mxu0 0
    %508 = vmatpush2.bf16.msra.mxu0 0
    %509 = vmatprep.subr.bf16.mxu0 0
    %510 = vmatpush2.bf16.msra.mxu0 0
    %511 = vmatprep.subr.bf16.mxu0 0
    %512 = vmatpush2.bf16.msra.mxu0 0
    %513 = vmatprep.subr.bf16.mxu0 0
    %514 = vmatpush2.bf16.msra.mxu0 0
    %515 = vmatprep.subr.bf16.mxu0 0
    %516 = vmatpush2.bf16.msra.mxu0 0
    %517 = vmatprep.subr.bf16.mxu0 0
    %518 = vmatpush2.bf16.msra.mxu0 0
    %519 = vmatprep.subr.bf16.mxu0 0
    %520 = vmatpush2.bf16.msra.mxu0 0
    %521 = vmatprep.mubr.bf16.mxu0 0
    %522 = vmatmul.mubr.bf16.gmra.mxu0 %v487
    %v523 = vpop.f32.mrf.mxu0
    %v524 = vadd.f32 0.0, %v523
    %v525 = vpop.f32.mrf.mxu0
    %v526 = vpop.f32.mrf.mxu0
    %v527 = vadd.f32 0.0, %v526
    %v528 = vpop.f32.mrf.mxu0
    %529 = vdwg.mxu0
    %v534 = vunpack.c.l.b16 %v464
    %v535 = vunpack.c.l.b16 %v465
    %v536 = vunpack.c.l.b16 %v466
    %v537 = vunpack.c.l.b16 %v467
    %v538 = vpack.c.b16 %v535, %v534
    %v539 = vpack.c.b16 %v537, %v536
    %v542 = vsel %vm485, %v459, 0
    %544 = vmatprep.subr.bf16.mxu0 0
    %545 = vmatpush1.bf16.msra.mxu0 0
    %546 = vmatprep.subr.bf16.mxu0 0
    %547 = vmatpush1.bf16.msra.mxu0 0
    %548 = vmatprep.subr.bf16.mxu0 0
    %549 = vmatpush1.bf16.msra.mxu0 0
    %550 = vmatprep.subr.bf16.mxu0 0
    %551 = vmatpush1.bf16.msra.mxu0 0
    %552 = vmatprep.subr.bf16.mxu0 0
    %553 = vmatpush1.bf16.msra.mxu0 0
    %554 = vmatprep.subr.bf16.mxu0 0
    %555 = vmatpush1.bf16.msra.mxu0 0
    %556 = vmatprep.subr.bf16.mxu0 0
    %557 = vmatpush1.bf16.msra.mxu0 %v539
    %558 = vmatprep.subr.bf16.mxu0 0
    %559 = vmatpush1.bf16.msra.mxu0 %v538
    %560 = vmatprep.subr.bf16.mxu0 0
    %561 = vmatpush2.bf16.msra.mxu0 0
    %562 = vmatprep.subr.bf16.mxu0 0
    %563 = vmatpush2.bf16.msra.mxu0 0
    %564 = vmatprep.subr.bf16.mxu0 0
    %565 = vmatpush2.bf16.msra.mxu0 0
    %566 = vmatprep.subr.bf16.mxu0 0
    %567 = vmatpush2.bf16.msra.mxu0 0
    %568 = vmatprep.subr.bf16.mxu0 0
    %569 = vmatpush2.bf16.msra.mxu0 0
    %570 = vmatprep.subr.bf16.mxu0 0
    %571 = vmatpush2.bf16.msra.mxu0 0
    %572 = vmatprep.subr.bf16.mxu0 0
    %573 = vmatpush2.bf16.msra.mxu0 0
    %574 = vmatprep.subr.bf16.mxu0 0
    %575 = vmatpush2.bf16.msra.mxu0 0
    %576 = vmatprep.mubr.bf16.mxu0 0
    %577 = vmatmul.mubr.bf16.gmra.mxu0 %v542
    %v578 = vpop.f32.mrf.mxu0
    %v579 = vadd.f32 %v524, %v578
    %v580 = vpop.f32.mrf.mxu0
    %v581 = vpop.f32.mrf.mxu0
    %v582 = vadd.f32 %v527, %v581
    %v583 = vpop.f32.mrf.mxu0
    %584 = vdwg.mxu0
    %s585 = scalar_lea.vmem %s3, 32
    %v586 = vld [vmem:[%s585] sm:$0xf]
    %v587 = vld [vmem:[%s585 + $0x4] sm:$0xf]
    %v588 = vld [vmem:[%s585 + $0x8] sm:$0xf]
    %v589 = vld [vmem:[%s585 + $0xc] sm:$0xf]
    %v594 = vunpack.c.l.b16 %v586
    %v595 = vunpack.c.l.b16 %v587
    %v596 = vunpack.c.l.b16 %v588
    %v597 = vunpack.c.l.b16 %v589
    %v598 = vpack.c.b16 %v595, %v594
    %v599 = vpack.c.b16 %v597, %v596
    %v602 = vsel %vm485, %v463, 0
    %604 = vmatprep.subr.bf16.mxu0 0
    %605 = vmatpush1.bf16.msra.mxu0 0
    %606 = vmatprep.subr.bf16.mxu0 0
    %607 = vmatpush1.bf16.msra.mxu0 0
    %608 = vmatprep.subr.bf16.mxu0 0
    %609 = vmatpush1.bf16.msra.mxu0 0
    %610 = vmatprep.subr.bf16.mxu0 0
    %611 = vmatpush1.bf16.msra.mxu0 0
    %612 = vmatprep.subr.bf16.mxu0 0
    %613 = vmatpush1.bf16.msra.mxu0 0
    %614 = vmatprep.subr.bf16.mxu0 0
    %615 = vmatpush1.bf16.msra.mxu0 0
    %616 = vmatprep.subr.bf16.mxu0 0
    %617 = vmatpush1.bf16.msra.mxu0 %v599
    %618 = vmatprep.subr.bf16.mxu0 0
    %619 = vmatpush1.bf16.msra.mxu0 %v598
    %620 = vmatprep.subr.bf16.mxu0 0
    %621 = vmatpush2.bf16.msra.mxu0 0
    %622 = vmatprep.subr.bf16.mxu0 0
    %623 = vmatpush2.bf16.msra.mxu0 0
    %624 = vmatprep.subr.bf16.mxu0 0
    %625 = vmatpush2.bf16.msra.mxu0 0
    %626 = vmatprep.subr.bf16.mxu0 0
    %627 = vmatpush2.bf16.msra.mxu0 0
    %628 = vmatprep.subr.bf16.mxu0 0
    %629 = vmatpush2.bf16.msra.mxu0 0
    %630 = vmatprep.subr.bf16.mxu0 0
    %631 = vmatpush2.bf16.msra.mxu0 0
    %632 = vmatprep.subr.bf16.mxu0 0
    %633 = vmatpush2.bf16.msra.mxu0 0
    %634 = vmatprep.subr.bf16.mxu0 0
    %635 = vmatpush2.bf16.msra.mxu0 0
    %636 = vmatprep.mubr.bf16.mxu0 0
    %637 = vmatmul.mubr.bf16.gmra.mxu0 %v602
    %v638 = vpop.f32.mrf.mxu0
    %v639 = vadd.f32 0.0, %v638
    %v640 = vpop.f32.mrf.mxu0
    %v641 = vpop.f32.mrf.mxu0
    %v642 = vadd.f32 0.0, %v641
    %v643 = vpop.f32.mrf.mxu0
    %644 = vdwg.mxu0
    %v645 = vadd.f32 %v579, %v639
    %v646 = vadd.f32 %v582, %v642
    %v647 = vld [vmem:[#allocation6] sm:$0x1]
    %v649 = vlaneseq
    %v650 = vshrl.u32 %v649, 7
    %v651 = vsub.s32 0, %v650
    %v652 = vrot.slane %v647, %v651
    %v654 = vadd.f32 %v645, %v652
    %v655 = vadd.f32 %v646, %v652
    %v656 = vmax.f32 %v654, 0.0
    %v657 = vmax.f32 %v655, 0.0
    %v658 = vpack.c.bf16 %v657, %v656
    %v660 = vrot.slane %v658, 7
    %v662 = vsel %vm456, 0, %v660
    %v663 = vrot.slane %v658, 1
    %v665 = vsel %vm461, %v663, 0
    %v666 = vld [vmem:[#allocation8] sm:$0xf]
    %v667 = vld [vmem:[#allocation8 + $0x4] sm:$0xf]
    %v668 = vld [vmem:[#allocation8 + $0x8] sm:$0xf]
    %v669 = vld [vmem:[#allocation8 + $0xc] sm:$0xf]
    %v670 = vld [vmem:[#allocation8 + $0x10] sm:$0xf]
    %v671 = vld [vmem:[#allocation8 + $0x14] sm:$0xf]
    %v672 = vld [vmem:[#allocation8 + $0x18] sm:$0xf]
    %v673 = vld [vmem:[#allocation8 + $0x1c] sm:$0xf]
    %s674 = scalar_lea.vmem [#allocation8], 32
    %v675 = vld [vmem:[%s674] sm:$0xf]
    %v676 = vld [vmem:[%s674 + $0x4] sm:$0xf]
    %v677 = vld [vmem:[%s674 + $0x8] sm:$0xf]
    %v678 = vld [vmem:[%s674 + $0xc] sm:$0xf]
    %v679 = vld [vmem:[%s674 + $0x10] sm:$0xf]
    %v680 = vld [vmem:[%s674 + $0x14] sm:$0xf]
    %v681 = vld [vmem:[%s674 + $0x18] sm:$0xf]
    %v682 = vld [vmem:[%s674 + $0x1c] sm:$0xf]
    %v691 = vunpack.c.l.b16 %v675
    %v692 = vunpack.c.l.b16 %v676
    %v693 = vunpack.c.l.b16 %v677
    %v694 = vunpack.c.l.b16 %v678
    %v695 = vunpack.c.l.b16 %v679
    %v696 = vunpack.c.l.b16 %v680
    %v697 = vunpack.c.l.b16 %v681
    %v698 = vunpack.c.l.b16 %v682
    %v699 = vpack.c.b16 %v692, %v691
    %v700 = vpack.c.b16 %v694, %v693
    %v701 = vpack.c.b16 %v696, %v695
    %v702 = vpack.c.b16 %v698, %v697
    %vm707 = vcmask 523264
    %v709 = vsel %vm707, %v658, 0
    %711 = vmatprep.subr.bf16.mxu0 0
    %712 = vmatpush1.bf16.msra.mxu0 0
    %713 = vmatprep.subr.bf16.mxu0 0
    %714 = vmatpush1.bf16.msra.mxu0 0
    %715 = vmatprep.subr.bf16.mxu0 0
    %716 = vmatpush1.bf16.msra.mxu0 0
    %717 = vmatprep.subr.bf16.mxu0 0
    %718 = vmatpush1.bf16.msra.mxu0 0
    %719 = vmatprep.subr.bf16.mxu0 0
    %720 = vmatpush1.bf16.msra.mxu0 %v702
    %721 = vmatprep.subr.bf16.mxu0 0
    %722 = vmatpush1.bf16.msra.mxu0 %v701
    %723 = vmatprep.subr.bf16.mxu0 0
    %724 = vmatpush1.bf16.msra.mxu0 %v700
    %725 = vmatprep.subr.bf16.mxu0 0
    %726 = vmatpush1.bf16.msra.mxu0 %v699
    %727 = vmatprep.subr.bf16.mxu0 0
    %728 = vmatpush2.bf16.msra.mxu0 0
    %729 = vmatprep.subr.bf16.mxu0 0
    %730 = vmatpush2.bf16.msra.mxu0 0
    %731 = vmatprep.subr.bf16.mxu0 0
    %732 = vmatpush2.bf16.msra.mxu0 0
    %733 = vmatprep.subr.bf16.mxu0 0
    %734 = vmatpush2.bf16.msra.mxu0 0
    %735 = vmatprep.subr.bf16.mxu0 0
    %736 = vmatpush2.bf16.msra.mxu0 0
    %737 = vmatprep.subr.bf16.mxu0 0
    %738 = vmatpush2.bf16.msra.mxu0 0
    %739 = vmatprep.subr.bf16.mxu0 0
    %740 = vmatpush2.bf16.msra.mxu0 0
    %741 = vmatprep.subr.bf16.mxu0 0
    %742 = vmatpush2.bf16.msra.mxu0 0
    %743 = vmatprep.mubr.bf16.mxu0 0
    %744 = vmatmul.mubr.bf16.gmra.mxu0 %v709
    %v745 = vpop.f32.mrf.mxu0
    %v746 = vadd.f32 0.0, %v745
    %v747 = vpop.f32.mrf.mxu0
    %v748 = vpop.f32.mrf.mxu0
    %v749 = vadd.f32 0.0, %v748
    %v750 = vpop.f32.mrf.mxu0
    %751 = vdwg.mxu0
    %v760 = vunpack.c.l.b16 %v666
    %v761 = vunpack.c.l.b16 %v667
    %v762 = vunpack.c.l.b16 %v668
    %v763 = vunpack.c.l.b16 %v669
    %v764 = vunpack.c.l.b16 %v670
    %v765 = vunpack.c.l.b16 %v671
    %v766 = vunpack.c.l.b16 %v672
    %v767 = vunpack.c.l.b16 %v673
    %v768 = vpack.c.b16 %v761, %v760
    %v769 = vpack.c.b16 %v763, %v762
    %v770 = vpack.c.b16 %v765, %v764
    %v771 = vpack.c.b16 %v767, %v766
    %v776 = vsel %vm707, %v662, 0
    %778 = vmatprep.subr.bf16.mxu0 0
    %779 = vmatpush1.bf16.msra.mxu0 0
    %780 = vmatprep.subr.bf16.mxu0 0
    %781 = vmatpush1.bf16.msra.mxu0 0
    %782 = vmatprep.subr.bf16.mxu0 0
    %783 = vmatpush1.bf16.msra.mxu0 0
    %784 = vmatprep.subr.bf16.mxu0 0
    %785 = vmatpush1.bf16.msra.mxu0 0
    %786 = vmatprep.subr.bf16.mxu0 0
    %787 = vmatpush1.bf16.msra.mxu0 %v771
    %788 = vmatprep.subr.bf16.mxu0 0
    %789 = vmatpush1.bf16.msra.mxu0 %v770
    %790 = vmatprep.subr.bf16.mxu0 0
    %791 = vmatpush1.bf16.msra.mxu0 %v769
    %792 = vmatprep.subr.bf16.mxu0 0
    %793 = vmatpush1.bf16.msra.mxu0 %v768
    %794 = vmatprep.subr.bf16.mxu0 0
    %795 = vmatpush2.bf16.msra.mxu0 0
    %796 = vmatprep.subr.bf16.mxu0 0
    %797 = vmatpush2.bf16.msra.mxu0 0
    %798 = vmatprep.subr.bf16.mxu0 0
    %799 = vmatpush2.bf16.msra.mxu0 0
    %800 = vmatprep.subr.bf16.mxu0 0
    %801 = vmatpush2.bf16.msra.mxu0 0
    %802 = vmatprep.subr.bf16.mxu0 0
    %803 = vmatpush2.bf16.msra.mxu0 0
    %804 = vmatprep.subr.bf16.mxu0 0
    %805 = vmatpush2.bf16.msra.mxu0 0
    %806 = vmatprep.subr.bf16.mxu0 0
    %807 = vmatpush2.bf16.msra.mxu0 0
    %808 = vmatprep.subr.bf16.mxu0 0
    %809 = vmatpush2.bf16.msra.mxu0 0
    %810 = vmatprep.mubr.bf16.mxu0 0
    %811 = vmatmul.mubr.bf16.gmra.mxu0 %v776
    %v812 = vpop.f32.mrf.mxu0
    %v813 = vadd.f32 %v746, %v812
    %v814 = vpop.f32.mrf.mxu0
    %v815 = vpop.f32.mrf.mxu0
    %v816 = vadd.f32 %v749, %v815
    %v817 = vpop.f32.mrf.mxu0
    %818 = vdwg.mxu0
    %s819 = scalar_lea.vmem [#allocation8], 64
    %v820 = vld [vmem:[%s819] sm:$0xf]
    %v821 = vld [vmem:[%s819 + $0x4] sm:$0xf]
    %v822 = vld [vmem:[%s819 + $0x8] sm:$0xf]
    %v823 = vld [vmem:[%s819 + $0xc] sm:$0xf]
    %v824 = vld [vmem:[%s819 + $0x10] sm:$0xf]
    %v825 = vld [vmem:[%s819 + $0x14] sm:$0xf]
    %v826 = vld [vmem:[%s819 + $0x18] sm:$0xf]
    %v827 = vld [vmem:[%s819 + $0x1c] sm:$0xf]
    %v836 = vunpack.c.l.b16 %v820
    %v837 = vunpack.c.l.b16 %v821
    %v838 = vunpack.c.l.b16 %v822
    %v839 = vunpack.c.l.b16 %v823
    %v840 = vunpack.c.l.b16 %v824
    %v841 = vunpack.c.l.b16 %v825
    %v842 = vunpack.c.l.b16 %v826
    %v843 = vunpack.c.l.b16 %v827
    %v844 = vpack.c.b16 %v837, %v836
    %v845 = vpack.c.b16 %v839, %v838
    %v846 = vpack.c.b16 %v841, %v840
    %v847 = vpack.c.b16 %v843, %v842
    %v852 = vsel %vm707, %v665, 0
    %854 = vmatprep.subr.bf16.mxu0 0
    %855 = vmatpush1.bf16.msra.mxu0 0
    %856 = vmatprep.subr.bf16.mxu0 0
    %857 = vmatpush1.bf16.msra.mxu0 0
    %858 = vmatprep.subr.bf16.mxu0 0
    %859 = vmatpush1.bf16.msra.mxu0 0
    %860 = vmatprep.subr.bf16.mxu0 0
    %861 = vmatpush1.bf16.msra.mxu0 0
    %862 = vmatprep.subr.bf16.mxu0 0
    %863 = vmatpush1.bf16.msra.mxu0 %v847
    %864 = vmatprep.subr.bf16.mxu0 0
    %865 = vmatpush1.bf16.msra.mxu0 %v846
    %866 = vmatprep.subr.bf16.mxu0 0
    %867 = vmatpush1.bf16.msra.mxu0 %v845
    %868 = vmatprep.subr.bf16.mxu0 0
    %869 = vmatpush1.bf16.msra.mxu0 %v844
    %870 = vmatprep.subr.bf16.mxu0 0
    %871 = vmatpush2.bf16.msra.mxu0 0
    %872 = vmatprep.subr.bf16.mxu0 0
    %873 = vmatpush2.bf16.msra.mxu0 0
    %874 = vmatprep.subr.bf16.mxu0 0
    %875 = vmatpush2.bf16.msra.mxu0 0
    %876 = vmatprep.subr.bf16.mxu0 0
    %877 = vmatpush2.bf16.msra.mxu0 0
    %878 = vmatprep.subr.bf16.mxu0 0
    %879 = vmatpush2.bf16.msra.mxu0 0
    %880 = vmatprep.subr.bf16.mxu0 0
    %881 = vmatpush2.bf16.msra.mxu0 0
    %882 = vmatprep.subr.bf16.mxu0 0
    %883 = vmatpush2.bf16.msra.mxu0 0
    %884 = vmatprep.subr.bf16.mxu0 0
    %885 = vmatpush2.bf16.msra.mxu0 0
    %886 = vmatprep.mubr.bf16.mxu0 0
    %887 = vmatmul.mubr.bf16.gmra.mxu0 %v852
    %v888 = vpop.f32.mrf.mxu0
    %v889 = vadd.f32 0.0, %v888
    %v890 = vpop.f32.mrf.mxu0
    %v891 = vpop.f32.mrf.mxu0
    %v892 = vadd.f32 0.0, %v891
    %v893 = vpop.f32.mrf.mxu0
    %894 = vdwg.mxu0
    %v895 = vadd.f32 %v813, %v889
    %v896 = vadd.f32 %v816, %v892
    %v897 = vld [vmem:[#allocation9] sm:$0x1]
    %v899 = vlaneseq
    %v900 = vshrl.u32 %v899, 7
    %v901 = vsub.s32 0, %v900
    %v902 = vrot.slane %v897, %v901
    %v904 = vadd.f32 %v895, %v902
    %v905 = vadd.f32 %v896, %v902
    %v906 = vmax.f32 %v904, 0.0
    %v907 = vmax.f32 %v905, 0.0
    %v908 = vpack.c.bf16 %v907, %v906
    %v909 = vld [vmem:[%s7] sm:$0xff]
    %v910 = vld [vmem:[%s7 + $0x8] sm:$0xff]
    %v911 = vld [vmem:[%s7 + $0x10] sm:$0xff]
    %v912 = vld [vmem:[%s7 + $0x18] sm:$0xff]
    %v913 = vld [vmem:[%s7 + $0x20] sm:$0xff]
    %v914 = vld [vmem:[%s7 + $0x28] sm:$0xff]
    %v915 = vld [vmem:[%s7 + $0x30] sm:$0xff]
    %v916 = vld [vmem:[%s7 + $0x38] sm:$0xff]
    %v917 = vld [vmem:[%s7 + $0x40] sm:$0xff]
    %v918 = vld [vmem:[%s7 + $0x48] sm:$0xff]
    %v919 = vld [vmem:[%s7 + $0x50] sm:$0xff]
    %v920 = vld [vmem:[%s7 + $0x58] sm:$0xff]
    %v921 = vld [vmem:[%s7 + $0x60] sm:$0xff]
    %v922 = vld [vmem:[%s7 + $0x68] sm:$0xff]
    %v923 = vld [vmem:[%s7 + $0x70] sm:$0xff]
    %v924 = vld [vmem:[%s7 + $0x78] sm:$0xff]
    %v925 = vld [vmem:[%s8] sm:$0x3]
    %v927 = vlaneseq
    %v928 = vshrl.u32 %v927, 7
    %v929 = vsub.s32 0, %v928
    %v930 = vrot.slane %v925, %v929
    %v931 = vlaneseq
    %v932 = vshrl.u32 %v931, 7
    %v933 = vsub.s32 1, %v932
    %v934 = vrot.slane %v925, %v933
    %v953 = vunpack.c.l.b16 %v909
    %v954 = vunpack.c.h.b16 %v909
    %v955 = vunpack.c.l.b16 %v910
    %v956 = vunpack.c.h.b16 %v910
    %v957 = vunpack.c.l.b16 %v911
    %v958 = vunpack.c.h.b16 %v911
    %v959 = vunpack.c.l.b16 %v912
    %v960 = vunpack.c.h.b16 %v912
    %v961 = vunpack.c.l.b16 %v913
    %v962 = vunpack.c.h.b16 %v913
    %v963 = vunpack.c.l.b16 %v914
    %v964 = vunpack.c.h.b16 %v914
    %v965 = vunpack.c.l.b16 %v915
    %v966 = vunpack.c.h.b16 %v915
    %v967 = vunpack.c.l.b16 %v916
    %v968 = vunpack.c.h.b16 %v916
    %v969 = vunpack.c.l.b16 %v917
    %v970 = vunpack.c.h.b16 %v917
    %v971 = vunpack.c.l.b16 %v918
    %v972 = vunpack.c.h.b16 %v918
    %v973 = vunpack.c.l.b16 %v919
    %v974 = vunpack.c.h.b16 %v919
    %v975 = vunpack.c.l.b16 %v920
    %v976 = vunpack.c.h.b16 %v920
    %v977 = vunpack.c.l.b16 %v921
    %v978 = vunpack.c.h.b16 %v921
    %v979 = vunpack.c.l.b16 %v922
    %v980 = vunpack.c.h.b16 %v922
    %v981 = vunpack.c.l.b16 %v923
    %v982 = vunpack.c.h.b16 %v923
    %v983 = vunpack.c.l.b16 %v924
    %v984 = vunpack.c.h.b16 %v924
    %v985 = vpack.c.b16 %v955, %v953
    %v986 = vpack.c.b16 %v956, %v954
    %v987 = vpack.c.b16 %v959, %v957
    %v988 = vpack.c.b16 %v960, %v958
    %v989 = vpack.c.b16 %v963, %v961
    %v990 = vpack.c.b16 %v964, %v962
    %v991 = vpack.c.b16 %v967, %v965
    %v992 = vpack.c.b16 %v968, %v966
    %v993 = vpack.c.b16 %v971, %v969
    %v994 = vpack.c.b16 %v972, %v970
    %v995 = vpack.c.b16 %v975, %v973
    %v996 = vpack.c.b16 %v976, %v974
    %v997 = vpack.c.b16 %v979, %v977
    %v998 = vpack.c.b16 %v980, %v978
    %v999 = vpack.c.b16 %v983, %v981
    %v1000 = vpack.c.b16 %v984, %v982
    %1017 = vmatprep.subr.bf16.mxu0 %v1000
    %1018 = vmatpush1.bf16.msra.mxu0 %v999
    %1019 = vmatprep.subr.bf16.mxu0 %v998
    %1020 = vmatpush1.bf16.msra.mxu0 %v997
    %1021 = vmatprep.subr.bf16.mxu0 %v996
    %1022 = vmatpush1.bf16.msra.mxu0 %v995
    %1023 = vmatprep.subr.bf16.mxu0 %v994
    %1024 = vmatpush1.bf16.msra.mxu0 %v993
    %1025 = vmatprep.subr.bf16.mxu0 %v992
    %1026 = vmatpush1.bf16.msra.mxu0 %v991
    %1027 = vmatprep.subr.bf16.mxu0 %v990
    %1028 = vmatpush1.bf16.msra.mxu0 %v989
    %1029 = vmatprep.subr.bf16.mxu0 %v988
    %1030 = vmatpush1.bf16.msra.mxu0 %v987
    %1031 = vmatprep.subr.bf16.mxu0 %v986
    %1032 = vmatpush1.bf16.msra.mxu0 %v985
    %1033 = vmatprep.subr.bf16.mxu0 0
    %1034 = vmatpush2.bf16.msra.mxu0 0
    %1035 = vmatprep.subr.bf16.mxu0 0
    %1036 = vmatpush2.bf16.msra.mxu0 0
    %1037 = vmatprep.subr.bf16.mxu0 0
    %1038 = vmatpush2.bf16.msra.mxu0 0
    %1039 = vmatprep.subr.bf16.mxu0 0
    %1040 = vmatpush2.bf16.msra.mxu0 0
    %1041 = vmatprep.subr.bf16.mxu0 0
    %1042 = vmatpush2.bf16.msra.mxu0 0
    %1043 = vmatprep.subr.bf16.mxu0 0
    %1044 = vmatpush2.bf16.msra.mxu0 0
    %1045 = vmatprep.subr.bf16.mxu0 0
    %1046 = vmatpush2.bf16.msra.mxu0 0
    %1047 = vmatprep.subr.bf16.mxu0 0
    %1048 = vmatpush2.bf16.msra.mxu0 0
    %1049 = vmatprep.mubr.bf16.mxu0 0
    %1050 = vmatmul.mubr.bf16.gmra.mxu0 %v908
    %v1051 = vpop.f32.mrf.mxu0
    %v1052 = vadd.f32 %v930, %v1051
    %v1053 = vpop.f32.mrf.mxu0
    %v1054 = vadd.f32 %v934, %v1053
    %v1055 = vpop.f32.mrf.mxu0
    %v1056 = vadd.f32 %v930, %v1055
    %v1057 = vpop.f32.mrf.mxu0
    %v1058 = vadd.f32 %v934, %v1057
    %1059 = vdwg.mxu0
    %v1064 = vcombine.low %v1052, %v1054
    %v1065 = vcombine.high %v1052, %v1054
    %v1067 = vunpack.c.l.s4 1983009808
    %v1068 = vunpack.c.0.s8 %v1067
    %v1069 = vlaneseq
    %v1070 = vshrl.u32 %v1069, 7
    %v1071 = vsub.s32 %v1068, %v1070
    %v1072 = vrot.slane %v1064, %v1071
    %v1074 = vunpack.c.l.s4 1983009808
    %v1075 = vunpack.c.0.s8 %v1074
    %v1076 = vlaneseq
    %v1077 = vshrl.u32 %v1076, 7
    %v1078 = vsub.s32 %v1075, %v1077
    %v1079 = vrot.slane %v1065, %v1078
    %v1080 = vcombine.high %v1072, %v1072
    %v1081 = vcombine.high %v1079, %v1079
    %v1082 = vcombine.low %v1056, %v1058
    %v1083 = vcombine.high %v1056, %v1058
    %v1085 = vunpack.c.l.s4 1983009808
    %v1086 = vunpack.c.0.s8 %v1085
    %v1087 = vlaneseq
    %v1088 = vshrl.u32 %v1087, 7
    %v1089 = vsub.s32 %v1086, %v1088
    %v1090 = vrot.slane %v1082, %v1089
    %v1092 = vunpack.c.l.s4 1983009808
    %v1093 = vunpack.c.0.s8 %v1092
    %v1094 = vlaneseq
    %v1095 = vshrl.u32 %v1094, 7
    %v1096 = vsub.s32 %v1093, %v1095
    %v1097 = vrot.slane %v1083, %v1096
    %v1098 = vcombine.high %v1090, %v1090
    %v1099 = vcombine.high %v1097, %v1097
    %v1101 = vunpack.c.l.s4 1983009808
    %v1102 = vunpack.c.0.s8 %v1101
    %v1103 = vlaneseq
    %v1104 = vshrl.u32 %v1103, 7
    %v1105 = vsub.s32 %v1102, %v1104
    %v1106 = vrot.slane %v1072, %v1105
    %v1107 = vcombine.high %v1106, %v1106
    %v1109 = vunpack.c.l.s4 1983009808
    %v1110 = vunpack.c.0.s8 %v1109
    %v1111 = vlaneseq
    %v1112 = vshrl.u32 %v1111, 7
    %v1113 = vsub.s32 %v1110, %v1112
    %v1114 = vrot.slane %v1080, %v1113
    %v1115 = vcombine.high %v1114, %v1114
    %v1117 = vunpack.c.l.s4 1983009808
    %v1118 = vunpack.c.0.s8 %v1117
    %v1119 = vlaneseq
    %v1120 = vshrl.u32 %v1119, 7
    %v1121 = vsub.s32 %v1118, %v1120
    %v1122 = vrot.slane %v1079, %v1121
    %v1123 = vcombine.high %v1122, %v1122
    %v1125 = vunpack.c.l.s4 1983009808
    %v1126 = vunpack.c.0.s8 %v1125
    %v1127 = vlaneseq
    %v1128 = vshrl.u32 %v1127, 7
    %v1129 = vsub.s32 %v1126, %v1128
    %v1130 = vrot.slane %v1081, %v1129
    %v1131 = vcombine.high %v1130, %v1130
    %v1133 = vunpack.c.l.s4 1983009808
    %v1134 = vunpack.c.0.s8 %v1133
    %v1135 = vlaneseq
    %v1136 = vshrl.u32 %v1135, 7
    %v1137 = vsub.s32 %v1134, %v1136
    %v1138 = vrot.slane %v1090, %v1137
    %v1139 = vcombine.high %v1138, %v1138
    %v1141 = vunpack.c.l.s4 1983009808
    %v1142 = vunpack.c.0.s8 %v1141
    %v1143 = vlaneseq
    %v1144 = vshrl.u32 %v1143, 7
    %v1145 = vsub.s32 %v1142, %v1144
    %v1146 = vrot.slane %v1098, %v1145
    %v1147 = vcombine.high %v1146, %v1146
    %v1149 = vunpack.c.l.s4 1983009808
    %v1150 = vunpack.c.0.s8 %v1149
    %v1151 = vlaneseq
    %v1152 = vshrl.u32 %v1151, 7
    %v1153 = vsub.s32 %v1150, %v1152
    %v1154 = vrot.slane %v1097, %v1153
    %v1155 = vcombine.high %v1154, %v1154
    %v1157 = vunpack.c.l.s4 1983009808
    %v1158 = vunpack.c.0.s8 %v1157
    %v1159 = vlaneseq
    %v1160 = vshrl.u32 %v1159, 7
    %v1161 = vsub.s32 %v1158, %v1160
    %v1162 = vrot.slane %v1099, %v1161
    %v1163 = vcombine.high %v1162, %v1162
    %v1180 = vpack.c.bf16 %v1106, %v1106
    %v1181 = vpack.c.bf16 %v1107, %v1107
    %v1182 = vpack.c.bf16 %v1114, %v1114
    %v1183 = vpack.c.bf16 %v1115, %v1115
    %v1184 = vpack.c.bf16 %v1122, %v1122
    %v1185 = vpack.c.bf16 %v1123, %v1123
    %v1186 = vpack.c.bf16 %v1130, %v1130
    %v1187 = vpack.c.bf16 %v1131, %v1131
    %v1188 = vpack.c.bf16 %v1138, %v1138
    %v1189 = vpack.c.bf16 %v1139, %v1139
    %v1190 = vpack.c.bf16 %v1146, %v1146
    %v1191 = vpack.c.bf16 %v1147, %v1147
    %v1192 = vpack.c.bf16 %v1154, %v1154
    %v1193 = vpack.c.bf16 %v1155, %v1155
    %v1194 = vpack.c.bf16 %v1162, %v1162
    %v1195 = vpack.c.bf16 %v1163, %v1163
    %v1212 = vcombine.low %v1180, %v1181
    %v1214 = vunpack.c.l.s4 1966171168
    %v1215 = vunpack.c.0.s8 %v1214
    %v1216 = vlaneseq
    %v1217 = vshrl.u32 %v1216, 7
    %v1218 = vsub.s32 %v1215, %v1217
    %v1219 = vrot.slane %v1212, %v1218
    %v1221 = vunpack.c.l.s4 1966171168
    %v1222 = vunpack.c.0.s8 %v1221
    %v1223 = vlaneseq
    %v1224 = vshrl.u32 %v1223, 7
    %v1225 = vsub.s32 %v1222, %v1224
    %v1226 = vrot.slane %v1219, %v1225
    %v1227 = vcombine.low %v1182, %v1183
    %v1229 = vunpack.c.l.s4 1966171168
    %v1230 = vunpack.c.0.s8 %v1229
    %v1231 = vlaneseq
    %v1232 = vshrl.u32 %v1231, 7
    %v1233 = vsub.s32 %v1230, %v1232
    %v1234 = vrot.slane %v1227, %v1233
    %v1236 = vunpack.c.l.s4 1966171168
    %v1237 = vunpack.c.0.s8 %v1236
    %v1238 = vlaneseq
    %v1239 = vshrl.u32 %v1238, 7
    %v1240 = vsub.s32 %v1237, %v1239
    %v1241 = vrot.slane %v1234, %v1240
    %v1242 = vcombine.low %v1184, %v1185
    %v1244 = vunpack.c.l.s4 1966171168
    %v1245 = vunpack.c.0.s8 %v1244
    %v1246 = vlaneseq
    %v1247 = vshrl.u32 %v1246, 7
    %v1248 = vsub.s32 %v1245, %v1247
    %v1249 = vrot.slane %v1242, %v1248
    %v1251 = vunpack.c.l.s4 1966171168
    %v1252 = vunpack.c.0.s8 %v1251
    %v1253 = vlaneseq
    %v1254 = vshrl.u32 %v1253, 7
    %v1255 = vsub.s32 %v1252, %v1254
    %v1256 = vrot.slane %v1249, %v1255
    %v1257 = vcombine.low %v1186, %v1187
    %v1259 = vunpack.c.l.s4 1966171168
    %v1260 = vunpack.c.0.s8 %v1259
    %v1261 = vlaneseq
    %v1262 = vshrl.u32 %v1261, 7
    %v1263 = vsub.s32 %v1260, %v1262
    %v1264 = vrot.slane %v1257, %v1263
    %v1266 = vunpack.c.l.s4 1966171168
    %v1267 = vunpack.c.0.s8 %v1266
    %v1268 = vlaneseq
    %v1269 = vshrl.u32 %v1268, 7
    %v1270 = vsub.s32 %v1267, %v1269
    %v1271 = vrot.slane %v1264, %v1270
    %v1272 = vcombine.low %v1188, %v1189
    %v1274 = vunpack.c.l.s4 1966171168
    %v1275 = vunpack.c.0.s8 %v1274
    %v1276 = vlaneseq
    %v1277 = vshrl.u32 %v1276, 7
    %v1278 = vsub.s32 %v1275, %v1277
    %v1279 = vrot.slane %v1272, %v1278
    %v1281 = vunpack.c.l.s4 1966171168
    %v1282 = vunpack.c.0.s8 %v1281
    %v1283 = vlaneseq
    %v1284 = vshrl.u32 %v1283, 7
    %v1285 = vsub.s32 %v1282, %v1284
    %v1286 = vrot.slane %v1279, %v1285
    %v1287 = vcombine.low %v1190, %v1191
    %v1289 = vunpack.c.l.s4 1966171168
    %v1290 = vunpack.c.0.s8 %v1289
    %v1291 = vlaneseq
    %v1292 = vshrl.u32 %v1291, 7
    %v1293 = vsub.s32 %v1290, %v1292
    %v1294 = vrot.slane %v1287, %v1293
    %v1296 = vunpack.c.l.s4 1966171168
    %v1297 = vunpack.c.0.s8 %v1296
    %v1298 = vlaneseq
    %v1299 = vshrl.u32 %v1298, 7
    %v1300 = vsub.s32 %v1297, %v1299
    %v1301 = vrot.slane %v1294, %v1300
    %v1302 = vcombine.low %v1192, %v1193
    %v1304 = vunpack.c.l.s4 1966171168
    %v1305 = vunpack.c.0.s8 %v1304
    %v1306 = vlaneseq
    %v1307 = vshrl.u32 %v1306, 7
    %v1308 = vsub.s32 %v1305, %v1307
    %v1309 = vrot.slane %v1302, %v1308
    %v1311 = vunpack.c.l.s4 1966171168
    %v1312 = vunpack.c.0.s8 %v1311
    %v1313 = vlaneseq
    %v1314 = vshrl.u32 %v1313, 7
    %v1315 = vsub.s32 %v1312, %v1314
    %v1316 = vrot.slane %v1309, %v1315
    %v1317 = vcombine.low %v1194, %v1195
    %v1319 = vunpack.c.l.s4 1966171168
    %v1320 = vunpack.c.0.s8 %v1319
    %v1321 = vlaneseq
    %v1322 = vshrl.u32 %v1321, 7
    %v1323 = vsub.s32 %v1320, %v1322
    %v1324 = vrot.slane %v1317, %v1323
    %v1326 = vunpack.c.l.s4 1966171168
    %v1327 = vunpack.c.0.s8 %v1326
    %v1328 = vlaneseq
    %v1329 = vshrl.u32 %v1328, 7
    %v1330 = vsub.s32 %v1327, %v1329
    %v1331 = vrot.slane %v1324, %v1330
    %1340 = vst [vmem:[#allocation2] sm:$0x3] %v1226
    %1341 = vst [vmem:[#allocation2 + $0x2] sm:$0x3] %v1241
    %1342 = vst [vmem:[#allocation2 + $0x4] sm:$0x3] %v1256
    %1343 = vst [vmem:[#allocation2 + $0x6] sm:$0x3] %v1271
    %1344 = vst [vmem:[#allocation2 + $0x8] sm:$0x3] %v1286
    %1345 = vst [vmem:[#allocation2 + $0xa] sm:$0x3] %v1301
    %1346 = vst [vmem:[#allocation2 + $0xc] sm:$0x3] %v1316
    %1347 = vst [vmem:[#allocation2 + $0xe] sm:$0x3] %v1331
    %v1348 = vld [vmem:[#allocation11] sm:$0xff]
    %v1349 = vld [vmem:[#allocation11 + $0x8] sm:$0xff]
    %v1350 = vld [vmem:[#allocation11 + $0x10] sm:$0xff]
    %v1351 = vld [vmem:[#allocation11 + $0x18] sm:$0xff]
    %v1352 = vld [vmem:[#allocation11 + $0x20] sm:$0xff]
    %v1353 = vld [vmem:[#allocation11 + $0x28] sm:$0xff]
    %v1354 = vld [vmem:[#allocation11 + $0x30] sm:$0xff]
    %v1355 = vld [vmem:[#allocation11 + $0x38] sm:$0xff]
    %v1356 = vld [vmem:[#allocation11 + $0x40] sm:$0xff]
    %v1357 = vld [vmem:[#allocation11 + $0x48] sm:$0xff]
    %v1358 = vld [vmem:[#allocation11 + $0x50] sm:$0xff]
    %v1359 = vld [vmem:[#allocation11 + $0x58] sm:$0xff]
    %v1360 = vld [vmem:[#allocation11 + $0x60] sm:$0xff]
    %v1361 = vld [vmem:[#allocation11 + $0x68] sm:$0xff]
    %v1362 = vld [vmem:[#allocation11 + $0x70] sm:$0xff]
    %v1363 = vld [vmem:[#allocation11 + $0x78] sm:$0xff]
    %v1364 = vld [vmem:[#allocation11 + $0x80] sm:$0xff]
    %v1365 = vld [vmem:[#allocation11 + $0x88] sm:$0xff]
    %v1366 = vld [vmem:[#allocation11 + $0x90] sm:$0xff]
    %v1367 = vld [vmem:[#allocation11 + $0x98] sm:$0xff]
    %v1368 = vld [vmem:[#allocation11 + $0xa0] sm:$0xff]
    %v1369 = vld [vmem:[#allocation11 + $0xa8] sm:$0xff]
    %v1370 = vld [vmem:[#allocation11 + $0xb0] sm:$0xff]
    %v1371 = vld [vmem:[#allocation11 + $0xb8] sm:$0xff]
    %v1372 = vld [vmem:[#allocation11 + $0xc0] sm:$0xff]
    %v1373 = vld [vmem:[#allocation11 + $0xc8] sm:$0xff]
    %v1374 = vld [vmem:[#allocation11 + $0xd0] sm:$0xff]
    %v1375 = vld [vmem:[#allocation11 + $0xd8] sm:$0xff]
    %v1376 = vld [vmem:[#allocation11 + $0xe0] sm:$0xff]
    %v1377 = vld [vmem:[#allocation11 + $0xe8] sm:$0xff]
    %v1378 = vld [vmem:[#allocation11 + $0xf0] sm:$0xff]
    %v1379 = vld [vmem:[#allocation11 + $0xf8] sm:$0xff]
    %v1380 = vld [vmem:[%s10] sm:$0x3]
    %v1382 = vlaneseq
    %v1383 = vshrl.u32 %v1382, 7
    %v1384 = vsub.s32 0, %v1383
    %v1385 = vrot.slane %v1380, %v1384
    %v1386 = vlaneseq
    %v1387 = vshrl.u32 %v1386, 7
    %v1388 = vsub.s32 1, %v1387
    %v1389 = vrot.slane %v1380, %v1388
    %v1392 = vlaneseq
    %v1393 = vand.u32 %v1392, 127
    %vm1394 = vcmp.lt.s32.totalorder %v1393, 64
    %v1395 = vsel %vm1394, 1.0, 0.5
    %v1396 = vsel %vm1394, 0.0, 0.5
    %v1397 = vld [vmem:[#allocation2] sm:$0x3]
    %v1398 = vunpack.c.l.bf16 %v1397
    %v1399 = vadd.f32 %v1398, 0.0
    %v1400 = vxor.u32 %v1399, 2147483648
    %v1401 = vmul.f32 %v1400, 1.442695
    %v1402 = vpow.pop %v1401
    %v1403 = vadd.f32 %v1402, 1.0
    %v1404 = vrcp.pop %v1403
    %v1405 = vmul.f32 1.0, %v1404
    %v1407 = vrot.slane %v1399, 2
    %v1409 = vmul.f32 %v1407, %v1395
    %v1410 = vtanh.pop %v1409
    %v1411 = vmul.f32 %v1410, %v1395
    %v1412 = vadd.f32 %v1411, %v1396
    %v1413 = vsel %vm1394, %v1412, 0.0
    %v1414 = vmul.f32 %v1405, %v1413
    %1415 = vrot.lane.b32.xlu0 %v1414, 64
    %v1416 = vpop.permute.xlu0 %1415
    %v1417 = vadd.f32 %v1414, %v1416
    %v1418 = vtanh.pop %v1417
    %v1419 = vmul.f32 %v1412, %v1418
    %1420 = vrot.lane.b32.xlu0 %v1419, 64
    %v1421 = vpop.permute.xlu0 %1420
    %v1422 = vsel %vm1394, %v1421, 0.0
    %v1423 = vpack.c.bf16 %v1422, %v1422
    %v1456 = vunpack.c.l.b16 %v1348
    %v1457 = vunpack.c.h.b16 %v1348
    %v1458 = vunpack.c.l.b16 %v1349
    %v1459 = vunpack.c.h.b16 %v1349
    %v1460 = vunpack.c.l.b16 %v1350
    %v1461 = vunpack.c.h.b16 %v1350
    %v1462 = vunpack.c.l.b16 %v1351
    %v1463 = vunpack.c.h.b16 %v1351
    %v1464 = vunpack.c.l.b16 %v1352
    %v1465 = vunpack.c.h.b16 %v1352
    %v1466 = vunpack.c.l.b16 %v1353
    %v1467 = vunpack.c.h.b16 %v1353
    %v1468 = vunpack.c.l.b16 %v1354
    %v1469 = vunpack.c.h.b16 %v1354
    %v1470 = vunpack.c.l.b16 %v1355
    %v1471 = vunpack.c.h.b16 %v1355
    %v1472 = vunpack.c.l.b16 %v1356
    %v1473 = vunpack.c.h.b16 %v1356
    %v1474 = vunpack.c.l.b16 %v1357
    %v1475 = vunpack.c.h.b16 %v1357
    %v1476 = vunpack.c.l.b16 %v1358
    %v1477 = vunpack.c.h.b16 %v1358
    %v1478 = vunpack.c.l.b16 %v1359
    %v1479 = vunpack.c.h.b16 %v1359
    %v1480 = vunpack.c.l.b16 %v1360
    %v1481 = vunpack.c.h.b16 %v1360
    %v1482 = vunpack.c.l.b16 %v1361
    %v1483 = vunpack.c.h.b16 %v1361
    %v1484 = vunpack.c.l.b16 %v1362
    %v1485 = vunpack.c.h.b16 %v1362
    %v1486 = vunpack.c.l.b16 %v1363
    %v1487 = vunpack.c.h.b16 %v1363
    %v1488 = vunpack.c.l.b16 %v1364
    %v1489 = vunpack.c.h.b16 %v1364
    %v1490 = vunpack.c.l.b16 %v1365
    %v1491 = vunpack.c.h.b16 %v1365
    %v1492 = vunpack.c.l.b16 %v1366
    %v1493 = vunpack.c.h.b16 %v1366
    %v1494 = vunpack.c.l.b16 %v1367
    %v1495 = vunpack.c.h.b16 %v1367
    %v1496 = vunpack.c.l.b16 %v1368
    %v1497 = vunpack.c.h.b16 %v1368
    %v1498 = vunpack.c.l.b16 %v1369
    %v1499 = vunpack.c.h.b16 %v1369
    %v1500 = vunpack.c.l.b16 %v1370
    %v1501 = vunpack.c.h.b16 %v1370
    %v1502 = vunpack.c.l.b16 %v1371
    %v1503 = vunpack.c.h.b16 %v1371
    %v1504 = vunpack.c.l.b16 %v1372
    %v1505 = vunpack.c.h.b16 %v1372
    %v1506 = vunpack.c.l.b16 %v1373
    %v1507 = vunpack.c.h.b16 %v1373
    %v1508 = vunpack.c.l.b16 %v1374
    %v1509 = vunpack.c.h.b16 %v1374
    %v1510 = vunpack.c.l.b16 %v1375
    %v1511 = vunpack.c.h.b16 %v1375
    %v1512 = vunpack.c.l.b16 %v1376
    %v1513 = vunpack.c.h.b16 %v1376
    %v1514 = vunpack.c.l.b16 %v1377
    %v1515 = vunpack.c.h.b16 %v1377
    %v1516 = vunpack.c.l.b16 %v1378
    %v1517 = vunpack.c.h.b16 %v1378
    %v1518 = vunpack.c.l.b16 %v1379
    %v1519 = vunpack.c.h.b16 %v1379
    %v1520 = vpack.c.b16 %v1460, %v1456
    %v1521 = vpack.c.b16 %v1461, %v1457
    %v1522 = vpack.c.b16 %v1462, %v1458
    %v1523 = vpack.c.b16 %v1463, %v1459
    %v1524 = vpack.c.b16 %v1468, %v1464
    %v1525 = vpack.c.b16 %v1469, %v1465
    %v1526 = vpack.c.b16 %v1470, %v1466
    %v1527 = vpack.c.b16 %v1471, %v1467
    %v1528 = vpack.c.b16 %v1476, %v1472
    %v1529 = vpack.c.b16 %v1477, %v1473
    %v1530 = vpack.c.b16 %v1478, %v1474
    %v1531 = vpack.c.b16 %v1479, %v1475
    %v1532 = vpack.c.b16 %v1484, %v1480
    %v1533 = vpack.c.b16 %v1485, %v1481
    %v1534 = vpack.c.b16 %v1486, %v1482
    %v1535 = vpack.c.b16 %v1487, %v1483
    %v1536 = vpack.c.b16 %v1492, %v1488
    %v1537 = vpack.c.b16 %v1493, %v1489
    %v1538 = vpack.c.b16 %v1494, %v1490
    %v1539 = vpack.c.b16 %v1495, %v1491
    %v1540 = vpack.c.b16 %v1500, %v1496
    %v1541 = vpack.c.b16 %v1501, %v1497
    %v1542 = vpack.c.b16 %v1502, %v1498
    %v1543 = vpack.c.b16 %v1503, %v1499
    %v1544 = vpack.c.b16 %v1508, %v1504
    %v1545 = vpack.c.b16 %v1509, %v1505
    %v1546 = vpack.c.b16 %v1510, %v1506
    %v1547 = vpack.c.b16 %v1511, %v1507
    %v1548 = vpack.c.b16 %v1516, %v1512
    %v1549 = vpack.c.b16 %v1517, %v1513
    %v1550 = vpack.c.b16 %v1518, %v1514
    %v1551 = vpack.c.b16 %v1519, %v1515
    %1584 = vmatprep.subr.bf16.mxu0 %v1549
    %1585 = vmatpush1.bf16.msra.mxu0 %v1548
    %1586 = vmatprep.subr.bf16.mxu0 %v1545
    %1587 = vmatpush1.bf16.msra.mxu0 %v1544
    %1588 = vmatprep.subr.bf16.mxu0 %v1541
    %1589 = vmatpush1.bf16.msra.mxu0 %v1540
    %1590 = vmatprep.subr.bf16.mxu0 %v1537
    %1591 = vmatpush1.bf16.msra.mxu0 %v1536
    %1592 = vmatprep.subr.bf16.mxu0 %v1533
    %1593 = vmatpush1.bf16.msra.mxu0 %v1532
    %1594 = vmatprep.subr.bf16.mxu0 %v1529
    %1595 = vmatpush1.bf16.msra.mxu0 %v1528
    %1596 = vmatprep.subr.bf16.mxu0 %v1525
    %1597 = vmatpush1.bf16.msra.mxu0 %v1524
    %1598 = vmatprep.subr.bf16.mxu0 %v1521
    %1599 = vmatpush1.bf16.msra.mxu0 %v1520
    %1600 = vmatprep.subr.bf16.mxu0 0
    %1601 = vmatpush2.bf16.msra.mxu0 0
    %1602 = vmatprep.subr.bf16.mxu0 0
    %1603 = vmatpush2.bf16.msra.mxu0 0
    %1604 = vmatprep.subr.bf16.mxu0 0
    %1605 = vmatpush2.bf16.msra.mxu0 0
    %1606 = vmatprep.subr.bf16.mxu0 0
    %1607 = vmatpush2.bf16.msra.mxu0 0
    %1608 = vmatprep.subr.bf16.mxu0 0
    %1609 = vmatpush2.bf16.msra.mxu0 0
    %1610 = vmatprep.subr.bf16.mxu0 0
    %1611 = vmatpush2.bf16.msra.mxu0 0
    %1612 = vmatprep.subr.bf16.mxu0 0
    %1613 = vmatpush2.bf16.msra.mxu0 0
    %1614 = vmatprep.subr.bf16.mxu0 0
    %1615 = vmatpush2.bf16.msra.mxu0 0
    %1616 = vmatprep.mubr.bf16.mxu0 0
    %1617 = vmatmul.mubr.bf16.gmra.mxu0 %v1423
    %v1618 = vpop.f32.mrf.mxu0
    %v1619 = vadd.f32 0.0, %v1618
    %v1620 = vpop.f32.mrf.mxu0
    %v1621 = vadd.f32 0.0, %v1620
    %v1622 = vpop.f32.mrf.mxu0
    %v1623 = vpop.f32.mrf.mxu0
    %1624 = vdwg.mxu0
    %1625 = vmatprep.subr.bf16.mxu0 %v1551
    %1626 = vmatpush1.bf16.msra.mxu0 %v1550
    %1627 = vmatprep.subr.bf16.mxu0 %v1547
    %1628 = vmatpush1.bf16.msra.mxu0 %v1546
    %1629 = vmatprep.subr.bf16.mxu0 %v1543
    %1630 = vmatpush1.bf16.msra.mxu0 %v1542
    %1631 = vmatprep.subr.bf16.mxu0 %v1539
    %1632 = vmatpush1.bf16.msra.mxu0 %v1538
    %1633 = vmatprep.subr.bf16.mxu0 %v1535
    %1634 = vmatpush1.bf16.msra.mxu0 %v1534
    %1635 = vmatprep.subr.bf16.mxu0 %v1531
    %1636 = vmatpush1.bf16.msra.mxu0 %v1530
    %1637 = vmatprep.subr.bf16.mxu0 %v1527
    %1638 = vmatpush1.bf16.msra.mxu0 %v1526
    %1639 = vmatprep.subr.bf16.mxu0 %v1523
    %1640 = vmatpush1.bf16.msra.mxu0 %v1522
    %1641 = vmatprep.subr.bf16.mxu0 0
    %1642 = vmatpush2.bf16.msra.mxu0 0
    %1643 = vmatprep.subr.bf16.mxu0 0
    %1644 = vmatpush2.bf16.msra.mxu0 0
    %1645 = vmatprep.subr.bf16.mxu0 0
    %1646 = vmatpush2.bf16.msra.mxu0 0
    %1647 = vmatprep.subr.bf16.mxu0 0
    %1648 = vmatpush2.bf16.msra.mxu0 0
    %1649 = vmatprep.subr.bf16.mxu0 0
    %1650 = vmatpush2.bf16.msra.mxu0 0
    %1651 = vmatprep.subr.bf16.mxu0 0
    %1652 = vmatpush2.bf16.msra.mxu0 0
    %1653 = vmatprep.subr.bf16.mxu0 0
    %1654 = vmatpush2.bf16.msra.mxu0 0
    %1655 = vmatprep.subr.bf16.mxu0 0
    %1656 = vmatpush2.bf16.msra.mxu0 0
    %1657 = vmatprep.mubr.bf16.mxu0 0
    %1658 = vmatmul.mubr.bf16.gmra.mxu0 %v1423
    %v1659 = vpop.f32.mrf.mxu0
    %v1660 = vadd.f32 0.0, %v1659
    %v1661 = vpop.f32.mrf.mxu0
    %v1662 = vadd.f32 0.0, %v1661
    %v1663 = vpop.f32.mrf.mxu0
    %v1664 = vpop.f32.mrf.mxu0
    %1665 = vdwg.mxu0
    %v1666 = vadd.f32 %v1619, %v1385
    %v1667 = vadd.f32 %v1621, %v1389
    %v1668 = vxor.u32 %v1666, 2147483648
    %v1669 = vmul.f32 %v1668, 1.442695
    %v1670 = vpow.pop %v1669
    %v1671 = vadd.f32 %v1670, 1.0
    %v1672 = vrcp.pop %v1671
    %v1673 = vmul.f32 1.0, %v1672
    %v1674 = vmul.f32 %v1667, %v1395
    %v1675 = vtanh.pop %v1674
    %v1676 = vmul.f32 %v1675, %v1395
    %v1677 = vadd.f32 %v1676, %v1396
    %v1678 = vsel %vm1394, %v1677, 0.0
    %v1679 = vmul.f32 %v1673, %v1678
    %1680 = vrot.lane.b32.xlu0 %v1679, 64
    %v1681 = vpop.permute.xlu0 %1680
    %v1682 = vadd.f32 %v1679, %v1681
    %v1683 = vtanh.pop %v1682
    %v1684 = vmul.f32 %v1677, %v1683
    %s1685 = scalar_lea.vmem [#allocation2], 2
    %v1686 = vld [vmem:[%s1685] sm:$0x3]
    %v1687 = vunpack.c.l.bf16 %v1686
    %v1690 = vcombine.low %v1660, %v1662
    %v1692 = vunpack.c.l.s4 1983009808
    %v1693 = vunpack.c.0.s8 %v1692
    %v1694 = vlaneseq
    %v1695 = vshrl.u32 %v1694, 7
    %v1696 = vsub.s32 %v1693, %v1695
    %v1697 = vrot.slane %v1690, %v1696
    %v1699 = vadd.f32 %v1687, %v1697
    %v1700 = vxor.u32 %v1699, 2147483648
    %v1701 = vmul.f32 %v1700, 1.442695
    %v1702 = vpow.pop %v1701
    %v1703 = vadd.f32 %v1702, 1.0
    %v1704 = vrcp.pop %v1703
    %v1705 = vmul.f32 1.0, %v1704
    %v1707 = vrot.slane %v1699, 2
    %v1709 = vmul.f32 %v1707, %v1395
    %v1710 = vtanh.pop %v1709
    %v1711 = vmul.f32 %v1710, %v1395
    %v1712 = vadd.f32 %v1711, %v1396
    %v1713 = vsel %vm1394, %v1712, %v1417
    %v1714 = vmul.f32 %v1705, %v1713
    %1715 = vrot.lane.b32.xlu0 %v1714, 64
    %v1716 = vpop.permute.xlu0 %1715
    %v1717 = vadd.f32 %v1714, %v1716
    %v1718 = vtanh.pop %v1717
    %v1719 = vmul.f32 %v1712, %v1718
    %1720 = vrot.lane.b32.xlu0 %v1719, 64
    %v1721 = vpop.permute.xlu0 %1720
    %v1722 = vsel %vm1394, %v1721, %v1684
    %v1723 = vpack.c.bf16 %v1722, %v1722
    %1724 = vmatprep.subr.bf16.mxu0 %v1549
    %1725 = vmatpush1.bf16.msra.mxu0 %v1548
    %1726 = vmatprep.subr.bf16.mxu0 %v1545
    %1727 = vmatpush1.bf16.msra.mxu0 %v1544
    %1728 = vmatprep.subr.bf16.mxu0 %v1541
    %1729 = vmatpush1.bf16.msra.mxu0 %v1540
    %1730 = vmatprep.subr.bf16.mxu0 %v1537
    %1731 = vmatpush1.bf16.msra.mxu0 %v1536
    %1732 = vmatprep.subr.bf16.mxu0 %v1533
    %1733 = vmatpush1.bf16.msra.mxu0 %v1532
    %1734 = vmatprep.subr.bf16.mxu0 %v1529
    %1735 = vmatpush1.bf16.msra.mxu0 %v1528
    %1736 = vmatprep.subr.bf16.mxu0 %v1525
    %1737 = vmatpush1.bf16.msra.mxu0 %v1524
    %1738 = vmatprep.subr.bf16.mxu0 %v1521
    %1739 = vmatpush1.bf16.msra.mxu0 %v1520
    %1740 = vmatprep.subr.bf16.mxu0 0
    %1741 = vmatpush2.bf16.msra.mxu0 0
    %1742 = vmatprep.subr.bf16.mxu0 0
    %1743 = vmatpush2.bf16.msra.mxu0 0
    %1744 = vmatprep.subr.bf16.mxu0 0
    %1745 = vmatpush2.bf16.msra.mxu0 0
    %1746 = vmatprep.subr.bf16.mxu0 0
    %1747 = vmatpush2.bf16.msra.mxu0 0
    %1748 = vmatprep.subr.bf16.mxu0 0
    %1749 = vmatpush2.bf16.msra.mxu0 0
    %1750 = vmatprep.subr.bf16.mxu0 0
    %1751 = vmatpush2.bf16.msra.mxu0 0
    %1752 = vmatprep.subr.bf16.mxu0 0
    %1753 = vmatpush2.bf16.msra.mxu0 0
    %1754 = vmatprep.subr.bf16.mxu0 0
    %1755 = vmatpush2.bf16.msra.mxu0 0
    %1756 = vmatprep.mubr.bf16.mxu0 0
    %1757 = vmatmul.mubr.bf16.gmra.mxu0 %v1723
    %v1758 = vpop.f32.mrf.mxu0
    %v1759 = vadd.f32 0.0, %v1758
    %v1760 = vpop.f32.mrf.mxu0
    %v1761 = vadd.f32 0.0, %v1760
    %v1762 = vpop.f32.mrf.mxu0
    %v1763 = vpop.f32.mrf.mxu0
    %1764 = vdwg.mxu0
    %1765 = vmatprep.subr.bf16.mxu0 %v1551
    %1766 = vmatpush1.bf16.msra.mxu0 %v1550
    %1767 = vmatprep.subr.bf16.mxu0 %v1547
    %1768 = vmatpush1.bf16.msra.mxu0 %v1546
    %1769 = vmatprep.subr.bf16.mxu0 %v1543
    %1770 = vmatpush1.bf16.msra.mxu0 %v1542
    %1771 = vmatprep.subr.bf16.mxu0 %v1539
    %1772 = vmatpush1.bf16.msra.mxu0 %v1538
    %1773 = vmatprep.subr.bf16.mxu0 %v1535
    %1774 = vmatpush1.bf16.msra.mxu0 %v1534
    %1775 = vmatprep.subr.bf16.mxu0 %v1531
    %1776 = vmatpush1.bf16.msra.mxu0 %v1530
    %1777 = vmatprep.subr.bf16.mxu0 %v1527
    %1778 = vmatpush1.bf16.msra.mxu0 %v1526
    %1779 = vmatprep.subr.bf16.mxu0 %v1523
    %1780 = vmatpush1.bf16.msra.mxu0 %v1522
    %1781 = vmatprep.subr.bf16.mxu0 0
    %1782 = vmatpush2.bf16.msra.mxu0 0
    %1783 = vmatprep.subr.bf16.mxu0 0
    %1784 = vmatpush2.bf16.msra.mxu0 0
    %1785 = vmatprep.subr.bf16.mxu0 0
    %1786 = vmatpush2.bf16.msra.mxu0 0
    %1787 = vmatprep.subr.bf16.mxu0 0
    %1788 = vmatpush2.bf16.msra.mxu0 0
    %1789 = vmatprep.subr.bf16.mxu0 0
    %1790 = vmatpush2.bf16.msra.mxu0 0
    %1791 = vmatprep.subr.bf16.mxu0 0
    %1792 = vmatpush2.bf16.msra.mxu0 0
    %1793 = vmatprep.subr.bf16.mxu0 0
    %1794 = vmatpush2.bf16.msra.mxu0 0
    %1795 = vmatprep.subr.bf16.mxu0 0
    %1796 = vmatpush2.bf16.msra.mxu0 0
    %1797 = vmatprep.mubr.bf16.mxu0 0
    %1798 = vmatmul.mubr.bf16.gmra.mxu0 %v1723
    %v1799 = vpop.f32.mrf.mxu0
    %v1800 = vadd.f32 0.0, %v1799
    %v1801 = vpop.f32.mrf.mxu0
    %v1802 = vadd.f32 0.0, %v1801
    %v1803 = vpop.f32.mrf.mxu0
    %v1804 = vpop.f32.mrf.mxu0
    %1805 = vdwg.mxu0
    %v1806 = vadd.f32 %v1759, %v1385
    %v1807 = vadd.f32 %v1761, %v1389
    %v1808 = vxor.u32 %v1806, 2147483648
    %v1809 = vmul.f32 %v1808, 1.442695
    %v1810 = vpow.pop %v1809
    %v1811 = vadd.f32 %v1810, 1.0
    %v1812 = vrcp.pop %v1811
    %v1813 = vmul.f32 1.0, %v1812
    %v1814 = vmul.f32 %v1807, %v1395
    %v1815 = vtanh.pop %v1814
    %v1816 = vmul.f32 %v1815, %v1395
    %v1817 = vadd.f32 %v1816, %v1396
    %v1818 = vsel %vm1394, %v1817, %v1682
    %v1819 = vmul.f32 %v1813, %v1818
    %1820 = vrot.lane.b32.xlu0 %v1819, 64
    %v1821 = vpop.permute.xlu0 %1820
    %v1822 = vadd.f32 %v1819, %v1821
    %v1823 = vtanh.pop %v1822
    %v1824 = vmul.f32 %v1817, %v1823
    %s1825 = scalar_lea.vmem [#allocation2], 4
    %v1826 = vld [vmem:[%s1825] sm:$0x3]
    %v1827 = vunpack.c.l.bf16 %v1826
    %v1830 = vcombine.low %v1800, %v1802
    %v1832 = vunpack.c.l.s4 1983009808
    %v1833 = vunpack.c.0.s8 %v1832
    %v1834 = vlaneseq
    %v1835 = vshrl.u32 %v1834, 7
    %v1836 = vsub.s32 %v1833, %v1835
    %v1837 = vrot.slane %v1830, %v1836
    %v1839 = vadd.f32 %v1827, %v1837
    %v1840 = vxor.u32 %v1839, 2147483648
    %v1841 = vmul.f32 %v1840, 1.442695
    %v1842 = vpow.pop %v1841
    %v1843 = vadd.f32 %v1842, 1.0
    %v1844 = vrcp.pop %v1843
    %v1845 = vmul.f32 1.0, %v1844
    %v1847 = vrot.slane %v1839, 2
    %v1849 = vmul.f32 %v1847, %v1395
    %v1850 = vtanh.pop %v1849
    %v1851 = vmul.f32 %v1850, %v1395
    %v1852 = vadd.f32 %v1851, %v1396
    %v1853 = vsel %vm1394, %v1852, %v1717
    %v1854 = vmul.f32 %v1845, %v1853
    %1855 = vrot.lane.b32.xlu0 %v1854, 64
    %v1856 = vpop.permute.xlu0 %1855
    %v1857 = vadd.f32 %v1854, %v1856
    %v1858 = vtanh.pop %v1857
    %v1859 = vmul.f32 %v1852, %v1858
    %1860 = vrot.lane.b32.xlu0 %v1859, 64
    %v1861 = vpop.permute.xlu0 %1860
    %v1862 = vsel %vm1394, %v1861, %v1824
    %v1863 = vpack.c.bf16 %v1862, %v1862
    %1864 = vmatprep.subr.bf16.mxu0 %v1549
    %1865 = vmatpush1.bf16.msra.mxu0 %v1548
    %1866 = vmatprep.subr.bf16.mxu0 %v1545
    %1867 = vmatpush1.bf16.msra.mxu0 %v1544
    %1868 = vmatprep.subr.bf16.mxu0 %v1541
    %1869 = vmatpush1.bf16.msra.mxu0 %v1540
    %1870 = vmatprep.subr.bf16.mxu0 %v1537
    %1871 = vmatpush1.bf16.msra.mxu0 %v1536
    %1872 = vmatprep.subr.bf16.mxu0 %v1533
    %1873 = vmatpush1.bf16.msra.mxu0 %v1532
    %1874 = vmatprep.subr.bf16.mxu0 %v1529
    %1875 = vmatpush1.bf16.msra.mxu0 %v1528
    %1876 = vmatprep.subr.bf16.mxu0 %v1525
    %1877 = vmatpush1.bf16.msra.mxu0 %v1524
    %1878 = vmatprep.subr.bf16.mxu0 %v1521
    %1879 = vmatpush1.bf16.msra.mxu0 %v1520
    %1880 = vmatprep.subr.bf16.mxu0 0
    %1881 = vmatpush2.bf16.msra.mxu0 0
    %1882 = vmatprep.subr.bf16.mxu0 0
    %1883 = vmatpush2.bf16.msra.mxu0 0
    %1884 = vmatprep.subr.bf16.mxu0 0
    %1885 = vmatpush2.bf16.msra.mxu0 0
    %1886 = vmatprep.subr.bf16.mxu0 0
    %1887 = vmatpush2.bf16.msra.mxu0 0
    %1888 = vmatprep.subr.bf16.mxu0 0
    %1889 = vmatpush2.bf16.msra.mxu0 0
    %1890 = vmatprep.subr.bf16.mxu0 0
    %1891 = vmatpush2.bf16.msra.mxu0 0
    %1892 = vmatprep.subr.bf16.mxu0 0
    %1893 = vmatpush2.bf16.msra.mxu0 0
    %1894 = vmatprep.subr.bf16.mxu0 0
    %1895 = vmatpush2.bf16.msra.mxu0 0
    %1896 = vmatprep.mubr.bf16.mxu0 0
    %1897 = vmatmul.mubr.bf16.gmra.mxu0 %v1863
    %v1898 = vpop.f32.mrf.mxu0
    %v1899 = vadd.f32 0.0, %v1898
    %v1900 = vpop.f32.mrf.mxu0
    %v1901 = vadd.f32 0.0, %v1900
    %v1902 = vpop.f32.mrf.mxu0
    %v1903 = vpop.f32.mrf.mxu0
    %1904 = vdwg.mxu0
    %1905 = vmatprep.subr.bf16.mxu0 %v1551
    %1906 = vmatpush1.bf16.msra.mxu0 %v1550
    %1907 = vmatprep.subr.bf16.mxu0 %v1547
    %1908 = vmatpush1.bf16.msra.mxu0 %v1546
    %1909 = vmatprep.subr.bf16.mxu0 %v1543
    %1910 = vmatpush1.bf16.msra.mxu0 %v1542
    %1911 = vmatprep.subr.bf16.mxu0 %v1539
    %1912 = vmatpush1.bf16.msra.mxu0 %v1538
    %1913 = vmatprep.subr.bf16.mxu0 %v1535
    %1914 = vmatpush1.bf16.msra.mxu0 %v1534
    %1915 = vmatprep.subr.bf16.mxu0 %v1531
    %1916 = vmatpush1.bf16.msra.mxu0 %v1530
    %1917 = vmatprep.subr.bf16.mxu0 %v1527
    %1918 = vmatpush1.bf16.msra.mxu0 %v1526
    %1919 = vmatprep.subr.bf16.mxu0 %v1523
    %1920 = vmatpush1.bf16.msra.mxu0 %v1522
    %1921 = vmatprep.subr.bf16.mxu0 0
    %1922 = vmatpush2.bf16.msra.mxu0 0
    %1923 = vmatprep.subr.bf16.mxu0 0
    %1924 = vmatpush2.bf16.msra.mxu0 0
    %1925 = vmatprep.subr.bf16.mxu0 0
    %1926 = vmatpush2.bf16.msra.mxu0 0
    %1927 = vmatprep.subr.bf16.mxu0 0
    %1928 = vmatpush2.bf16.msra.mxu0 0
    %1929 = vmatprep.subr.bf16.mxu0 0
    %1930 = vmatpush2.bf16.msra.mxu0 0
    %1931 = vmatprep.subr.bf16.mxu0 0
    %1932 = vmatpush2.bf16.msra.mxu0 0
    %1933 = vmatprep.subr.bf16.mxu0 0
    %1934 = vmatpush2.bf16.msra.mxu0 0
    %1935 = vmatprep.subr.bf16.mxu0 0
    %1936 = vmatpush2.bf16.msra.mxu0 0
    %1937 = vmatprep.mubr.bf16.mxu0 0
    %1938 = vmatmul.mubr.bf16.gmra.mxu0 %v1863
    %v1939 = vpop.f32.mrf.mxu0
    %v1940 = vadd.f32 0.0, %v1939
    %v1941 = vpop.f32.mrf.mxu0
    %v1942 = vadd.f32 0.0, %v1941
    %v1943 = vpop.f32.mrf.mxu0
    %v1944 = vpop.f32.mrf.mxu0
    %1945 = vdwg.mxu0
    %v1946 = vadd.f32 %v1899, %v1385
    %v1947 = vadd.f32 %v1901, %v1389
    %v1948 = vxor.u32 %v1946, 2147483648
    %v1949 = vmul.f32 %v1948, 1.442695
    %v1950 = vpow.pop %v1949
    %v1951 = vadd.f32 %v1950, 1.0
    %v1952 = vrcp.pop %v1951
    %v1953 = vmul.f32 1.0, %v1952
    %v1954 = vmul.f32 %v1947, %v1395
    %v1955 = vtanh.pop %v1954
    %v1956 = vmul.f32 %v1955, %v1395
    %v1957 = vadd.f32 %v1956, %v1396
    %v1958 = vsel %vm1394, %v1957, %v1822
    %v1959 = vmul.f32 %v1953, %v1958
    %1960 = vrot.lane.b32.xlu0 %v1959, 64
    %v1961 = vpop.permute.xlu0 %1960
    %v1962 = vadd.f32 %v1959, %v1961
    %v1963 = vtanh.pop %v1962
    %v1964 = vmul.f32 %v1957, %v1963
    %s1965 = scalar_lea.vmem [#allocation2], 6
    %v1966 = vld [vmem:[%s1965] sm:$0x3]
    %v1967 = vunpack.c.l.bf16 %v1966
    %v1970 = vcombine.low %v1940, %v1942
    %v1972 = vunpack.c.l.s4 1983009808
    %v1973 = vunpack.c.0.s8 %v1972
    %v1974 = vlaneseq
    %v1975 = vshrl.u32 %v1974, 7
    %v1976 = vsub.s32 %v1973, %v1975
    %v1977 = vrot.slane %v1970, %v1976
    %v1979 = vadd.f32 %v1967, %v1977
    %v1980 = vxor.u32 %v1979, 2147483648
    %v1981 = vmul.f32 %v1980, 1.442695
    %v1982 = vpow.pop %v1981
    %v1983 = vadd.f32 %v1982, 1.0
    %v1984 = vrcp.pop %v1983
    %v1985 = vmul.f32 1.0, %v1984
    %v1987 = vrot.slane %v1979, 2
    %v1989 = vmul.f32 %v1987, %v1395
    %v1990 = vtanh.pop %v1989
    %v1991 = vmul.f32 %v1990, %v1395
    %v1992 = vadd.f32 %v1991, %v1396
    %v1993 = vsel %vm1394, %v1992, %v1857
    %v1994 = vmul.f32 %v1985, %v1993
    %1995 = vrot.lane.b32.xlu0 %v1994, 64
    %v1996 = vpop.permute.xlu0 %1995
    %v1997 = vadd.f32 %v1994, %v1996
    %v1998 = vtanh.pop %v1997
    %v1999 = vmul.f32 %v1992, %v1998
    %2000 = vrot.lane.b32.xlu0 %v1999, 64
    %v2001 = vpop.permute.xlu0 %2000
    %v2002 = vsel %vm1394, %v2001, %v1964
    %v2003 = vpack.c.bf16 %v2002, %v2002
    %2004 = vmatprep.subr.bf16.mxu0 %v1549
    %2005 = vmatpush1.bf16.msra.mxu0 %v1548
    %2006 = vmatprep.subr.bf16.mxu0 %v1545
    %2007 = vmatpush1.bf16.msra.mxu0 %v1544
    %2008 = vmatprep.subr.bf16.mxu0 %v1541
    %2009 = vmatpush1.bf16.msra.mxu0 %v1540
    %2010 = vmatprep.subr.bf16.mxu0 %v1537
    %2011 = vmatpush1.bf16.msra.mxu0 %v1536
    %2012 = vmatprep.subr.bf16.mxu0 %v1533
    %2013 = vmatpush1.bf16.msra.mxu0 %v1532
    %2014 = vmatprep.subr.bf16.mxu0 %v1529
    %2015 = vmatpush1.bf16.msra.mxu0 %v1528
    %2016 = vmatprep.subr.bf16.mxu0 %v1525
    %2017 = vmatpush1.bf16.msra.mxu0 %v1524
    %2018 = vmatprep.subr.bf16.mxu0 %v1521
    %2019 = vmatpush1.bf16.msra.mxu0 %v1520
    %2020 = vmatprep.subr.bf16.mxu0 0
    %2021 = vmatpush2.bf16.msra.mxu0 0
    %2022 = vmatprep.subr.bf16.mxu0 0
    %2023 = vmatpush2.bf16.msra.mxu0 0
    %2024 = vmatprep.subr.bf16.mxu0 0
    %2025 = vmatpush2.bf16.msra.mxu0 0
    %2026 = vmatprep.subr.bf16.mxu0 0
    %2027 = vmatpush2.bf16.msra.mxu0 0
    %2028 = vmatprep.subr.bf16.mxu0 0
    %2029 = vmatpush2.bf16.msra.mxu0 0
    %2030 = vmatprep.subr.bf16.mxu0 0
    %2031 = vmatpush2.bf16.msra.mxu0 0
    %2032 = vmatprep.subr.bf16.mxu0 0
    %2033 = vmatpush2.bf16.msra.mxu0 0
    %2034 = vmatprep.subr.bf16.mxu0 0
    %2035 = vmatpush2.bf16.msra.mxu0 0
    %2036 = vmatprep.mubr.bf16.mxu0 0
    %2037 = vmatmul.mubr.bf16.gmra.mxu0 %v2003
    %v2038 = vpop.f32.mrf.mxu0
    %v2039 = vadd.f32 0.0, %v2038
    %v2040 = vpop.f32.mrf.mxu0
    %v2041 = vadd.f32 0.0, %v2040
    %v2042 = vpop.f32.mrf.mxu0
    %v2043 = vpop.f32.mrf.mxu0
    %2044 = vdwg.mxu0
    %2045 = vmatprep.subr.bf16.mxu0 %v1551
    %2046 = vmatpush1.bf16.msra.mxu0 %v1550
    %2047 = vmatprep.subr.bf16.mxu0 %v1547
    %2048 = vmatpush1.bf16.msra.mxu0 %v1546
    %2049 = vmatprep.subr.bf16.mxu0 %v1543
    %2050 = vmatpush1.bf16.msra.mxu0 %v1542
    %2051 = vmatprep.subr.bf16.mxu0 %v1539
    %2052 = vmatpush1.bf16.msra.mxu0 %v1538
    %2053 = vmatprep.subr.bf16.mxu0 %v1535
    %2054 = vmatpush1.bf16.msra.mxu0 %v1534
    %2055 = vmatprep.subr.bf16.mxu0 %v1531
    %2056 = vmatpush1.bf16.msra.mxu0 %v1530
    %2057 = vmatprep.subr.bf16.mxu0 %v1527
    %2058 = vmatpush1.bf16.msra.mxu0 %v1526
    %2059 = vmatprep.subr.bf16.mxu0 %v1523
    %2060 = vmatpush1.bf16.msra.mxu0 %v1522
    %2061 = vmatprep.subr.bf16.mxu0 0
    %2062 = vmatpush2.bf16.msra.mxu0 0
    %2063 = vmatprep.subr.bf16.mxu0 0
    %2064 = vmatpush2.bf16.msra.mxu0 0
    %2065 = vmatprep.subr.bf16.mxu0 0
    %2066 = vmatpush2.bf16.msra.mxu0 0
    %2067 = vmatprep.subr.bf16.mxu0 0
    %2068 = vmatpush2.bf16.msra.mxu0 0
    %2069 = vmatprep.subr.bf16.mxu0 0
    %2070 = vmatpush2.bf16.msra.mxu0 0
    %2071 = vmatprep.subr.bf16.mxu0 0
    %2072 = vmatpush2.bf16.msra.mxu0 0
    %2073 = vmatprep.subr.bf16.mxu0 0
    %2074 = vmatpush2.bf16.msra.mxu0 0
    %2075 = vmatprep.subr.bf16.mxu0 0
    %2076 = vmatpush2.bf16.msra.mxu0 0
    %2077 = vmatprep.mubr.bf16.mxu0 0
    %2078 = vmatmul.mubr.bf16.gmra.mxu0 %v2003
    %v2079 = vpop.f32.mrf.mxu0
    %v2080 = vadd.f32 0.0, %v2079
    %v2081 = vpop.f32.mrf.mxu0
    %v2082 = vadd.f32 0.0, %v2081
    %v2083 = vpop.f32.mrf.mxu0
    %v2084 = vpop.f32.mrf.mxu0
    %2085 = vdwg.mxu0
    %v2086 = vadd.f32 %v2039, %v1385
    %v2087 = vadd.f32 %v2041, %v1389
    %v2088 = vxor.u32 %v2086, 2147483648
    %v2089 = vmul.f32 %v2088, 1.442695
    %v2090 = vpow.pop %v2089
    %v2091 = vadd.f32 %v2090, 1.0
    %v2092 = vrcp.pop %v2091
    %v2093 = vmul.f32 1.0, %v2092
    %v2094 = vmul.f32 %v2087, %v1395
    %v2095 = vtanh.pop %v2094
    %v2096 = vmul.f32 %v2095, %v1395
    %v2097 = vadd.f32 %v2096, %v1396
    %v2098 = vsel %vm1394, %v2097, %v1962
    %v2099 = vmul.f32 %v2093, %v2098
    %2100 = vrot.lane.b32.xlu0 %v2099, 64
    %v2101 = vpop.permute.xlu0 %2100
    %v2102 = vadd.f32 %v2099, %v2101
    %v2103 = vtanh.pop %v2102
    %v2104 = vmul.f32 %v2097, %v2103
    %s2105 = scalar_lea.vmem [#allocation2], 8
    %v2106 = vld [vmem:[%s2105] sm:$0x3]
    %v2107 = vunpack.c.l.bf16 %v2106
    %v2110 = vcombine.low %v2080, %v2082
    %v2112 = vunpack.c.l.s4 1983009808
    %v2113 = vunpack.c.0.s8 %v2112
    %v2114 = vlaneseq
    %v2115 = vshrl.u32 %v2114, 7
    %v2116 = vsub.s32 %v2113, %v2115
    %v2117 = vrot.slane %v2110, %v2116
    %v2119 = vadd.f32 %v2107, %v2117
    %v2120 = vxor.u32 %v2119, 2147483648
    %v2121 = vmul.f32 %v2120, 1.442695
    %v2122 = vpow.pop %v2121
    %v2123 = vadd.f32 %v2122, 1.0
    %v2124 = vrcp.pop %v2123
    %v2125 = vmul.f32 1.0, %v2124
    %v2127 = vrot.slane %v2119, 2
    %v2129 = vmul.f32 %v2127, %v1395
    %v2130 = vtanh.pop %v2129
    %v2131 = vmul.f32 %v2130, %v1395
    %v2132 = vadd.f32 %v2131, %v1396
    %v2133 = vsel %vm1394, %v2132, %v1997
    %v2134 = vmul.f32 %v2125, %v2133
    %2135 = vrot.lane.b32.xlu0 %v2134, 64
    %v2136 = vpop.permute.xlu0 %2135
    %v2137 = vadd.f32 %v2134, %v2136
    %v2138 = vtanh.pop %v2137
    %v2139 = vmul.f32 %v2132, %v2138
    %2140 = vrot.lane.b32.xlu0 %v2139, 64
    %v2141 = vpop.permute.xlu0 %2140
    %v2142 = vsel %vm1394, %v2141, %v2104
    %v2143 = vpack.c.bf16 %v2142, %v2142
    %2144 = vmatprep.subr.bf16.mxu0 %v1549
    %2145 = vmatpush1.bf16.msra.mxu0 %v1548
    %2146 = vmatprep.subr.bf16.mxu0 %v1545
    %2147 = vmatpush1.bf16.msra.mxu0 %v1544
    %2148 = vmatprep.subr.bf16.mxu0 %v1541
    %2149 = vmatpush1.bf16.msra.mxu0 %v1540
    %2150 = vmatprep.subr.bf16.mxu0 %v1537
    %2151 = vmatpush1.bf16.msra.mxu0 %v1536
    %2152 = vmatprep.subr.bf16.mxu0 %v1533
    %2153 = vmatpush1.bf16.msra.mxu0 %v1532
    %2154 = vmatprep.subr.bf16.mxu0 %v1529
    %2155 = vmatpush1.bf16.msra.mxu0 %v1528
    %2156 = vmatprep.subr.bf16.mxu0 %v1525
    %2157 = vmatpush1.bf16.msra.mxu0 %v1524
    %2158 = vmatprep.subr.bf16.mxu0 %v1521
    %2159 = vmatpush1.bf16.msra.mxu0 %v1520
    %2160 = vmatprep.subr.bf16.mxu0 0
    %2161 = vmatpush2.bf16.msra.mxu0 0
    %2162 = vmatprep.subr.bf16.mxu0 0
    %2163 = vmatpush2.bf16.msra.mxu0 0
    %2164 = vmatprep.subr.bf16.mxu0 0
    %2165 = vmatpush2.bf16.msra.mxu0 0
    %2166 = vmatprep.subr.bf16.mxu0 0
    %2167 = vmatpush2.bf16.msra.mxu0 0
    %2168 = vmatprep.subr.bf16.mxu0 0
    %2169 = vmatpush2.bf16.msra.mxu0 0
    %2170 = vmatprep.subr.bf16.mxu0 0
    %2171 = vmatpush2.bf16.msra.mxu0 0
    %2172 = vmatprep.subr.bf16.mxu0 0
    %2173 = vmatpush2.bf16.msra.mxu0 0
    %2174 = vmatprep.subr.bf16.mxu0 0
    %2175 = vmatpush2.bf16.msra.mxu0 0
    %2176 = vmatprep.mubr.bf16.mxu0 0
    %2177 = vmatmul.mubr.bf16.gmra.mxu0 %v2143
    %v2178 = vpop.f32.mrf.mxu0
    %v2179 = vadd.f32 0.0, %v2178
    %v2180 = vpop.f32.mrf.mxu0
    %v2181 = vadd.f32 0.0, %v2180
    %v2182 = vpop.f32.mrf.mxu0
    %v2183 = vpop.f32.mrf.mxu0
    %2184 = vdwg.mxu0
    %2185 = vmatprep.subr.bf16.mxu0 %v1551
    %2186 = vmatpush1.bf16.msra.mxu0 %v1550
    %2187 = vmatprep.subr.bf16.mxu0 %v1547
    %2188 = vmatpush1.bf16.msra.mxu0 %v1546
    %2189 = vmatprep.subr.bf16.mxu0 %v1543
    %2190 = vmatpush1.bf16.msra.mxu0 %v1542
    %2191 = vmatprep.subr.bf16.mxu0 %v1539
    %2192 = vmatpush1.bf16.msra.mxu0 %v1538
    %2193 = vmatprep.subr.bf16.mxu0 %v1535
    %2194 = vmatpush1.bf16.msra.mxu0 %v1534
    %2195 = vmatprep.subr.bf16.mxu0 %v1531
    %2196 = vmatpush1.bf16.msra.mxu0 %v1530
    %2197 = vmatprep.subr.bf16.mxu0 %v1527
    %2198 = vmatpush1.bf16.msra.mxu0 %v1526
    %2199 = vmatprep.subr.bf16.mxu0 %v1523
    %2200 = vmatpush1.bf16.msra.mxu0 %v1522
    %2201 = vmatprep.subr.bf16.mxu0 0
    %2202 = vmatpush2.bf16.msra.mxu0 0
    %2203 = vmatprep.subr.bf16.mxu0 0
    %2204 = vmatpush2.bf16.msra.mxu0 0
    %2205 = vmatprep.subr.bf16.mxu0 0
    %2206 = vmatpush2.bf16.msra.mxu0 0
    %2207 = vmatprep.subr.bf16.mxu0 0
    %2208 = vmatpush2.bf16.msra.mxu0 0
    %2209 = vmatprep.subr.bf16.mxu0 0
    %2210 = vmatpush2.bf16.msra.mxu0 0
    %2211 = vmatprep.subr.bf16.mxu0 0
    %2212 = vmatpush2.bf16.msra.mxu0 0
    %2213 = vmatprep.subr.bf16.mxu0 0
    %2214 = vmatpush2.bf16.msra.mxu0 0
    %2215 = vmatprep.subr.bf16.mxu0 0
    %2216 = vmatpush2.bf16.msra.mxu0 0
    %2217 = vmatprep.mubr.bf16.mxu0 0
    %2218 = vmatmul.mubr.bf16.gmra.mxu0 %v2143
    %v2219 = vpop.f32.mrf.mxu0
    %v2220 = vadd.f32 0.0, %v2219
    %v2221 = vpop.f32.mrf.mxu0
    %v2222 = vadd.f32 0.0, %v2221
    %v2223 = vpop.f32.mrf.mxu0
    %v2224 = vpop.f32.mrf.mxu0
    %2225 = vdwg.mxu0
    %v2226 = vadd.f32 %v2179, %v1385
    %v2227 = vadd.f32 %v2181, %v1389
    %v2228 = vxor.u32 %v2226, 2147483648
    %v2229 = vmul.f32 %v2228, 1.442695
    %v2230 = vpow.pop %v2229
    %v2231 = vadd.f32 %v2230, 1.0
    %v2232 = vrcp.pop %v2231
    %v2233 = vmul.f32 1.0, %v2232
    %v2234 = vmul.f32 %v2227, %v1395
    %v2235 = vtanh.pop %v2234
    %v2236 = vmul.f32 %v2235, %v1395
    %v2237 = vadd.f32 %v2236, %v1396
    %v2238 = vsel %vm1394, %v2237, %v2102
    %v2239 = vmul.f32 %v2233, %v2238
    %2240 = vrot.lane.b32.xlu0 %v2239, 64
    %v2241 = vpop.permute.xlu0 %2240
    %v2242 = vadd.f32 %v2239, %v2241
    %v2243 = vtanh.pop %v2242
    %v2244 = vmul.f32 %v2237, %v2243
    %s2245 = scalar_lea.vmem [#allocation2], 10
    %v2246 = vld [vmem:[%s2245] sm:$0x3]
    %v2247 = vunpack.c.l.bf16 %v2246
    %v2250 = vcombine.low %v2220, %v2222
    %v2252 = vunpack.c.l.s4 1983009808
    %v2253 = vunpack.c.0.s8 %v2252
    %v2254 = vlaneseq
    %v2255 = vshrl.u32 %v2254, 7
    %v2256 = vsub.s32 %v2253, %v2255
    %v2257 = vrot.slane %v2250, %v2256
    %v2259 = vadd.f32 %v2247, %v2257
    %v2260 = vxor.u32 %v2259, 2147483648
    %v2261 = vmul.f32 %v2260, 1.442695
    %v2262 = vpow.pop %v2261
    %v2263 = vadd.f32 %v2262, 1.0
    %v2264 = vrcp.pop %v2263
    %v2265 = vmul.f32 1.0, %v2264
    %v2267 = vrot.slane %v2259, 2
    %v2269 = vmul.f32 %v2267, %v1395
    %v2270 = vtanh.pop %v2269
    %v2271 = vmul.f32 %v2270, %v1395
    %v2272 = vadd.f32 %v2271, %v1396
    %v2273 = vsel %vm1394, %v2272, %v2137
    %v2274 = vmul.f32 %v2265, %v2273
    %2275 = vrot.lane.b32.xlu0 %v2274, 64
    %v2276 = vpop.permute.xlu0 %2275
    %v2277 = vadd.f32 %v2274, %v2276
    %v2278 = vtanh.pop %v2277
    %v2279 = vmul.f32 %v2272, %v2278
    %2280 = vrot.lane.b32.xlu0 %v2279, 64
    %v2281 = vpop.permute.xlu0 %2280
    %v2282 = vsel %vm1394, %v2281, %v2244
    %v2283 = vpack.c.bf16 %v2282, %v2282
    %2284 = vmatprep.subr.bf16.mxu0 %v1549
    %2285 = vmatpush1.bf16.msra.mxu0 %v1548
    %2286 = vmatprep.subr.bf16.mxu0 %v1545
    %2287 = vmatpush1.bf16.msra.mxu0 %v1544
    %2288 = vmatprep.subr.bf16.mxu0 %v1541
    %2289 = vmatpush1.bf16.msra.mxu0 %v1540
    %2290 = vmatprep.subr.bf16.mxu0 %v1537
    %2291 = vmatpush1.bf16.msra.mxu0 %v1536
    %2292 = vmatprep.subr.bf16.mxu0 %v1533
    %2293 = vmatpush1.bf16.msra.mxu0 %v1532
    %2294 = vmatprep.subr.bf16.mxu0 %v1529
    %2295 = vmatpush1.bf16.msra.mxu0 %v1528
    %2296 = vmatprep.subr.bf16.mxu0 %v1525
    %2297 = vmatpush1.bf16.msra.mxu0 %v1524
    %2298 = vmatprep.subr.bf16.mxu0 %v1521
    %2299 = vmatpush1.bf16.msra.mxu0 %v1520
    %2300 = vmatprep.subr.bf16.mxu0 0
    %2301 = vmatpush2.bf16.msra.mxu0 0
    %2302 = vmatprep.subr.bf16.mxu0 0
    %2303 = vmatpush2.bf16.msra.mxu0 0
    %2304 = vmatprep.subr.bf16.mxu0 0
    %2305 = vmatpush2.bf16.msra.mxu0 0
    %2306 = vmatprep.subr.bf16.mxu0 0
    %2307 = vmatpush2.bf16.msra.mxu0 0
    %2308 = vmatprep.subr.bf16.mxu0 0
    %2309 = vmatpush2.bf16.msra.mxu0 0
    %2310 = vmatprep.subr.bf16.mxu0 0
    %2311 = vmatpush2.bf16.msra.mxu0 0
    %2312 = vmatprep.subr.bf16.mxu0 0
    %2313 = vmatpush2.bf16.msra.mxu0 0
    %2314 = vmatprep.subr.bf16.mxu0 0
    %2315 = vmatpush2.bf16.msra.mxu0 0
    %2316 = vmatprep.mubr.bf16.mxu0 0
    %2317 = vmatmul.mubr.bf16.gmra.mxu0 %v2283
    %v2318 = vpop.f32.mrf.mxu0
    %v2319 = vadd.f32 0.0, %v2318
    %v2320 = vpop.f32.mrf.mxu0
    %v2321 = vadd.f32 0.0, %v2320
    %v2322 = vpop.f32.mrf.mxu0
    %v2323 = vpop.f32.mrf.mxu0
    %2324 = vdwg.mxu0
    %2325 = vmatprep.subr.bf16.mxu0 %v1551
    %2326 = vmatpush1.bf16.msra.mxu0 %v1550
    %2327 = vmatprep.subr.bf16.mxu0 %v1547
    %2328 = vmatpush1.bf16.msra.mxu0 %v1546
    %2329 = vmatprep.subr.bf16.mxu0 %v1543
    %2330 = vmatpush1.bf16.msra.mxu0 %v1542
    %2331 = vmatprep.subr.bf16.mxu0 %v1539
    %2332 = vmatpush1.bf16.msra.mxu0 %v1538
    %2333 = vmatprep.subr.bf16.mxu0 %v1535
    %2334 = vmatpush1.bf16.msra.mxu0 %v1534
    %2335 = vmatprep.subr.bf16.mxu0 %v1531
    %2336 = vmatpush1.bf16.msra.mxu0 %v1530
    %2337 = vmatprep.subr.bf16.mxu0 %v1527
    %2338 = vmatpush1.bf16.msra.mxu0 %v1526
    %2339 = vmatprep.subr.bf16.mxu0 %v1523
    %2340 = vmatpush1.bf16.msra.mxu0 %v1522
    %2341 = vmatprep.subr.bf16.mxu0 0
    %2342 = vmatpush2.bf16.msra.mxu0 0
    %2343 = vmatprep.subr.bf16.mxu0 0
    %2344 = vmatpush2.bf16.msra.mxu0 0
    %2345 = vmatprep.subr.bf16.mxu0 0
    %2346 = vmatpush2.bf16.msra.mxu0 0
    %2347 = vmatprep.subr.bf16.mxu0 0
    %2348 = vmatpush2.bf16.msra.mxu0 0
    %2349 = vmatprep.subr.bf16.mxu0 0
    %2350 = vmatpush2.bf16.msra.mxu0 0
    %2351 = vmatprep.subr.bf16.mxu0 0
    %2352 = vmatpush2.bf16.msra.mxu0 0
    %2353 = vmatprep.subr.bf16.mxu0 0
    %2354 = vmatpush2.bf16.msra.mxu0 0
    %2355 = vmatprep.subr.bf16.mxu0 0
    %2356 = vmatpush2.bf16.msra.mxu0 0
    %2357 = vmatprep.mubr.bf16.mxu0 0
    %2358 = vmatmul.mubr.bf16.gmra.mxu0 %v2283
    %v2359 = vpop.f32.mrf.mxu0
    %v2360 = vadd.f32 0.0, %v2359
    %v2361 = vpop.f32.mrf.mxu0
    %v2362 = vadd.f32 0.0, %v2361
    %v2363 = vpop.f32.mrf.mxu0
    %v2364 = vpop.f32.mrf.mxu0
    %2365 = vdwg.mxu0
    %v2366 = vadd.f32 %v2319, %v1385
    %v2367 = vadd.f32 %v2321, %v1389
    %v2368 = vxor.u32 %v2366, 2147483648
    %v2369 = vmul.f32 %v2368, 1.442695
    %v2370 = vpow.pop %v2369
    %v2371 = vadd.f32 %v2370, 1.0
    %v2372 = vrcp.pop %v2371
    %v2373 = vmul.f32 1.0, %v2372
    %v2374 = vmul.f32 %v2367, %v1395
    %v2375 = vtanh.pop %v2374
    %v2376 = vmul.f32 %v2375, %v1395
    %v2377 = vadd.f32 %v2376, %v1396
    %v2378 = vsel %vm1394, %v2377, %v2242
    %v2379 = vmul.f32 %v2373, %v2378
    %2380 = vrot.lane.b32.xlu0 %v2379, 64
    %v2381 = vpop.permute.xlu0 %2380
    %v2382 = vadd.f32 %v2379, %v2381
    %v2383 = vtanh.pop %v2382
    %v2384 = vmul.f32 %v2377, %v2383
    %s2385 = scalar_lea.vmem [#allocation2], 12
    %v2386 = vld [vmem:[%s2385] sm:$0x3]
    %v2387 = vunpack.c.l.bf16 %v2386
    %v2390 = vcombine.low %v2360, %v2362
    %v2392 = vunpack.c.l.s4 1983009808
    %v2393 = vunpack.c.0.s8 %v2392
    %v2394 = vlaneseq
    %v2395 = vshrl.u32 %v2394, 7
    %v2396 = vsub.s32 %v2393, %v2395
    %v2397 = vrot.slane %v2390, %v2396
    %v2399 = vadd.f32 %v2387, %v2397
    %v2400 = vxor.u32 %v2399, 2147483648
    %v2401 = vmul.f32 %v2400, 1.442695
    %v2402 = vpow.pop %v2401
    %v2403 = vadd.f32 %v2402, 1.0
    %v2404 = vrcp.pop %v2403
    %v2405 = vmul.f32 1.0, %v2404
    %v2407 = vrot.slane %v2399, 2
    %v2409 = vmul.f32 %v2407, %v1395
    %v2410 = vtanh.pop %v2409
    %v2411 = vmul.f32 %v2410, %v1395
    %v2412 = vadd.f32 %v2411, %v1396
    %v2413 = vsel %vm1394, %v2412, %v2277
    %v2414 = vmul.f32 %v2405, %v2413
    %2415 = vrot.lane.b32.xlu0 %v2414, 64
    %v2416 = vpop.permute.xlu0 %2415
    %v2417 = vadd.f32 %v2414, %v2416
    %v2418 = vtanh.pop %v2417
    %v2419 = vmul.f32 %v2412, %v2418
    %2420 = vrot.lane.b32.xlu0 %v2419, 64
    %v2421 = vpop.permute.xlu0 %2420
    %v2422 = vsel %vm1394, %v2421, %v2384
    %v2423 = vpack.c.bf16 %v2422, %v2422
    %2424 = vmatprep.subr.bf16.mxu0 %v1549
    %2425 = vmatpush1.bf16.msra.mxu0 %v1548
    %2426 = vmatprep.subr.bf16.mxu0 %v1545
    %2427 = vmatpush1.bf16.msra.mxu0 %v1544
    %2428 = vmatprep.subr.bf16.mxu0 %v1541
    %2429 = vmatpush1.bf16.msra.mxu0 %v1540
    %2430 = vmatprep.subr.bf16.mxu0 %v1537
    %2431 = vmatpush1.bf16.msra.mxu0 %v1536
    %2432 = vmatprep.subr.bf16.mxu0 %v1533
    %2433 = vmatpush1.bf16.msra.mxu0 %v1532
    %2434 = vmatprep.subr.bf16.mxu0 %v1529
    %2435 = vmatpush1.bf16.msra.mxu0 %v1528
    %2436 = vmatprep.subr.bf16.mxu0 %v1525
    %2437 = vmatpush1.bf16.msra.mxu0 %v1524
    %2438 = vmatprep.subr.bf16.mxu0 %v1521
    %2439 = vmatpush1.bf16.msra.mxu0 %v1520
    %2440 = vmatprep.subr.bf16.mxu0 0
    %2441 = vmatpush2.bf16.msra.mxu0 0
    %2442 = vmatprep.subr.bf16.mxu0 0
    %2443 = vmatpush2.bf16.msra.mxu0 0
    %2444 = vmatprep.subr.bf16.mxu0 0
    %2445 = vmatpush2.bf16.msra.mxu0 0
    %2446 = vmatprep.subr.bf16.mxu0 0
    %2447 = vmatpush2.bf16.msra.mxu0 0
    %2448 = vmatprep.subr.bf16.mxu0 0
    %2449 = vmatpush2.bf16.msra.mxu0 0
    %2450 = vmatprep.subr.bf16.mxu0 0
    %2451 = vmatpush2.bf16.msra.mxu0 0
    %2452 = vmatprep.subr.bf16.mxu0 0
    %2453 = vmatpush2.bf16.msra.mxu0 0
    %2454 = vmatprep.subr.bf16.mxu0 0
    %2455 = vmatpush2.bf16.msra.mxu0 0
    %2456 = vmatprep.mubr.bf16.mxu0 0
    %2457 = vmatmul.mubr.bf16.gmra.mxu0 %v2423
    %v2458 = vpop.f32.mrf.mxu0
    %v2459 = vadd.f32 0.0, %v2458
    %v2460 = vpop.f32.mrf.mxu0
    %v2461 = vadd.f32 0.0, %v2460
    %v2462 = vpop.f32.mrf.mxu0
    %v2463 = vpop.f32.mrf.mxu0
    %2464 = vdwg.mxu0
    %2465 = vmatprep.subr.bf16.mxu0 %v1551
    %2466 = vmatpush1.bf16.msra.mxu0 %v1550
    %2467 = vmatprep.subr.bf16.mxu0 %v1547
    %2468 = vmatpush1.bf16.msra.mxu0 %v1546
    %2469 = vmatprep.subr.bf16.mxu0 %v1543
    %2470 = vmatpush1.bf16.msra.mxu0 %v1542
    %2471 = vmatprep.subr.bf16.mxu0 %v1539
    %2472 = vmatpush1.bf16.msra.mxu0 %v1538
    %2473 = vmatprep.subr.bf16.mxu0 %v1535
    %2474 = vmatpush1.bf16.msra.mxu0 %v1534
    %2475 = vmatprep.subr.bf16.mxu0 %v1531
    %2476 = vmatpush1.bf16.msra.mxu0 %v1530
    %2477 = vmatprep.subr.bf16.mxu0 %v1527
    %2478 = vmatpush1.bf16.msra.mxu0 %v1526
    %2479 = vmatprep.subr.bf16.mxu0 %v1523
    %2480 = vmatpush1.bf16.msra.mxu0 %v1522
    %2481 = vmatprep.subr.bf16.mxu0 0
    %2482 = vmatpush2.bf16.msra.mxu0 0
    %2483 = vmatprep.subr.bf16.mxu0 0
    %2484 = vmatpush2.bf16.msra.mxu0 0
    %2485 = vmatprep.subr.bf16.mxu0 0
    %2486 = vmatpush2.bf16.msra.mxu0 0
    %2487 = vmatprep.subr.bf16.mxu0 0
    %2488 = vmatpush2.bf16.msra.mxu0 0
    %2489 = vmatprep.subr.bf16.mxu0 0
    %2490 = vmatpush2.bf16.msra.mxu0 0
    %2491 = vmatprep.subr.bf16.mxu0 0
    %2492 = vmatpush2.bf16.msra.mxu0 0
    %2493 = vmatprep.subr.bf16.mxu0 0
    %2494 = vmatpush2.bf16.msra.mxu0 0
    %2495 = vmatprep.subr.bf16.mxu0 0
    %2496 = vmatpush2.bf16.msra.mxu0 0
    %2497 = vmatprep.mubr.bf16.mxu0 0
    %2498 = vmatmul.mubr.bf16.gmra.mxu0 %v2423
    %v2499 = vpop.f32.mrf.mxu0
    %v2500 = vadd.f32 0.0, %v2499
    %v2501 = vpop.f32.mrf.mxu0
    %v2502 = vadd.f32 0.0, %v2501
    %v2503 = vpop.f32.mrf.mxu0
    %v2504 = vpop.f32.mrf.mxu0
    %2505 = vdwg.mxu0
    %v2506 = vadd.f32 %v2459, %v1385
    %v2507 = vadd.f32 %v2461, %v1389
    %v2508 = vxor.u32 %v2506, 2147483648
    %v2509 = vmul.f32 %v2508, 1.442695
    %v2510 = vpow.pop %v2509
    %v2511 = vadd.f32 %v2510, 1.0
    %v2512 = vrcp.pop %v2511
    %v2513 = vmul.f32 1.0, %v2512
    %v2514 = vmul.f32 %v2507, %v1395
    %v2515 = vtanh.pop %v2514
    %v2516 = vmul.f32 %v2515, %v1395
    %v2517 = vadd.f32 %v2516, %v1396
    %v2518 = vsel %vm1394, %v2517, %v2382
    %v2519 = vmul.f32 %v2513, %v2518
    %2520 = vrot.lane.b32.xlu0 %v2519, 64
    %v2521 = vpop.permute.xlu0 %2520
    %v2522 = vadd.f32 %v2519, %v2521
    %v2523 = vtanh.pop %v2522
    %v2524 = vmul.f32 %v2517, %v2523
    %s2525 = scalar_lea.vmem [#allocation2], 14
    %v2526 = vld [vmem:[%s2525] sm:$0x3]
    %v2527 = vunpack.c.l.bf16 %v2526
    %v2530 = vcombine.low %v2500, %v2502
    %v2532 = vunpack.c.l.s4 1983009808
    %v2533 = vunpack.c.0.s8 %v2532
    %v2534 = vlaneseq
    %v2535 = vshrl.u32 %v2534, 7
    %v2536 = vsub.s32 %v2533, %v2535
    %v2537 = vrot.slane %v2530, %v2536
    %v2539 = vadd.f32 %v2527, %v2537
    %v2540 = vxor.u32 %v2539, 2147483648
    %v2541 = vmul.f32 %v2540, 1.442695
    %v2542 = vpow.pop %v2541
    %v2543 = vadd.f32 %v2542, 1.0
    %v2544 = vrcp.pop %v2543
    %v2545 = vmul.f32 1.0, %v2544
    %v2547 = vrot.slane %v2539, 2
    %v2549 = vmul.f32 %v2547, %v1395
    %v2550 = vtanh.pop %v2549
    %v2551 = vmul.f32 %v2550, %v1395
    %v2552 = vadd.f32 %v2551, %v1396
    %v2553 = vsel %vm1394, %v2552, %v2417
    %v2554 = vmul.f32 %v2545, %v2553
    %2555 = vrot.lane.b32.xlu0 %v2554, 64
    %v2556 = vpop.permute.xlu0 %2555
    %v2557 = vadd.f32 %v2554, %v2556
    %v2558 = vtanh.pop %v2557
    %v2559 = vmul.f32 %v2552, %v2558
    %2560 = vrot.lane.b32.xlu0 %v2559, 64
    %v2561 = vpop.permute.xlu0 %2560
    %v2562 = vsel %vm1394, %v2561, %v2524
    %v2563 = vpack.c.bf16 %v2562, %v2562
    %2564 = vmatprep.subr.bf16.mxu0 %v1549
    %2565 = vmatpush1.bf16.msra.mxu0 %v1548
    %2566 = vmatprep.subr.bf16.mxu0 %v1545
    %2567 = vmatpush1.bf16.msra.mxu0 %v1544
    %2568 = vmatprep.subr.bf16.mxu0 %v1541
    %2569 = vmatpush1.bf16.msra.mxu0 %v1540
    %2570 = vmatprep.subr.bf16.mxu0 %v1537
    %2571 = vmatpush1.bf16.msra.mxu0 %v1536
    %2572 = vmatprep.subr.bf16.mxu0 %v1533
    %2573 = vmatpush1.bf16.msra.mxu0 %v1532
    %2574 = vmatprep.subr.bf16.mxu0 %v1529
    %2575 = vmatpush1.bf16.msra.mxu0 %v1528
    %2576 = vmatprep.subr.bf16.mxu0 %v1525
    %2577 = vmatpush1.bf16.msra.mxu0 %v1524
    %2578 = vmatprep.subr.bf16.mxu0 %v1521
    %2579 = vmatpush1.bf16.msra.mxu0 %v1520
    %2580 = vmatprep.subr.bf16.mxu0 0
    %2581 = vmatpush2.bf16.msra.mxu0 0
    %2582 = vmatprep.subr.bf16.mxu0 0
    %2583 = vmatpush2.bf16.msra.mxu0 0
    %2584 = vmatprep.subr.bf16.mxu0 0
    %2585 = vmatpush2.bf16.msra.mxu0 0
    %2586 = vmatprep.subr.bf16.mxu0 0
    %2587 = vmatpush2.bf16.msra.mxu0 0
    %2588 = vmatprep.subr.bf16.mxu0 0
    %2589 = vmatpush2.bf16.msra.mxu0 0
    %2590 = vmatprep.subr.bf16.mxu0 0
    %2591 = vmatpush2.bf16.msra.mxu0 0
    %2592 = vmatprep.subr.bf16.mxu0 0
    %2593 = vmatpush2.bf16.msra.mxu0 0
    %2594 = vmatprep.subr.bf16.mxu0 0
    %2595 = vmatpush2.bf16.msra.mxu0 0
    %2596 = vmatprep.mubr.bf16.mxu0 0
    %2597 = vmatmul.mubr.bf16.gmra.mxu0 %v2563
    %v2598 = vpop.f32.mrf.mxu0
    %v2599 = vadd.f32 0.0, %v2598
    %v2600 = vpop.f32.mrf.mxu0
    %v2601 = vadd.f32 0.0, %v2600
    %v2602 = vpop.f32.mrf.mxu0
    %v2603 = vpop.f32.mrf.mxu0
    %2604 = vdwg.mxu0
    %v2605 = vadd.f32 %v2599, %v1385
    %v2606 = vadd.f32 %v2601, %v1389
    %v2607 = vxor.u32 %v2605, 2147483648
    %v2608 = vmul.f32 %v2607, 1.442695
    %v2609 = vpow.pop %v2608
    %v2610 = vadd.f32 %v2609, 1.0
    %v2611 = vrcp.pop %v2610
    %v2612 = vmul.f32 1.0, %v2611
    %v2613 = vmul.f32 %v2606, %v1395
    %v2614 = vtanh.pop %v2613
    %v2615 = vmul.f32 %v2614, %v1395
    %v2616 = vadd.f32 %v2615, %v1396
    %v2617 = vsel %vm1394, %v2616, %v2522
    %v2618 = vmul.f32 %v2612, %v2617
    %2619 = vrot.lane.b32.xlu0 %v2618, 64
    %v2620 = vpop.permute.xlu0 %2619
    %v2621 = vadd.f32 %v2618, %v2620
    %v2622 = vtanh.pop %v2621
    %v2623 = vmul.f32 %v2616, %v2622
    %v2624 = vpack.c.bf16 %v2623, %v2623
    %v2625 = vld [vmem:[#allocation12] sm:$0xf]
    %v2626 = vld [vmem:[#allocation12 + $0x4] sm:$0xf]
    %v2627 = vld [vmem:[#allocation12 + $0x8] sm:$0xf]
    %v2628 = vld [vmem:[#allocation12 + $0xc] sm:$0xf]
    %v2629 = vld [vmem:[#allocation12 + $0x10] sm:$0xf]
    %v2630 = vld [vmem:[#allocation12 + $0x14] sm:$0xf]
    %v2631 = vld [vmem:[#allocation12 + $0x18] sm:$0xf]
    %v2632 = vld [vmem:[#allocation12 + $0x1c] sm:$0xf]
    %v2633 = vld [vmem:[#allocation12 + $0x20] sm:$0xf]
    %v2634 = vld [vmem:[#allocation12 + $0x24] sm:$0xf]
    %v2635 = vld [vmem:[#allocation12 + $0x28] sm:$0xf]
    %v2636 = vld [vmem:[#allocation12 + $0x2c] sm:$0xf]
    %v2637 = vld [vmem:[#allocation12 + $0x30] sm:$0xf]
    %v2638 = vld [vmem:[#allocation12 + $0x34] sm:$0xf]
    %v2639 = vld [vmem:[#allocation12 + $0x38] sm:$0xf]
    %v2640 = vld [vmem:[#allocation12 + $0x3c] sm:$0xf]
    %v2641 = vld [vmem:[#allocation14] sm:$0x1]
    %v2643 = vlaneseq
    %v2644 = vshrl.u32 %v2643, 7
    %v2645 = vsub.s32 0, %v2644
    %v2646 = vrot.slane %v2641, %v2645
    %v2664 = vunpack.c.l.b16 %v2625
    %v2665 = vunpack.c.l.b16 %v2626
    %v2666 = vunpack.c.l.b16 %v2627
    %v2667 = vunpack.c.l.b16 %v2628
    %v2668 = vunpack.c.l.b16 %v2629
    %v2669 = vunpack.c.l.b16 %v2630
    %v2670 = vunpack.c.l.b16 %v2631
    %v2671 = vunpack.c.l.b16 %v2632
    %v2672 = vunpack.c.l.b16 %v2633
    %v2673 = vunpack.c.l.b16 %v2634
    %v2674 = vunpack.c.l.b16 %v2635
    %v2675 = vunpack.c.l.b16 %v2636
    %v2676 = vunpack.c.l.b16 %v2637
    %v2677 = vunpack.c.l.b16 %v2638
    %v2678 = vunpack.c.l.b16 %v2639
    %v2679 = vunpack.c.l.b16 %v2640
    %v2680 = vpack.c.b16 %v2665, %v2664
    %v2681 = vpack.c.b16 %v2667, %v2666
    %v2682 = vpack.c.b16 %v2669, %v2668
    %v2683 = vpack.c.b16 %v2671, %v2670
    %v2684 = vpack.c.b16 %v2673, %v2672
    %v2685 = vpack.c.b16 %v2675, %v2674
    %v2686 = vpack.c.b16 %v2677, %v2676
    %v2687 = vpack.c.b16 %v2679, %v2678
    %2696 = vmatprep.subr.bf16.mxu0 0
    %2697 = vmatpush1.bf16.msra.mxu0 %v2687
    %2698 = vmatprep.subr.bf16.mxu0 0
    %2699 = vmatpush1.bf16.msra.mxu0 %v2686
    %2700 = vmatprep.subr.bf16.mxu0 0
    %2701 = vmatpush1.bf16.msra.mxu0 %v2685
    %2702 = vmatprep.subr.bf16.mxu0 0
    %2703 = vmatpush1.bf16.msra.mxu0 %v2684
    %2704 = vmatprep.subr.bf16.mxu0 0
    %2705 = vmatpush1.bf16.msra.mxu0 %v2683
    %2706 = vmatprep.subr.bf16.mxu0 0
    %2707 = vmatpush1.bf16.msra.mxu0 %v2682
    %2708 = vmatprep.subr.bf16.mxu0 0
    %2709 = vmatpush1.bf16.msra.mxu0 %v2681
    %2710 = vmatprep.subr.bf16.mxu0 0
    %2711 = vmatpush1.bf16.msra.mxu0 %v2680
    %2712 = vmatprep.subr.bf16.mxu0 0
    %2713 = vmatpush2.bf16.msra.mxu0 0
    %2714 = vmatprep.subr.bf16.mxu0 0
    %2715 = vmatpush2.bf16.msra.mxu0 0
    %2716 = vmatprep.subr.bf16.mxu0 0
    %2717 = vmatpush2.bf16.msra.mxu0 0
    %2718 = vmatprep.subr.bf16.mxu0 0
    %2719 = vmatpush2.bf16.msra.mxu0 0
    %2720 = vmatprep.subr.bf16.mxu0 0
    %2721 = vmatpush2.bf16.msra.mxu0 0
    %2722 = vmatprep.subr.bf16.mxu0 0
    %2723 = vmatpush2.bf16.msra.mxu0 0
    %2724 = vmatprep.subr.bf16.mxu0 0
    %2725 = vmatpush2.bf16.msra.mxu0 0
    %2726 = vmatprep.subr.bf16.mxu0 0
    %2727 = vmatpush2.bf16.msra.mxu0 0
    %2728 = vmatprep.mubr.bf16.mxu0 0
    %2729 = vmatmul.mubr.bf16.gmra.mxu0 %v2624
    %v2730 = vpop.f32.mrf.mxu0
    %v2731 = vadd.f32 %v2646, %v2730
    %v2732 = vpop.f32.mrf.mxu0
    %v2733 = vpop.f32.mrf.mxu0
    %v2734 = vpop.f32.mrf.mxu0
    %2735 = vdwg.mxu0
    %v2736 = vmax.f32 %v2731, 0.0
    %v2737 = vpack.c.bf16 %v2736, %v2736
    %v2738 = vld [vmem:[%s13] sm:$0xf]
    %v2739 = vld [vmem:[%s13 + $0x4] sm:$0xf]
    %v2740 = vld [vmem:[%s13 + $0x8] sm:$0xf]
    %v2741 = vld [vmem:[%s13 + $0xc] sm:$0xf]
    %v2742 = vld [vmem:[%s13 + $0x10] sm:$0xf]
    %v2743 = vld [vmem:[%s13 + $0x14] sm:$0xf]
    %v2744 = vld [vmem:[%s13 + $0x18] sm:$0xf]
    %v2745 = vld [vmem:[%s13 + $0x1c] sm:$0xf]
    %v2746 = vld [vmem:[%s13 + $0x20] sm:$0xf]
    %v2747 = vld [vmem:[%s13 + $0x24] sm:$0xf]
    %v2748 = vld [vmem:[%s13 + $0x28] sm:$0xf]
    %v2749 = vld [vmem:[%s13 + $0x2c] sm:$0xf]
    %v2750 = vld [vmem:[%s13 + $0x30] sm:$0xf]
    %v2751 = vld [vmem:[%s13 + $0x34] sm:$0xf]
    %v2752 = vld [vmem:[%s13 + $0x38] sm:$0xf]
    %v2753 = vld [vmem:[%s13 + $0x3c] sm:$0xf]
    %v2754 = vld [vmem:[#allocation15] sm:$0x1]
    %v2756 = vlaneseq
    %v2757 = vshrl.u32 %v2756, 7
    %v2758 = vsub.s32 0, %v2757
    %v2759 = vrot.slane %v2754, %v2758
    %v2777 = vunpack.c.l.b16 %v2738
    %v2778 = vunpack.c.l.b16 %v2739
    %v2779 = vunpack.c.l.b16 %v2740
    %v2780 = vunpack.c.l.b16 %v2741
    %v2781 = vunpack.c.l.b16 %v2742
    %v2782 = vunpack.c.l.b16 %v2743
    %v2783 = vunpack.c.l.b16 %v2744
    %v2784 = vunpack.c.l.b16 %v2745
    %v2785 = vunpack.c.l.b16 %v2746
    %v2786 = vunpack.c.l.b16 %v2747
    %v2787 = vunpack.c.l.b16 %v2748
    %v2788 = vunpack.c.l.b16 %v2749
    %v2789 = vunpack.c.l.b16 %v2750
    %v2790 = vunpack.c.l.b16 %v2751
    %v2791 = vunpack.c.l.b16 %v2752
    %v2792 = vunpack.c.l.b16 %v2753
    %v2793 = vpack.c.b16 %v2778, %v2777
    %v2794 = vpack.c.b16 %v2780, %v2779
    %v2795 = vpack.c.b16 %v2782, %v2781
    %v2796 = vpack.c.b16 %v2784, %v2783
    %v2797 = vpack.c.b16 %v2786, %v2785
    %v2798 = vpack.c.b16 %v2788, %v2787
    %v2799 = vpack.c.b16 %v2790, %v2789
    %v2800 = vpack.c.b16 %v2792, %v2791
    %2809 = vmatprep.subr.bf16.mxu0 0
    %2810 = vmatpush1.bf16.msra.mxu0 %v2800
    %2811 = vmatprep.subr.bf16.mxu0 0
    %2812 = vmatpush1.bf16.msra.mxu0 %v2799
    %2813 = vmatprep.subr.bf16.mxu0 0
    %2814 = vmatpush1.bf16.msra.mxu0 %v2798
    %2815 = vmatprep.subr.bf16.mxu0 0
    %2816 = vmatpush1.bf16.msra.mxu0 %v2797
    %2817 = vmatprep.subr.bf16.mxu0 0
    %2818 = vmatpush1.bf16.msra.mxu0 %v2796
    %2819 = vmatprep.subr.bf16.mxu0 0
    %2820 = vmatpush1.bf16.msra.mxu0 %v2795
    %2821 = vmatprep.subr.bf16.mxu0 0
    %2822 = vmatpush1.bf16.msra.mxu0 %v2794
    %2823 = vmatprep.subr.bf16.mxu0 0
    %2824 = vmatpush1.bf16.msra.mxu0 %v2793
    %2825 = vmatprep.subr.bf16.mxu0 0
    %2826 = vmatpush2.bf16.msra.mxu0 0
    %2827 = vmatprep.subr.bf16.mxu0 0
    %2828 = vmatpush2.bf16.msra.mxu0 0
    %2829 = vmatprep.subr.bf16.mxu0 0
    %2830 = vmatpush2.bf16.msra.mxu0 0
    %2831 = vmatprep.subr.bf16.mxu0 0
    %2832 = vmatpush2.bf16.msra.mxu0 0
    %2833 = vmatprep.subr.bf16.mxu0 0
    %2834 = vmatpush2.bf16.msra.mxu0 0
    %2835 = vmatprep.subr.bf16.mxu0 0
    %2836 = vmatpush2.bf16.msra.mxu0 0
    %2837 = vmatprep.subr.bf16.mxu0 0
    %2838 = vmatpush2.bf16.msra.mxu0 0
    %2839 = vmatprep.subr.bf16.mxu0 0
    %2840 = vmatpush2.bf16.msra.mxu0 0
    %2841 = vmatprep.mubr.bf16.mxu0 0
    %2842 = vmatmul.mubr.bf16.gmra.mxu0 %v2737
    %v2843 = vpop.f32.mrf.mxu0
    %v2844 = vadd.f32 %v2759, %v2843
    %v2845 = vpop.f32.mrf.mxu0
    %v2846 = vpop.f32.mrf.mxu0
    %v2847 = vpop.f32.mrf.mxu0
    %2848 = vdwg.mxu0
    %v2849 = vmax.f32 %v2844, 0.0
    %v2850 = vpack.c.bf16 %v2849, %v2849
    %v2851 = vld [vmem:[%s15] sm:$0xf]
    %v2852 = vld [vmem:[%s15 + $0x4] sm:$0xf]
    %v2853 = vld [vmem:[%s15 + $0x8] sm:$0xf]
    %v2854 = vld [vmem:[%s15 + $0xc] sm:$0xf]
    %v2855 = vld [vmem:[%s15 + $0x10] sm:$0xf]
    %v2856 = vld [vmem:[%s15 + $0x14] sm:$0xf]
    %v2857 = vld [vmem:[%s15 + $0x18] sm:$0xf]
    %v2858 = vld [vmem:[%s15 + $0x1c] sm:$0xf]
    %v2859 = vld [vmem:[#allocation17] sm:$0x1]
    %v2861 = vlaneseq
    %v2862 = vshrl.u32 %v2861, 7
    %v2863 = vsub.s32 0, %v2862
    %v2864 = vrot.slane %v2859, %v2863
    %v2874 = vunpack.c.l.b16 %v2851
    %v2875 = vunpack.c.l.b16 %v2852
    %v2876 = vunpack.c.l.b16 %v2853
    %v2877 = vunpack.c.l.b16 %v2854
    %v2878 = vunpack.c.l.b16 %v2855
    %v2879 = vunpack.c.l.b16 %v2856
    %v2880 = vunpack.c.l.b16 %v2857
    %v2881 = vunpack.c.l.b16 %v2858
    %v2882 = vpack.c.b16 %v2875, %v2874
    %v2883 = vpack.c.b16 %v2877, %v2876
    %v2884 = vpack.c.b16 %v2879, %v2878
    %v2885 = vpack.c.b16 %v2881, %v2880
    %v2891 = vsel %vm707, %v2850, 0
    %2893 = vmatprep.subr.bf16.mxu0 0
    %2894 = vmatpush1.bf16.msra.mxu0 0
    %2895 = vmatprep.subr.bf16.mxu0 0
    %2896 = vmatpush1.bf16.msra.mxu0 0
    %2897 = vmatprep.subr.bf16.mxu0 0
    %2898 = vmatpush1.bf16.msra.mxu0 0
    %2899 = vmatprep.subr.bf16.mxu0 0
    %2900 = vmatpush1.bf16.msra.mxu0 0
    %2901 = vmatprep.subr.bf16.mxu0 0
    %2902 = vmatpush1.bf16.msra.mxu0 %v2885
    %2903 = vmatprep.subr.bf16.mxu0 0
    %2904 = vmatpush1.bf16.msra.mxu0 %v2884
    %2905 = vmatprep.subr.bf16.mxu0 0
    %2906 = vmatpush1.bf16.msra.mxu0 %v2883
    %2907 = vmatprep.subr.bf16.mxu0 0
    %2908 = vmatpush1.bf16.msra.mxu0 %v2882
    %2909 = vmatprep.subr.bf16.mxu0 0
    %2910 = vmatpush2.bf16.msra.mxu0 0
    %2911 = vmatprep.subr.bf16.mxu0 0
    %2912 = vmatpush2.bf16.msra.mxu0 0
    %2913 = vmatprep.subr.bf16.mxu0 0
    %2914 = vmatpush2.bf16.msra.mxu0 0
    %2915 = vmatprep.subr.bf16.mxu0 0
    %2916 = vmatpush2.bf16.msra.mxu0 0
    %2917 = vmatprep.subr.bf16.mxu0 0
    %2918 = vmatpush2.bf16.msra.mxu0 0
    %2919 = vmatprep.subr.bf16.mxu0 0
    %2920 = vmatpush2.bf16.msra.mxu0 0
    %2921 = vmatprep.subr.bf16.mxu0 0
    %2922 = vmatpush2.bf16.msra.mxu0 0
    %2923 = vmatprep.subr.bf16.mxu0 0
    %2924 = vmatpush2.bf16.msra.mxu0 0
    %2925 = vmatprep.mubr.bf16.mxu0 0
    %2926 = vmatmul.mubr.bf16.gmra.mxu0 %v2891
    %v2927 = vpop.f32.mrf.mxu0
    %v2928 = vadd.f32 %v2864, %v2927
    %v2929 = vpop.f32.mrf.mxu0
    %v2930 = vpop.f32.mrf.mxu0
    %v2931 = vpop.f32.mrf.mxu0
    %2932 = vdwg.mxu0
    %vm2933 = vcmask 9216
    %2934 = vst.msk [vmem:[#allocation18] sm:$0x3] %vm2933, %v2928
    // Predicated region
    $region106: #{hybrid_forward.1} parent=1 // pred_check
      _
    $region107: #{hybrid_forward.1} parent=1 // pred_check_branch
      %2936 = sbr.rel (0) target = $region109
    $region108: #{hybrid_forward.1} parent=1 // pred_region
      %s2938 = ssub.s32 32, 32
      %2939 = vsyncadd [#allocation5], %s2938
      %s2941 = sshll.u32 [#allocation18], 4
      %s2942 = int_to_ptr.vmem [resolvable:$true] %s2941
      %2944 = dma.vmem_to_hbm [thread:$0]  %s2942, 32, %s17, [#allocation5]
    $region109: #{hybrid_forward.1} parent=1 // pred_fallthru
      _
    // Predicated region
    $region110: #{hybrid_forward.1} parent=1 // pred_check
      _
    $region111: #{hybrid_forward.1} parent=1 // pred_check_branch
      %2946 = sbr.rel (0) target = $region113
    $region112: #{hybrid_forward.1} parent=1 // pred_region
      %2947 = dma.done [#allocation5], 32
    $region113: #{hybrid_forward.1} parent=1 // pred_fallthru
      _
    %2948 = vsyncpa [#allocation4], 1
    %2949 = vsyncpa [#allocation7], 1
    %2950 = vsyncpa [#allocation10], 1
    %2951 = vsyncpa [#allocation13], 1
    %2952 = vsyncpa [#allocation16], 1
    %2953 = vsyncpa [#allocation5], 1

</llo_original>
